<compile_context>
chip_gen: v7x
topology: tpu7x:2x2x1
jax: 0.10.0
libtpu: 0.0.40
codegen_flags: <defaults>
</compile_context>

<pallas_src>
import functools

import jax
import jax.numpy as jnp
from jax.experimental import pallas as pl
from jax.experimental.pallas import tpu as pltpu

K = 9                 # Conv1d kernel size in pm2s ConvBlock
PAD = K // 2          # 'same' padding = 4
HALO_BLK = 16         # halo rows fetched per side (multiple of 8, >= 3*PAD = 12)
BN_EPS = 1e-5
IN_FEATURES = 131     # 128 pitch one-hot + IOI + duration + velocity


def get_in_features():
    return IN_FEATURES


def _pad_to_lanes(c):
    """Pad a channel count up to a multiple of 128 (min 128) for lane-dense layout."""
    return max(128, ((c + 127) // 128) * 128)


# ----------------------------------------------------------------------------
# Feature encoding (glue, plain JAX) — pm2s.models.utils.encode_note_sequence
# ----------------------------------------------------------------------------
def encode_note_sequence(note_seq, cin_p):
    """note_seq: (B, T, 4) [pitch, onset(sec), duration(sec), velocity] -> (B, T, cin_p) bf16."""
    # TODO(synk): exact PM2S feature normalization constants reconstructed from the paper/repo;
    # may differ in minor normalization details from the original encode_note_sequence.
    B, T, _ = note_seq.shape
    pitch = note_seq[..., 0].astype(jnp.int32)
    onset = note_seq[..., 1]
    duration = note_seq[..., 2]
    velocity = note_seq[..., 3]

    pitch_oh = jax.nn.one_hot(pitch, 128, dtype=jnp.float32)                       # (B, T, 128)
    ioi = jnp.concatenate(
        [jnp.zeros_like(onset[:, :1]), onset[:, 1:] - onset[:, :-1]], axis=1
    )[..., None]                                                                    # (B, T, 1)
    dur = duration[..., None]                                                       # (B, T, 1)
    vel = (velocity / 127.0)[..., None]                                             # (B, T, 1)
    chan_pad = jnp.zeros((B, T, cin_p - IN_FEATURES), jnp.float32)                  # lane padding
    feats = jnp.concatenate([pitch_oh, ioi, dur, vel, chan_pad], axis=-1)           # (B, T, cin_p)
    return feats.astype(jnp.bfloat16)


# ----------------------------------------------------------------------------
# Fused Pallas kernel: 3x(conv k=9 + folded BN + ReLU) + Linear(->1) + sigmoid
# ----------------------------------------------------------------------------
def _fused_cnn_ts_kernel(prev_ref, curr_ref, next_ref,
                         w1_ref, s1_ref, b1_ref,
                         w2_ref, s2_ref, b2_ref,
                         w3_ref, s3_ref, b3_ref,
                         wo_ref, bo_ref,
                         out_ref, *, t_tile, seq_len):
    """One (batch, time-tile) grid step.

    prev/curr/next : (1, HALO_BLK | t_tile, Cin_p) bf16 haloed input window pieces
    wN_ref         : (K*Cin, Cout) bf16  im2col-reshaped conv weights
    sN_ref, bN_ref : (1, Cout) f32       folded BatchNorm scale / shift (incl. conv bias)
    wo_ref, bo_ref : (1, C3) f32, (1, 1) f32  output head
    out_ref        : (1, t_tile, 1) f32
    """
    t = pl.program_id(1)
    g0 = t * t_tile - HALO_BLK          # global row index of window row 0

    # Assemble the haloed window (t_tile + 32 rows). Pieces are 8/16-row aligned.
    xp = jnp.concatenate(
        [prev_ref[0].astype(jnp.float32),
         curr_ref[0].astype(jnp.float32),
         next_ref[0].astype(jnp.float32)], axis=0)

    def mask_rows(h, g_start):
        # Zero rows outside the real sequence [0, seq_len): reproduces PyTorch's
        # per-layer zero padding at the sequence boundaries.
        rows = jax.lax.broadcasted_iota(jnp.int32, (h.shape[0], 1), 0) + g_start
        valid = (rows >= 0) & (rows < seq_len)
        return jnp.where(valid, h, jnp.zeros_like(h))

    xp = mask_rows(xp, g0)

    def conv_bn_relu(x, w_ref, s_ref, b_ref, g_start):
        # x: (n_out + 2*PAD, cin) f32 ; w_ref: (K*cin, cout) bf16
        n_out = x.shape[0] - 2 * PAD
        # im2col: one MXU matmul with contraction K*cin instead of 9 narrow tap matmuls.
        cols = jnp.concatenate([x[k:k + n_out, :] for k in range(K)], axis=1)
        acc = jnp.dot(cols.astype(jnp.bfloat16), w_ref[...],
                      preferred_element_type=jnp.float32)          # (n_out, cout) f32
        h = jnp.maximum(acc * s_ref[...] + b_ref[...], 0.0)        # folded BN + ReLU
        return mask_rows(h, g_start)

    h1 = conv_bn_relu(xp, w1_ref, s1_ref, b1_ref, g0 + PAD)        # (t_tile+24, C1)
    h2 = conv_bn_relu(h1, w2_ref, s2_ref, b2_ref, g0 + 2 * PAD)    # (t_tile+16, C2)
    h3 = conv_bn_relu(h2, w3_ref, s3_ref, b3_ref, g0 + 3 * PAD)    # (t_tile+8,  C3)

    # Output head (Dropout = identity in eval): Linear(C3 -> 1) + sigmoid, computed as a
    # VPU broadcast-multiply + XLU lane reduction (no extra kernel, no HBM re-read of h3).
    logits = jnp.sum(h3 * wo_ref[...], axis=-1, keepdims=True) + bo_ref[...]   # (t_tile+8, 1)
    out_ref[0] = jax.nn.sigmoid(logits[PAD:PAD + t_tile, :])


# ----------------------------------------------------------------------------
# Parameters (deterministic, synthetic — no checkpoint loading)
# ----------------------------------------------------------------------------
def init_params(key, in_features, hidden_size):
    """Raw PyTorch-equivalent parameters (unpadded, un-folded)."""
    channels = [in_features, hidden_size // 4, hidden_size // 2, hidden_size]
    keys = jax.random.split(key, 4)
    convs = []
    for i in range(3):
        cin, cout = channels[i], channels[i + 1]
        kw, kb, kg, kbt, km, kv = jax.random.split(keys[i], 6)
        convs.append(dict(
            w=jax.random.normal(kw, (K, cin, cout), jnp.float32) / jnp.sqrt(float(cin * K)),
            bias=0.01 * jax.random.normal(kb, (cout,), jnp.float32),
            gamma=1.0 + 0.1 * jax.random.normal(kg, (cout,), jnp.float32),
            beta=0.1 * jax.random.normal(kbt, (cout,), jnp.float32),
            mean=0.1 * jax.random.normal(km, (cout,), jnp.float32),
            var=1.0 + 0.1 * jax.random.uniform(kv, (cout,), jnp.float32),
        ))
    kwo, kbo = jax.random.split(keys[3], 2)
    w_out = jax.random.normal(kwo, (hidden_size,), jnp.float32) / jnp.sqrt(float(hidden_size))
    b_out = 0.01 * jax.random.normal(kbo, (1,), jnp.float32)
    return dict(convs=convs, w_out=w_out, b_out=b_out,
                in_features=in_features, hidden=hidden_size)


def prepare_params(raw):
    """Fold eval-mode BN + conv bias, pad channels to 128-lane multiples,
    reshape conv weights to im2col layout (K*Cin_p, Cout_p), cast matmul weights to bf16."""
    cin, cin_p = raw["in_features"], _pad_to_lanes(raw["in_features"])
    convs = []
    for layer in raw["convs"]:
        w = layer["w"]                                   # (K, cin, cout)
        cout = w.shape[2]
        cout_p = _pad_to_lanes(cout)
        scale = layer["gamma"] / jnp.sqrt(layer["var"] + BN_EPS)
        shift = (layer["bias"] - layer["mean"]) * scale + layer["beta"]
        w_p = jnp.zeros((K, cin_p, cout_p), jnp.float32).at[:, :cin, :cout].set(w)
        w_col = w_p.reshape(K * cin_p, cout_p).astype(jnp.bfloat16)
        s_p = jnp.zeros((1, cout_p), jnp.float32).at[0, :cout].set(scale)
        t_p = jnp.zeros((1, cout_p), jnp.float32).at[0, :cout].set(shift)
        convs.append((w_col, s_p, t_p))
        cin, cin_p = cout, cout_p
    wo = jnp.zeros((1, cin_p), jnp.float32).at[0, :raw["hidden"]].set(raw["w_out"])
    bo = raw["b_out"].reshape(1, 1).astype(jnp.float32)
    return dict(convs=convs, out_ts=(wo, bo))


# ----------------------------------------------------------------------------
# Full forward — CNNTimeSignatureModel.forward
# ----------------------------------------------------------------------------
def cnn_time_signature_forward(note_seq, params, *, t_tile_max=256):
    B, T, _ = note_seq.shape
    (w1, s1, b1), (w2, s2, b2), (w3, s3, b3) = params["convs"]
    wo, bo = params["out_ts"]
    cin_p = w1.shape[0] // K
    c1, c2, c3 = w1.shape[1], w2.shape[1], w3.shape[1]

    # Time tiling: tiles are multiples of 16 rows; halo blocks are 16-row sub-blocks.
    t16 = ((T + 15) // 16) * 16
    t_tile = min(t_tile_max, t16)
    nt = -(-T // t_tile)
    t_pad = nt * t_tile
    S = t_tile // HALO_BLK

    # Pad the (tiny) raw note sequence in time; rows >= T are masked inside the kernel.
    xpad = jnp.pad(note_seq, ((0, 0), (0, t_pad - T), (0, 0)))
    feats = encode_note_sequence(xpad, cin_p)            # (B, t_pad, cin_p) bf16

    kernel = functools.partial(_fused_cnn_ts_kernel, t_tile=t_tile, seq_len=T)
    const2 = lambda b, t: (0, 0)

    out = pl.pallas_call(
        kernel,
        out_shape=jax.ShapeDtypeStruct((B, t_pad, 1), jnp.float32),
        grid=(B, nt),
        in_specs=[
            # previous-tile halo (clamped at the front edge; masked in-kernel)
            pl.BlockSpec((1, HALO_BLK, cin_p),
                         lambda b, t: (b, jnp.maximum(t * S - 1, 0), 0)),
            # current time tile
            pl.BlockSpec((1, t_tile, cin_p), lambda b, t: (b, t, 0)),
            # next-tile halo (clamped at the back edge; masked in-kernel)
            pl.BlockSpec((1, HALO_BLK, cin_p),
                         lambda b, t: (b, jnp.minimum((t + 1) * S, nt * S - 1), 0)),
            # conv1 / conv2 / conv3 weights + folded BN scale/shift (fetched once)
            pl.BlockSpec((K * cin_p, c1), const2),
            pl.BlockSpec((1, c1), const2),
            pl.BlockSpec((1, c1), const2),
            pl.BlockSpec((K * c1, c2), const2),
            pl.BlockSpec((1, c2), const2),
            pl.BlockSpec((1, c2), const2),
            pl.BlockSpec((K * c2, c3), const2),
            pl.BlockSpec((1, c3), const2),
            pl.BlockSpec((1, c3), const2),
            # output head
            pl.BlockSpec((1, c3), const2),
            pl.BlockSpec((1, 1), const2),
        ],
        out_specs=pl.BlockSpec((1, t_tile, 1), lambda b, t: (b, t, 0)),
        compiler_params=pltpu.CompilerParams(
            dimension_semantics=("parallel", "parallel"),
            vmem_limit_bytes=32 * 1024 * 1024,
        ),
    )(feats, feats, feats, w1, s1, b1, w2, s2, b2, w3, s3, b3, wo, bo)

    return out[:, :T, 0]                                  # squeeze(2) -> (B, T)


if __name__ == "__main__":
    key = jax.random.PRNGKey(0)
    k_pitch, k_onset, k_dur, k_vel, k_param = jax.random.split(key, 5)

    B, T = 2, 16
    hidden_size = 32  # small stand-in for the default 256

    pitch = jax.random.randint(k_pitch, (B, T), 21, 109).astype(jnp.float32)
    onset = jnp.cumsum(jax.random.uniform(k_onset, (B, T), minval=0.05, maxval=0.5), axis=1)
    duration = jax.random.uniform(k_dur, (B, T), minval=0.05, maxval=1.0)
    velocity = jax.random.randint(k_vel, (B, T), 30, 110).astype(jnp.float32)
    x = jnp.stack([pitch, onset, duration, velocity], axis=-1)    # (B, T, 4)

    raw = init_params(k_param, in_features=get_in_features(), hidden_size=hidden_size)
    params = prepare_params(raw)

    fwd = jax.jit(cnn_time_signature_forward)
    y_ts = jax.block_until_ready(fwd(x, params))

    assert y_ts.shape == (B, T), y_ts.shape
    assert bool(jnp.all(jnp.isfinite(y_ts)))
    assert bool(jnp.all((y_ts >= 0.0) & (y_ts <= 1.0)))           # sigmoid range
    print("KERNEL_OK")
</pallas_src>

<mosaic_0001>
module attributes {stable_mosaic.version = 11 : i64} {
  func.func @_fused_cnn_ts_kernel(%arg0: i32, %arg1: i32, %arg2: memref<1x16x256xbf16, #tpu.memory_space<vmem>>, %arg3: memref<1x16x256xbf16, #tpu.memory_space<vmem>>, %arg4: memref<1x16x256xbf16, #tpu.memory_space<vmem>>, %arg5: memref<2304x128xbf16, #tpu.memory_space<vmem>>, %arg6: memref<1x128xf32, #tpu.memory_space<vmem>>, %arg7: memref<1x128xf32, #tpu.memory_space<vmem>>, %arg8: memref<1152x128xbf16, #tpu.memory_space<vmem>>, %arg9: memref<1x128xf32, #tpu.memory_space<vmem>>, %arg10: memref<1x128xf32, #tpu.memory_space<vmem>>, %arg11: memref<1152x128xbf16, #tpu.memory_space<vmem>>, %arg12: memref<1x128xf32, #tpu.memory_space<vmem>>, %arg13: memref<1x128xf32, #tpu.memory_space<vmem>>, %arg14: memref<1x128xf32, #tpu.memory_space<vmem>>, %arg15: memref<1x1xf32, #tpu.memory_space<vmem>>, %arg16: memref<1x16x1xf32, #tpu.memory_space<vmem>>) attributes {dimension_semantics = [#tpu.dimension_semantics<parallel>, #tpu.dimension_semantics<parallel>], iteration_bounds = array<i64: 2, 1>, scalar_prefetch = 0 : i64, scratch_operands = 0 : i64, tpu.core_type = #tpu.core_type<tc>, window_params = [{transform_indices = @transform_0, window_bounds = array<i64: 1, 16, 256>}, {transform_indices = @transform_1, window_bounds = array<i64: 1, 16, 256>}, {transform_indices = @transform_2, window_bounds = array<i64: 1, 16, 256>}, {pipeline_mode = #tpu.pipeline_mode<synchronous>, transform_indices = @transform_3, window_bounds = array<i64: 2304, 128>}, {pipeline_mode = #tpu.pipeline_mode<synchronous>, transform_indices = @transform_4, window_bounds = array<i64: 1, 128>}, {pipeline_mode = #tpu.pipeline_mode<synchronous>, transform_indices = @transform_5, window_bounds = array<i64: 1, 128>}, {pipeline_mode = #tpu.pipeline_mode<synchronous>, transform_indices = @transform_6, window_bounds = array<i64: 1152, 128>}, {pipeline_mode = #tpu.pipeline_mode<synchronous>, transform_indices = @transform_7, window_bounds = array<i64: 1, 128>}, {pipeline_mode = #tpu.pipeline_mode<synchronous>, transform_indices = @transform_8, window_bounds = array<i64: 1, 128>}, {pipeline_mode = #tpu.pipeline_mode<synchronous>, transform_indices = @transform_9, window_bounds = array<i64: 1152, 128>}, {pipeline_mode = #tpu.pipeline_mode<synchronous>, transform_indices = @transform_10, window_bounds = array<i64: 1, 128>}, {pipeline_mode = #tpu.pipeline_mode<synchronous>, transform_indices = @transform_11, window_bounds = array<i64: 1, 128>}, {pipeline_mode = #tpu.pipeline_mode<synchronous>, transform_indices = @transform_12, window_bounds = array<i64: 1, 128>}, {pipeline_mode = #tpu.pipeline_mode<synchronous>, transform_indices = @transform_13, window_bounds = array<i64: 1, 1>}, {transform_indices = @transform_14, window_bounds = array<i64: 1, 16, 1>}]} {
    %c16_i32 = arith.constant 16 : i32
    %0 = arith.muli %arg1, %c16_i32 : i32
    %c16_i32_0 = arith.constant 16 : i32
    %1 = arith.subi %0, %c16_i32_0 : i32
    %c0 = arith.constant 0 : index
    %c0_1 = arith.constant 0 : index
    %c0_2 = arith.constant 0 : index
    %2 = vector.load %arg2[%c0, %c0_1, %c0_2] : memref<1x16x256xbf16, #tpu.memory_space<vmem>>, vector<1x16x256xbf16>
    %3 = vector.shape_cast %2 : vector<1x16x256xbf16> to vector<16x256xbf16>
    %4 = arith.extf %3 : vector<16x256xbf16> to vector<16x256xf32>
    %c0_3 = arith.constant 0 : index
    %c0_4 = arith.constant 0 : index
    %c0_5 = arith.constant 0 : index
    %5 = vector.load %arg3[%c0_3, %c0_4, %c0_5] : memref<1x16x256xbf16, #tpu.memory_space<vmem>>, vector<1x16x256xbf16>
    %6 = vector.shape_cast %5 : vector<1x16x256xbf16> to vector<16x256xbf16>
    %7 = arith.extf %6 : vector<16x256xbf16> to vector<16x256xf32>
    %c0_6 = arith.constant 0 : index
    %c0_7 = arith.constant 0 : index
    %c0_8 = arith.constant 0 : index
    %8 = vector.load %arg4[%c0_6, %c0_7, %c0_8] : memref<1x16x256xbf16, #tpu.memory_space<vmem>>, vector<1x16x256xbf16>
    %9 = vector.shape_cast %8 : vector<1x16x256xbf16> to vector<16x256xbf16>
    %10 = arith.extf %9 : vector<16x256xbf16> to vector<16x256xf32>
    %11 = tpu.concatenate %4, %7, %10 in 0 : vector<16x256xf32>, vector<16x256xf32>, vector<16x256xf32> -> vector<48x256xf32>
    %12 = tpu.iota {dimensions = array<i32: 0>} : vector<48x1xi32>
    %13 = vector.broadcast %1 : i32 to vector<48x1xi32>
    %14 = arith.addi %12, %13 : vector<48x1xi32>
    %c0_i32 = arith.constant 0 : i32
    %15 = vector.broadcast %c0_i32 : i32 to vector<48x1xi32>
    %16 = arith.cmpi sge, %14, %15 : vector<48x1xi32>
    %c16_i32_9 = arith.constant 16 : i32
    %17 = vector.broadcast %c16_i32_9 : i32 to vector<48x1xi32>
    %18 = arith.cmpi slt, %14, %17 : vector<48x1xi32>
    %19 = arith.andi %16, %18 : vector<48x1xi1>
    %cst = arith.constant 0.000000e+00 : f32
    %20 = vector.broadcast %cst : f32 to vector<48x256xf32>
    %21 = vector.shape_cast %19 : vector<48x1xi1> to vector<48x1xi1>
    %22 = vector.broadcast %21 : vector<48x1xi1> to vector<48x256xi1>
    %23 = arith.select %22, %11, %20 : vector<48x256xi1>, vector<48x256xf32>
    %c4_i32 = arith.constant 4 : i32
    %24 = arith.addi %1, %c4_i32 : i32
    %25 = vector.extract_strided_slice %23 {offsets = [0, 0], sizes = [40, 256], strides = [1, 1]} : vector<48x256xf32> to vector<40x256xf32>
    %26 = vector.extract_strided_slice %23 {offsets = [1, 0], sizes = [40, 256], strides = [1, 1]} : vector<48x256xf32> to vector<40x256xf32>
    %27 = vector.extract_strided_slice %23 {offsets = [2, 0], sizes = [40, 256], strides = [1, 1]} : vector<48x256xf32> to vector<40x256xf32>
    %28 = vector.extract_strided_slice %23 {offsets = [3, 0], sizes = [40, 256], strides = [1, 1]} : vector<48x256xf32> to vector<40x256xf32>
    %29 = vector.extract_strided_slice %23 {offsets = [4, 0], sizes = [40, 256], strides = [1, 1]} : vector<48x256xf32> to vector<40x256xf32>
    %30 = vector.extract_strided_slice %23 {offsets = [5, 0], sizes = [40, 256], strides = [1, 1]} : vector<48x256xf32> to vector<40x256xf32>
    %31 = vector.extract_strided_slice %23 {offsets = [6, 0], sizes = [40, 256], strides = [1, 1]} : vector<48x256xf32> to vector<40x256xf32>
    %32 = vector.extract_strided_slice %23 {offsets = [7, 0], sizes = [40, 256], strides = [1, 1]} : vector<48x256xf32> to vector<40x256xf32>
    %33 = vector.extract_strided_slice %23 {offsets = [8, 0], sizes = [40, 256], strides = [1, 1]} : vector<48x256xf32> to vector<40x256xf32>
    %34 = tpu.concatenate %25, %26, %27, %28, %29, %30, %31, %32, %33 in 1 : vector<40x256xf32>, vector<40x256xf32>, vector<40x256xf32>, vector<40x256xf32>, vector<40x256xf32>, vector<40x256xf32>, vector<40x256xf32>, vector<40x256xf32>, vector<40x256xf32> -> vector<40x2304xf32>
    %35 = arith.truncf %34 : vector<40x2304xf32> to vector<40x2304xbf16>
    %c0_10 = arith.constant 0 : index
    %c0_11 = arith.constant 0 : index
    %36 = vector.load %arg5[%c0_10, %c0_11] : memref<2304x128xbf16, #tpu.memory_space<vmem>>, vector<2304x128xbf16>
    %cst_12 = arith.constant dense<0.000000e+00> : vector<40x128xf32>
    %37 = tpu.matmul %35, %36, %cst_12 {dimension_numbers = #tpu.dot_dimension_numbers<[1], [0], [0], [1], [0, 0, 1, 1], [], []>} : vector<40x2304xbf16>, vector<2304x128xbf16>, vector<40x128xf32> -> vector<40x128xf32>
    %c0_13 = arith.constant 0 : index
    %c0_14 = arith.constant 0 : index
    %38 = vector.load %arg6[%c0_13, %c0_14] : memref<1x128xf32, #tpu.memory_space<vmem>>, vector<1x128xf32>
    %39 = vector.broadcast %38 : vector<1x128xf32> to vector<40x128xf32>
    %40 = arith.mulf %37, %39 : vector<40x128xf32>
    %c0_15 = arith.constant 0 : index
    %c0_16 = arith.constant 0 : index
    %41 = vector.load %arg7[%c0_15, %c0_16] : memref<1x128xf32, #tpu.memory_space<vmem>>, vector<1x128xf32>
    %42 = vector.broadcast %41 : vector<1x128xf32> to vector<40x128xf32>
    %43 = arith.addf %40, %42 : vector<40x128xf32>
    %cst_17 = arith.constant 0.000000e+00 : f32
    %44 = vector.broadcast %cst_17 : f32 to vector<40x128xf32>
    %45 = arith.maximumf %43, %44 : vector<40x128xf32>
    %46 = tpu.iota {dimensions = array<i32: 0>} : vector<40x1xi32>
    %47 = vector.broadcast %24 : i32 to vector<40x1xi32>
    %48 = arith.addi %46, %47 : vector<40x1xi32>
    %c0_i32_18 = arith.constant 0 : i32
    %49 = vector.broadcast %c0_i32_18 : i32 to vector<40x1xi32>
    %50 = arith.cmpi sge, %48, %49 : vector<40x1xi32>
    %c16_i32_19 = arith.constant 16 : i32
    %51 = vector.broadcast %c16_i32_19 : i32 to vector<40x1xi32>
    %52 = arith.cmpi slt, %48, %51 : vector<40x1xi32>
    %53 = arith.andi %50, %52 : vector<40x1xi1>
    %cst_20 = arith.constant 0.000000e+00 : f32
    %54 = vector.broadcast %cst_20 : f32 to vector<40x128xf32>
    %55 = vector.shape_cast %53 : vector<40x1xi1> to vector<40x1xi1>
    %56 = vector.broadcast %55 : vector<40x1xi1> to vector<40x128xi1>
    %57 = arith.select %56, %45, %54 : vector<40x128xi1>, vector<40x128xf32>
    %c8_i32 = arith.constant 8 : i32
    %58 = arith.addi %1, %c8_i32 : i32
    %59 = vector.extract_strided_slice %57 {offsets = [0, 0], sizes = [32, 128], strides = [1, 1]} : vector<40x128xf32> to vector<32x128xf32>
    %60 = vector.extract_strided_slice %57 {offsets = [1, 0], sizes = [32, 128], strides = [1, 1]} : vector<40x128xf32> to vector<32x128xf32>
    %61 = vector.extract_strided_slice %57 {offsets = [2, 0], sizes = [32, 128], strides = [1, 1]} : vector<40x128xf32> to vector<32x128xf32>
    %62 = vector.extract_strided_slice %57 {offsets = [3, 0], sizes = [32, 128], strides = [1, 1]} : vector<40x128xf32> to vector<32x128xf32>
    %63 = vector.extract_strided_slice %57 {offsets = [4, 0], sizes = [32, 128], strides = [1, 1]} : vector<40x128xf32> to vector<32x128xf32>
    %64 = vector.extract_strided_slice %57 {offsets = [5, 0], sizes = [32, 128], strides = [1, 1]} : vector<40x128xf32> to vector<32x128xf32>
    %65 = vector.extract_strided_slice %57 {offsets = [6, 0], sizes = [32, 128], strides = [1, 1]} : vector<40x128xf32> to vector<32x128xf32>
    %66 = vector.extract_strided_slice %57 {offsets = [7, 0], sizes = [32, 128], strides = [1, 1]} : vector<40x128xf32> to vector<32x128xf32>
    %67 = vector.extract_strided_slice %57 {offsets = [8, 0], sizes = [32, 128], strides = [1, 1]} : vector<40x128xf32> to vector<32x128xf32>
    %68 = tpu.concatenate %59, %60, %61, %62, %63, %64, %65, %66, %67 in 1 : vector<32x128xf32>, vector<32x128xf32>, vector<32x128xf32>, vector<32x128xf32>, vector<32x128xf32>, vector<32x128xf32>, vector<32x128xf32>, vector<32x128xf32>, vector<32x128xf32> -> vector<32x1152xf32>
    %69 = arith.truncf %68 : vector<32x1152xf32> to vector<32x1152xbf16>
    %c0_21 = arith.constant 0 : index
    %c0_22 = arith.constant 0 : index
    %70 = vector.load %arg8[%c0_21, %c0_22] : memref<1152x128xbf16, #tpu.memory_space<vmem>>, vector<1152x128xbf16>
    %cst_23 = arith.constant dense<0.000000e+00> : vector<32x128xf32>
    %71 = tpu.matmul %69, %70, %cst_23 {dimension_numbers = #tpu.dot_dimension_numbers<[1], [0], [0], [1], [0, 0, 1, 1], [], []>} : vector<32x1152xbf16>, vector<1152x128xbf16>, vector<32x128xf32> -> vector<32x128xf32>
    %c0_24 = arith.constant 0 : index
    %c0_25 = arith.constant 0 : index
    %72 = vector.load %arg9[%c0_24, %c0_25] : memref<1x128xf32, #tpu.memory_space<vmem>>, vector<1x128xf32>
    %73 = vector.broadcast %72 : vector<1x128xf32> to vector<32x128xf32>
    %74 = arith.mulf %71, %73 : vector<32x128xf32>
    %c0_26 = arith.constant 0 : index
    %c0_27 = arith.constant 0 : index
    %75 = vector.load %arg10[%c0_26, %c0_27] : memref<1x128xf32, #tpu.memory_space<vmem>>, vector<1x128xf32>
    %76 = vector.broadcast %75 : vector<1x128xf32> to vector<32x128xf32>
    %77 = arith.addf %74, %76 : vector<32x128xf32>
    %cst_28 = arith.constant 0.000000e+00 : f32
    %78 = vector.broadcast %cst_28 : f32 to vector<32x128xf32>
    %79 = arith.maximumf %77, %78 : vector<32x128xf32>
    %80 = tpu.iota {dimensions = array<i32: 0>} : vector<32x1xi32>
    %81 = vector.broadcast %58 : i32 to vector<32x1xi32>
    %82 = arith.addi %80, %81 : vector<32x1xi32>
    %c0_i32_29 = arith.constant 0 : i32
    %83 = vector.broadcast %c0_i32_29 : i32 to vector<32x1xi32>
    %84 = arith.cmpi sge, %82, %83 : vector<32x1xi32>
    %c16_i32_30 = arith.constant 16 : i32
    %85 = vector.broadcast %c16_i32_30 : i32 to vector<32x1xi32>
    %86 = arith.cmpi slt, %82, %85 : vector<32x1xi32>
    %87 = arith.andi %84, %86 : vector<32x1xi1>
    %cst_31 = arith.constant 0.000000e+00 : f32
    %88 = vector.broadcast %cst_31 : f32 to vector<32x128xf32>
    %89 = vector.shape_cast %87 : vector<32x1xi1> to vector<32x1xi1>
    %90 = vector.broadcast %89 : vector<32x1xi1> to vector<32x128xi1>
    %91 = arith.select %90, %79, %88 : vector<32x128xi1>, vector<32x128xf32>
    %c12_i32 = arith.constant 12 : i32
    %92 = arith.addi %1, %c12_i32 : i32
    %93 = vector.extract_strided_slice %91 {offsets = [0, 0], sizes = [24, 128], strides = [1, 1]} : vector<32x128xf32> to vector<24x128xf32>
    %94 = vector.extract_strided_slice %91 {offsets = [1, 0], sizes = [24, 128], strides = [1, 1]} : vector<32x128xf32> to vector<24x128xf32>
    %95 = vector.extract_strided_slice %91 {offsets = [2, 0], sizes = [24, 128], strides = [1, 1]} : vector<32x128xf32> to vector<24x128xf32>
    %96 = vector.extract_strided_slice %91 {offsets = [3, 0], sizes = [24, 128], strides = [1, 1]} : vector<32x128xf32> to vector<24x128xf32>
    %97 = vector.extract_strided_slice %91 {offsets = [4, 0], sizes = [24, 128], strides = [1, 1]} : vector<32x128xf32> to vector<24x128xf32>
    %98 = vector.extract_strided_slice %91 {offsets = [5, 0], sizes = [24, 128], strides = [1, 1]} : vector<32x128xf32> to vector<24x128xf32>
    %99 = vector.extract_strided_slice %91 {offsets = [6, 0], sizes = [24, 128], strides = [1, 1]} : vector<32x128xf32> to vector<24x128xf32>
    %100 = vector.extract_strided_slice %91 {offsets = [7, 0], sizes = [24, 128], strides = [1, 1]} : vector<32x128xf32> to vector<24x128xf32>
    %101 = vector.extract_strided_slice %91 {offsets = [8, 0], sizes = [24, 128], strides = [1, 1]} : vector<32x128xf32> to vector<24x128xf32>
    %102 = tpu.concatenate %93, %94, %95, %96, %97, %98, %99, %100, %101 in 1 : vector<24x128xf32>, vector<24x128xf32>, vector<24x128xf32>, vector<24x128xf32>, vector<24x128xf32>, vector<24x128xf32>, vector<24x128xf32>, vector<24x128xf32>, vector<24x128xf32> -> vector<24x1152xf32>
    %103 = arith.truncf %102 : vector<24x1152xf32> to vector<24x1152xbf16>
    %c0_32 = arith.constant 0 : index
    %c0_33 = arith.constant 0 : index
    %104 = vector.load %arg11[%c0_32, %c0_33] : memref<1152x128xbf16, #tpu.memory_space<vmem>>, vector<1152x128xbf16>
    %cst_34 = arith.constant dense<0.000000e+00> : vector<24x128xf32>
    %105 = tpu.matmul %103, %104, %cst_34 {dimension_numbers = #tpu.dot_dimension_numbers<[1], [0], [0], [1], [0, 0, 1, 1], [], []>} : vector<24x1152xbf16>, vector<1152x128xbf16>, vector<24x128xf32> -> vector<24x128xf32>
    %c0_35 = arith.constant 0 : index
    %c0_36 = arith.constant 0 : index
    %106 = vector.load %arg12[%c0_35, %c0_36] : memref<1x128xf32, #tpu.memory_space<vmem>>, vector<1x128xf32>
    %107 = vector.broadcast %106 : vector<1x128xf32> to vector<24x128xf32>
    %108 = arith.mulf %105, %107 : vector<24x128xf32>
    %c0_37 = arith.constant 0 : index
    %c0_38 = arith.constant 0 : index
    %109 = vector.load %arg13[%c0_37, %c0_38] : memref<1x128xf32, #tpu.memory_space<vmem>>, vector<1x128xf32>
    %110 = vector.broadcast %109 : vector<1x128xf32> to vector<24x128xf32>
    %111 = arith.addf %108, %110 : vector<24x128xf32>
    %cst_39 = arith.constant 0.000000e+00 : f32
    %112 = vector.broadcast %cst_39 : f32 to vector<24x128xf32>
    %113 = arith.maximumf %111, %112 : vector<24x128xf32>
    %114 = tpu.iota {dimensions = array<i32: 0>} : vector<24x1xi32>
    %115 = vector.broadcast %92 : i32 to vector<24x1xi32>
    %116 = arith.addi %114, %115 : vector<24x1xi32>
    %c0_i32_40 = arith.constant 0 : i32
    %117 = vector.broadcast %c0_i32_40 : i32 to vector<24x1xi32>
    %118 = arith.cmpi sge, %116, %117 : vector<24x1xi32>
    %c16_i32_41 = arith.constant 16 : i32
    %119 = vector.broadcast %c16_i32_41 : i32 to vector<24x1xi32>
    %120 = arith.cmpi slt, %116, %119 : vector<24x1xi32>
    %121 = arith.andi %118, %120 : vector<24x1xi1>
    %cst_42 = arith.constant 0.000000e+00 : f32
    %122 = vector.broadcast %cst_42 : f32 to vector<24x128xf32>
    %123 = vector.shape_cast %121 : vector<24x1xi1> to vector<24x1xi1>
    %124 = vector.broadcast %123 : vector<24x1xi1> to vector<24x128xi1>
    %125 = arith.select %124, %113, %122 : vector<24x128xi1>, vector<24x128xf32>
    %c0_43 = arith.constant 0 : index
    %c0_44 = arith.constant 0 : index
    %126 = vector.load %arg14[%c0_43, %c0_44] : memref<1x128xf32, #tpu.memory_space<vmem>>, vector<1x128xf32>
    %127 = vector.broadcast %126 : vector<1x128xf32> to vector<24x128xf32>
    %128 = arith.mulf %125, %127 : vector<24x128xf32>
    %cst_45 = arith.constant dense<0.000000e+00> : vector<24xf32>
    %129 = vector.multi_reduction <add>, %128, %cst_45 [1] : vector<24x128xf32> to vector<24xf32>
    %130 = vector.shape_cast %129 : vector<24xf32> to vector<24x1xf32>
    %c0_46 = arith.constant 0 : index
    %c0_47 = arith.constant 0 : index
    %131 = vector.load %arg15[%c0_46, %c0_47] : memref<1x1xf32, #tpu.memory_space<vmem>>, vector<1x1xf32>
    %132 = vector.broadcast %131 : vector<1x1xf32> to vector<24x1xf32>
    %133 = arith.addf %130, %132 : vector<24x1xf32>
    %134 = vector.extract_strided_slice %133 {offsets = [4, 0], sizes = [16, 1], strides = [1, 1]} : vector<24x1xf32> to vector<16x1xf32>
    %135 = arith.negf %134 : vector<16x1xf32>
    %136 = math.exp %135 : vector<16x1xf32>
    %cst_48 = arith.constant 1.000000e+00 : f32
    %137 = vector.broadcast %cst_48 : f32 to vector<16x1xf32>
    %138 = arith.addf %137, %136 : vector<16x1xf32>
    %139 = arith.divf %137, %138 : vector<16x1xf32>
    %c0_49 = arith.constant 0 : index
    %c0_50 = arith.constant 0 : index
    %c0_51 = arith.constant 0 : index
    %140 = vector.load %arg16[%c0_49, %c0_50, %c0_51] : memref<1x16x1xf32, #tpu.memory_space<vmem>>, vector<1x16x1xf32>
    %141 = vector.shape_cast %140 : vector<1x16x1xf32> to vector<16x1xf32>
    %142 = vector.shape_cast %139 : vector<16x1xf32> to vector<1x16x1xf32>
    tpu.vector_store %arg16[%c0_49, %c0_50, %c0_51], %142 {strides = array<i32>} : memref<1x16x1xf32, #tpu.memory_space<vmem>>, vector<1x16x1xf32>,
    return
  }
  func.func @transform_0(%arg0: i32, %arg1: i32) -> (i32, i32, i32) {
    %c1_i32 = arith.constant 1 : i32
    %0 = arith.muli %arg1, %c1_i32 : i32
    %c1_i32_0 = arith.constant 1 : i32
    %1 = arith.subi %0, %c1_i32_0 : i32
    %c0_i32 = arith.constant 0 : i32
    %2 = arith.maxsi %1, %c0_i32 : i32
    %c0_i32_1 = arith.constant 0 : i32
    %c0_i32_2 = arith.constant 0 : i32
    return %arg0, %2, %c0_i32_1 : i32, i32, i32
  }
  func.func @transform_1(%arg0: i32, %arg1: i32) -> (i32, i32, i32) {
    %c0_i32 = arith.constant 0 : i32
    %c0_i32_0 = arith.constant 0 : i32
    return %arg0, %arg1, %c0_i32 : i32, i32, i32
  }
  func.func @transform_2(%arg0: i32, %arg1: i32) -> (i32, i32, i32) {
    %c1_i32 = arith.constant 1 : i32
    %0 = arith.addi %arg1, %c1_i32 : i32
    %c1_i32_0 = arith.constant 1 : i32
    %1 = arith.muli %0, %c1_i32_0 : i32
    %c0_i32 = arith.constant 0 : i32
    %2 = arith.minsi %1, %c0_i32 : i32
    %c0_i32_1 = arith.constant 0 : i32
    %c0_i32_2 = arith.constant 0 : i32
    return %arg0, %2, %c0_i32_1 : i32, i32, i32
  }
  func.func @transform_3(%arg0: i32, %arg1: i32) -> (i32, i32) {
    %c0_i32 = arith.constant 0 : i32
    %c0_i32_0 = arith.constant 0 : i32
    %c0_i32_1 = arith.constant 0 : i32
    return %c0_i32, %c0_i32_0 : i32, i32
  }
  func.func @transform_4(%arg0: i32, %arg1: i32) -> (i32, i32) {
    %c0_i32 = arith.constant 0 : i32
    %c0_i32_0 = arith.constant 0 : i32
    %c0_i32_1 = arith.constant 0 : i32
    return %c0_i32, %c0_i32_0 : i32, i32
  }
  func.func @transform_5(%arg0: i32, %arg1: i32) -> (i32, i32) {
    %c0_i32 = arith.constant 0 : i32
    %c0_i32_0 = arith.constant 0 : i32
    %c0_i32_1 = arith.constant 0 : i32
    return %c0_i32, %c0_i32_0 : i32, i32
  }
  func.func @transform_6(%arg0: i32, %arg1: i32) -> (i32, i32) {
    %c0_i32 = arith.constant 0 : i32
    %c0_i32_0 = arith.constant 0 : i32
    %c0_i32_1 = arith.constant 0 : i32
    return %c0_i32, %c0_i32_0 : i32, i32
  }
  func.func @transform_7(%arg0: i32, %arg1: i32) -> (i32, i32) {
    %c0_i32 = arith.constant 0 : i32
    %c0_i32_0 = arith.constant 0 : i32
    %c0_i32_1 = arith.constant 0 : i32
    return %c0_i32, %c0_i32_0 : i32, i32
  }
  func.func @transform_8(%arg0: i32, %arg1: i32) -> (i32, i32) {
    %c0_i32 = arith.constant 0 : i32
    %c0_i32_0 = arith.constant 0 : i32
    %c0_i32_1 = arith.constant 0 : i32
    return %c0_i32, %c0_i32_0 : i32, i32
  }
  func.func @transform_9(%arg0: i32, %arg1: i32) -> (i32, i32) {
    %c0_i32 = arith.constant 0 : i32
    %c0_i32_0 = arith.constant 0 : i32
    %c0_i32_1 = arith.constant 0 : i32
    return %c0_i32, %c0_i32_0 : i32, i32
  }
  func.func @transform_10(%arg0: i32, %arg1: i32) -> (i32, i32) {
    %c0_i32 = arith.constant 0 : i32
    %c0_i32_0 = arith.constant 0 : i32
    %c0_i32_1 = arith.constant 0 : i32
    return %c0_i32, %c0_i32_0 : i32, i32
  }
  func.func @transform_11(%arg0: i32, %arg1: i32) -> (i32, i32) {
    %c0_i32 = arith.constant 0 : i32
    %c0_i32_0 = arith.constant 0 : i32
    %c0_i32_1 = arith.constant 0 : i32
    return %c0_i32, %c0_i32_0 : i32, i32
  }
  func.func @transform_12(%arg0: i32, %arg1: i32) -> (i32, i32) {
    %c0_i32 = arith.constant 0 : i32
    %c0_i32_0 = arith.constant 0 : i32
    %c0_i32_1 = arith.constant 0 : i32
    return %c0_i32, %c0_i32_0 : i32, i32
  }
  func.func @transform_13(%arg0: i32, %arg1: i32) -> (i32, i32) {
    %c0_i32 = arith.constant 0 : i32
    %c0_i32_0 = arith.constant 0 : i32
    %c0_i32_1 = arith.constant 0 : i32
    return %c0_i32, %c0_i32_0 : i32, i32
  }
  func.func @transform_14(%arg0: i32, %arg1: i32) -> (i32, i32, i32) {
    %c0_i32 = arith.constant 0 : i32
    %c0_i32_0 = arith.constant 0 : i32
    return %arg0, %arg1, %c0_i32 : i32, i32, i32
  }
}

</mosaic_0001>

<llo_original>
// kernel: cnn_time_signature_forward.1
$region0: #{cnn_time_signature_forward.1}
  #allocation0 [shape = 'u32[]', space=smem, size = 0x4, offset = 0x4, fixed_abs, tag = 'smem constant byte address 0x4 - core index']
  #allocation1 [shape = 'u32[144,128]{1,0:T(1,128)}', space=vmem, size = 0x12000, scoped, tag = 'internal scratch']
  #allocation2 [shape = 'f32[1,1]{1,0:T(1,128)S(1)}', space=vmem, size = 0x200, scoped, tag = 'scoped memory for cnn_time_signature_forward.1']
  %s0 = inlined_call_operand.vmem [shape: bf16[2,16,256], index: 0, kind: input, shape index: {}, may-alias: {0,1,2}]
  %s1 = inlined_call_operand.vmem [shape: bf16[2,16,256], index: 1, kind: input, shape index: {}, may-alias: {0,1,2}]
  %s2 = inlined_call_operand.vmem [shape: bf16[2,16,256], index: 2, kind: input, shape index: {}, may-alias: {0,1,2}]
  %s3 = inlined_call_operand.hbm [shape: bf16[2304,128], index: 3, kind: input, shape index: {}]
  %s4 = inlined_call_operand.vmem [shape: f32[1,128], index: 4, kind: input, shape index: {}]
  %s5 = inlined_call_operand.vmem [shape: f32[1,128], index: 5, kind: input, shape index: {}]
  %s6 = inlined_call_operand.hbm [shape: bf16[1152,128], index: 6, kind: input, shape index: {}]
  %s7 = inlined_call_operand.vmem [shape: f32[1,128], index: 7, kind: input, shape index: {}]
  %s8 = inlined_call_operand.vmem [shape: f32[1,128], index: 8, kind: input, shape index: {}]
  %s9 = inlined_call_operand.hbm [shape: bf16[1152,128], index: 9, kind: input, shape index: {}]
  %s10 = inlined_call_operand.vmem [shape: f32[1,128], index: 10, kind: input, shape index: {}]
  %s11 = inlined_call_operand.vmem [shape: f32[1,128], index: 11, kind: input, shape index: {}]
  %s12 = inlined_call_operand.vmem [shape: f32[1,128], index: 12, kind: input, shape index: {}]
  %s13 = inlined_call_operand.<no memory space> [shape: f32[1,1], index: 13, kind: input, shape index: {}]
  %s14 = inlined_call_operand.vmem [shape: f32[2,16,1], index: 14, kind: output, shape index: {}]
  %s15 = sld [smem:[#allocation0]]
  $region101: #{cnn_time_signature_forward.1} parent=0
    _
  %s17 = ssub.s32 1, %s15
  %s18 = scalar_select 0, %s17, %s15
  %v19 = vstv %s13
  %20 = vst [vmem:[#allocation2] sm:$0x1] %v19
  $region1: #{cnn_time_signature_forward.1} parent=0
    #allocation3 [shape = 'u8[589824]{0}', space=vmem, size = 0x90000, scoped, tag = 'input window, operand 3, single buffered']
    #allocation4 [shape = 's32[2]{0}', space=sflag, size = 0x8, scoped, tag = 'scoped memory for cnn_time_signature_forward.1']
    #allocation5 [shape = 'u8[294912]{0}', space=vmem, size = 0x48000, scoped, tag = 'input window, operand 6, single buffered']
    #allocation6 [shape = 's32[1]{0}', space=sflag, size = 0x4, scoped, tag = 'scoped memory for cnn_time_signature_forward.1']
    #allocation7 [shape = 'u8[294912]{0}', space=vmem, size = 0x48000, scoped, tag = 'input window, operand 9, single buffered']
    %21 = vsyncpa [#allocation4], 0
    %22 = vsyncpa [#allocation6], 0
    loop: start=0, step=1, limit=4
    $region2: #{cnn_time_signature_forward.1} parent=1 // loop_pre_header
      _
    $region3: #{cnn_time_signature_forward.1} parent=1 // loop_header
      %s24 = sphi 0, %s28
      %p25 = scmp.ge.s32.totalorder %s24, 4
      %s31 = sphi 0, %s43
      %s32 = sphi 0, %s39
      %s33 = sphi 0, %s31
      %s34 = sphi 0, %s32
      %s35 = sphi 0, %s33
      %s36 = sphi 0, %s34
      %s54 = sphi 0, %s56
      %s57 = sphi 0, %s54
      %s58 = sphi 0, %s57
      %s74 = sphi 0, %s58
      %s82 = sphi 0, %s84
      %s85 = sphi 0, %s82
      %s86 = sphi 0, %s85
      %s102 = sphi 0, %s86
      %s116 = sphi 0, %s118
      %s119 = sphi 0, %s116
      %s120 = sphi 0, %s119
      %s136 = sphi 0, %s120
      %s140 = sphi 0, %s140
      %s142 = sphi 0, %s140
      %s143 = sphi 0, %s142
      %s157 = sphi 0, %s143
      %s161 = sphi 0, %s161
      %s163 = sphi 0, %s161
      %s164 = sphi 0, %s163
      %s178 = sphi 0, %s164
      %s182 = sphi 0, %s182
      %s184 = sphi 0, %s182
      %s185 = sphi 0, %s184
      %s199 = sphi 0, %s185
      %s203 = sphi 0, %s203
      %s205 = sphi 0, %s203
      %s206 = sphi 0, %s205
      %s220 = sphi 0, %s206
      %s224 = sphi 0, %s224
      %s226 = sphi 0, %s224
      %s227 = sphi 0, %s226
      %s241 = sphi 0, %s227
      %s245 = sphi 0, %s245
      %s247 = sphi 0, %s245
      %s248 = sphi 0, %s247
      %s262 = sphi 0, %s248
      %s266 = sphi 0, %s266
      %s268 = sphi 0, %s266
      %s269 = sphi 0, %s268
      %s283 = sphi 0, %s269
      %s287 = sphi 0, %s287
      %s289 = sphi 0, %s287
      %s290 = sphi 0, %s289
      %s304 = sphi 0, %s290
      %s308 = sphi 0, %s308
      %s310 = sphi 0, %s308
      %s311 = sphi 0, %s310
      %s325 = sphi 0, %s311
      %s329 = sphi 0, %s329
      %s331 = sphi 0, %s329
      %s332 = sphi 0, %s331
      %s346 = sphi 0, %s332
      %s350 = sphi 0, %s350
      %s352 = sphi 0, %s350
      %s353 = sphi 0, %s352
      %s367 = sphi 0, %s353
      %s375 = sphi 0, %s377
      %s378 = sphi 0, %s375
      %s379 = sphi 0, %s378
      %s395 = sphi 0, %s379
    $region4: #{cnn_time_signature_forward.1} parent=1 // loop_header_branch
      %27 = sbr.rel (%p25) target = $region8
    $region5: #{cnn_time_signature_forward.1} parent=1 // loop_body
      %s29 = ssub.s32 %s24, 1
      %s30 = ssub.s32 %s24, 2
      %s37 = sadd.s32 1, %s32
      %p38 = scmp.ge.s32.totalorder %s37, 1
      %s39 = scalar_select %p38, 0, %s37
      %s40 = sadd.s32 1, %s31
      %s41 = scalar_select %p38, %s40, %s31
      %p42 = scmp.ge.s32.totalorder %s41, 2
      %s43 = scalar_select %p42, 0, %s41
      %s44 = ssub.s32 %s32, 1
      %p45 = scmp.gt.s32.totalorder %s44, 0
      %s46 = scalar_select %p45, %s44, 0
      %s47 = ssub.s32 %s39, 1
      %p48 = scmp.gt.s32.totalorder %s47, 0
      %s49 = scalar_select %p48, %s47, 0
      %s50 = ssub.s32 %s31, %s43
      %s51 = ssub.s32 %s46, %s49
      %s52 = sor.u32 %s50, %s51
      %p53 = scmp.eq.s32.totalorder %s52, 0
      %s55 = sadd.s32 %s54, 1
      %s56 = scalar_select %p53, %s54, %s55
      %p59 = pneg %p53
      %p60 = scmp.eq.s32.totalorder %s24, 1
      %p61 = por %p59, %p60
      %p62 = scmp.ne.s32.totalorder %s54, %s57
      %p63 = scmp.eq.s32.totalorder %s24, 0
      %p64 = por %p62, %p63
      %p65 = scmp.ne.s32.totalorder %s54, %s57
      %p66 = scmp.eq.s32.totalorder %s29, 1
      %p67 = por %p65, %p66
      %p68 = scmp.ne.s32.totalorder %s57, %s58
      %p69 = scmp.eq.s32.totalorder %s29, 0
      %p70 = por %p68, %p69
      %p71 = scmp.ne.s32.totalorder %s57, %s58
      %p72 = scmp.eq.s32.totalorder %s30, 1
      %p73 = por %p71, %p72
      %p75 = scmp.ne.s32.totalorder %s58, %s74
      %p76 = scmp.eq.s32.totalorder %s30, 0
      %p77 = por %p75, %p76
      %s78 = ssub.s32 %s31, %s43
      %s79 = ssub.s32 %s32, %s39
      %s80 = sor.u32 %s78, %s79
      %p81 = scmp.eq.s32.totalorder %s80, 0
      %s83 = sadd.s32 %s82, 1
      %s84 = scalar_select %p81, %s82, %s83
      %p87 = pneg %p81
      %p88 = scmp.eq.s32.totalorder %s24, 1
      %p89 = por %p87, %p88
      %p90 = scmp.ne.s32.totalorder %s82, %s85
      %p91 = scmp.eq.s32.totalorder %s24, 0
      %p92 = por %p90, %p91
      %p93 = scmp.ne.s32.totalorder %s82, %s85
      %p94 = scmp.eq.s32.totalorder %s29, 1
      %p95 = por %p93, %p94
      %p96 = scmp.ne.s32.totalorder %s85, %s86
      %p97 = scmp.eq.s32.totalorder %s29, 0
      %p98 = por %p96, %p97
      %p99 = scmp.ne.s32.totalorder %s85, %s86
      %p100 = scmp.eq.s32.totalorder %s30, 1
      %p101 = por %p99, %p100
      %p103 = scmp.ne.s32.totalorder %s86, %s102
      %p104 = scmp.eq.s32.totalorder %s30, 0
      %p105 = por %p103, %p104
      %s106 = sadd.s32 %s32, 1
      %p107 = scmp.lt.s32.totalorder %s106, 0
      %s108 = scalar_select %p107, %s106, 0
      %s109 = sadd.s32 %s39, 1
      %p110 = scmp.lt.s32.totalorder %s109, 0
      %s111 = scalar_select %p110, %s109, 0
      %s112 = ssub.s32 %s31, %s43
      %s113 = ssub.s32 %s108, %s111
      %s114 = sor.u32 %s112, %s113
      %p115 = scmp.eq.s32.totalorder %s114, 0
      %s117 = sadd.s32 %s116, 1
      %s118 = scalar_select %p115, %s116, %s117
      %p121 = pneg %p115
      %p122 = scmp.eq.s32.totalorder %s24, 1
      %p123 = por %p121, %p122
      %p124 = scmp.ne.s32.totalorder %s116, %s119
      %p125 = scmp.eq.s32.totalorder %s24, 0
      %p126 = por %p124, %p125
      %p127 = scmp.ne.s32.totalorder %s116, %s119
      %p128 = scmp.eq.s32.totalorder %s29, 1
      %p129 = por %p127, %p128
      %p130 = scmp.ne.s32.totalorder %s119, %s120
      %p131 = scmp.eq.s32.totalorder %s29, 0
      %p132 = por %p130, %p131
      %p133 = scmp.ne.s32.totalorder %s119, %s120
      %p134 = scmp.eq.s32.totalorder %s30, 1
      %p135 = por %p133, %p134
      %p137 = scmp.ne.s32.totalorder %s120, %s136
      %p138 = scmp.eq.s32.totalorder %s30, 0
      %p139 = por %p137, %p138
      %s141 = sadd.s32 %s140, 1
      %p144 = scmp.eq.s32.totalorder %s24, 1
      %p145 = scmp.ne.s32.totalorder %s140, %s142
      %p146 = scmp.eq.s32.totalorder %s24, 0
      %p147 = por %p145, %p146
      %p148 = scmp.ne.s32.totalorder %s140, %s142
      %p149 = scmp.eq.s32.totalorder %s29, 1
      %p150 = por %p148, %p149
      %p151 = scmp.ne.s32.totalorder %s142, %s143
      %p152 = scmp.eq.s32.totalorder %s29, 0
      %p153 = por %p151, %p152
      %p154 = scmp.ne.s32.totalorder %s142, %s143
      %p155 = scmp.eq.s32.totalorder %s30, 1
      %p156 = por %p154, %p155
      %p158 = scmp.ne.s32.totalorder %s143, %s157
      %p159 = scmp.eq.s32.totalorder %s30, 0
      %p160 = por %p158, %p159
      %s162 = sadd.s32 %s161, 1
      %p165 = scmp.eq.s32.totalorder %s24, 1
      %p166 = scmp.ne.s32.totalorder %s161, %s163
      %p167 = scmp.eq.s32.totalorder %s24, 0
      %p168 = por %p166, %p167
      %p169 = scmp.ne.s32.totalorder %s161, %s163
      %p170 = scmp.eq.s32.totalorder %s29, 1
      %p171 = por %p169, %p170
      %p172 = scmp.ne.s32.totalorder %s163, %s164
      %p173 = scmp.eq.s32.totalorder %s29, 0
      %p174 = por %p172, %p173
      %p175 = scmp.ne.s32.totalorder %s163, %s164
      %p176 = scmp.eq.s32.totalorder %s30, 1
      %p177 = por %p175, %p176
      %p179 = scmp.ne.s32.totalorder %s164, %s178
      %p180 = scmp.eq.s32.totalorder %s30, 0
      %p181 = por %p179, %p180
      %s183 = sadd.s32 %s182, 1
      %p186 = scmp.eq.s32.totalorder %s24, 1
      %p187 = scmp.ne.s32.totalorder %s182, %s184
      %p188 = scmp.eq.s32.totalorder %s24, 0
      %p189 = por %p187, %p188
      %p190 = scmp.ne.s32.totalorder %s182, %s184
      %p191 = scmp.eq.s32.totalorder %s29, 1
      %p192 = por %p190, %p191
      %p193 = scmp.ne.s32.totalorder %s184, %s185
      %p194 = scmp.eq.s32.totalorder %s29, 0
      %p195 = por %p193, %p194
      %p196 = scmp.ne.s32.totalorder %s184, %s185
      %p197 = scmp.eq.s32.totalorder %s30, 1
      %p198 = por %p196, %p197
      %p200 = scmp.ne.s32.totalorder %s185, %s199
      %p201 = scmp.eq.s32.totalorder %s30, 0
      %p202 = por %p200, %p201
      %s204 = sadd.s32 %s203, 1
      %p207 = scmp.eq.s32.totalorder %s24, 1
      %p208 = scmp.ne.s32.totalorder %s203, %s205
      %p209 = scmp.eq.s32.totalorder %s24, 0
      %p210 = por %p208, %p209
      %p211 = scmp.ne.s32.totalorder %s203, %s205
      %p212 = scmp.eq.s32.totalorder %s29, 1
      %p213 = por %p211, %p212
      %p214 = scmp.ne.s32.totalorder %s205, %s206
      %p215 = scmp.eq.s32.totalorder %s29, 0
      %p216 = por %p214, %p215
      %p217 = scmp.ne.s32.totalorder %s205, %s206
      %p218 = scmp.eq.s32.totalorder %s30, 1
      %p219 = por %p217, %p218
      %p221 = scmp.ne.s32.totalorder %s206, %s220
      %p222 = scmp.eq.s32.totalorder %s30, 0
      %p223 = por %p221, %p222
      %s225 = sadd.s32 %s224, 1
      %p228 = scmp.eq.s32.totalorder %s24, 1
      %p229 = scmp.ne.s32.totalorder %s224, %s226
      %p230 = scmp.eq.s32.totalorder %s24, 0
      %p231 = por %p229, %p230
      %p232 = scmp.ne.s32.totalorder %s224, %s226
      %p233 = scmp.eq.s32.totalorder %s29, 1
      %p234 = por %p232, %p233
      %p235 = scmp.ne.s32.totalorder %s226, %s227
      %p236 = scmp.eq.s32.totalorder %s29, 0
      %p237 = por %p235, %p236
      %p238 = scmp.ne.s32.totalorder %s226, %s227
      %p239 = scmp.eq.s32.totalorder %s30, 1
      %p240 = por %p238, %p239
      %p242 = scmp.ne.s32.totalorder %s227, %s241
      %p243 = scmp.eq.s32.totalorder %s30, 0
      %p244 = por %p242, %p243
      %s246 = sadd.s32 %s245, 1
      %p249 = scmp.eq.s32.totalorder %s24, 1
      %p250 = scmp.ne.s32.totalorder %s245, %s247
      %p251 = scmp.eq.s32.totalorder %s24, 0
      %p252 = por %p250, %p251
      %p253 = scmp.ne.s32.totalorder %s245, %s247
      %p254 = scmp.eq.s32.totalorder %s29, 1
      %p255 = por %p253, %p254
      %p256 = scmp.ne.s32.totalorder %s247, %s248
      %p257 = scmp.eq.s32.totalorder %s29, 0
      %p258 = por %p256, %p257
      %p259 = scmp.ne.s32.totalorder %s247, %s248
      %p260 = scmp.eq.s32.totalorder %s30, 1
      %p261 = por %p259, %p260
      %p263 = scmp.ne.s32.totalorder %s248, %s262
      %p264 = scmp.eq.s32.totalorder %s30, 0
      %p265 = por %p263, %p264
      %s267 = sadd.s32 %s266, 1
      %p270 = scmp.eq.s32.totalorder %s24, 1
      %p271 = scmp.ne.s32.totalorder %s266, %s268
      %p272 = scmp.eq.s32.totalorder %s24, 0
      %p273 = por %p271, %p272
      %p274 = scmp.ne.s32.totalorder %s266, %s268
      %p275 = scmp.eq.s32.totalorder %s29, 1
      %p276 = por %p274, %p275
      %p277 = scmp.ne.s32.totalorder %s268, %s269
      %p278 = scmp.eq.s32.totalorder %s29, 0
      %p279 = por %p277, %p278
      %p280 = scmp.ne.s32.totalorder %s268, %s269
      %p281 = scmp.eq.s32.totalorder %s30, 1
      %p282 = por %p280, %p281
      %p284 = scmp.ne.s32.totalorder %s269, %s283
      %p285 = scmp.eq.s32.totalorder %s30, 0
      %p286 = por %p284, %p285
      %s288 = sadd.s32 %s287, 1
      %p291 = scmp.eq.s32.totalorder %s24, 1
      %p292 = scmp.ne.s32.totalorder %s287, %s289
      %p293 = scmp.eq.s32.totalorder %s24, 0
      %p294 = por %p292, %p293
      %p295 = scmp.ne.s32.totalorder %s287, %s289
      %p296 = scmp.eq.s32.totalorder %s29, 1
      %p297 = por %p295, %p296
      %p298 = scmp.ne.s32.totalorder %s289, %s290
      %p299 = scmp.eq.s32.totalorder %s29, 0
      %p300 = por %p298, %p299
      %p301 = scmp.ne.s32.totalorder %s289, %s290
      %p302 = scmp.eq.s32.totalorder %s30, 1
      %p303 = por %p301, %p302
      %p305 = scmp.ne.s32.totalorder %s290, %s304
      %p306 = scmp.eq.s32.totalorder %s30, 0
      %p307 = por %p305, %p306
      %s309 = sadd.s32 %s308, 1
      %p312 = scmp.eq.s32.totalorder %s24, 1
      %p313 = scmp.ne.s32.totalorder %s308, %s310
      %p314 = scmp.eq.s32.totalorder %s24, 0
      %p315 = por %p313, %p314
      %p316 = scmp.ne.s32.totalorder %s308, %s310
      %p317 = scmp.eq.s32.totalorder %s29, 1
      %p318 = por %p316, %p317
      %p319 = scmp.ne.s32.totalorder %s310, %s311
      %p320 = scmp.eq.s32.totalorder %s29, 0
      %p321 = por %p319, %p320
      %p322 = scmp.ne.s32.totalorder %s310, %s311
      %p323 = scmp.eq.s32.totalorder %s30, 1
      %p324 = por %p322, %p323
      %p326 = scmp.ne.s32.totalorder %s311, %s325
      %p327 = scmp.eq.s32.totalorder %s30, 0
      %p328 = por %p326, %p327
      %s330 = sadd.s32 %s329, 1
      %p333 = scmp.eq.s32.totalorder %s24, 1
      %p334 = scmp.ne.s32.totalorder %s329, %s331
      %p335 = scmp.eq.s32.totalorder %s24, 0
      %p336 = por %p334, %p335
      %p337 = scmp.ne.s32.totalorder %s329, %s331
      %p338 = scmp.eq.s32.totalorder %s29, 1
      %p339 = por %p337, %p338
      %p340 = scmp.ne.s32.totalorder %s331, %s332
      %p341 = scmp.eq.s32.totalorder %s29, 0
      %p342 = por %p340, %p341
      %p343 = scmp.ne.s32.totalorder %s331, %s332
      %p344 = scmp.eq.s32.totalorder %s30, 1
      %p345 = por %p343, %p344
      %p347 = scmp.ne.s32.totalorder %s332, %s346
      %p348 = scmp.eq.s32.totalorder %s30, 0
      %p349 = por %p347, %p348
      %s351 = sadd.s32 %s350, 1
      %p354 = scmp.eq.s32.totalorder %s24, 1
      %p355 = scmp.ne.s32.totalorder %s350, %s352
      %p356 = scmp.eq.s32.totalorder %s24, 0
      %p357 = por %p355, %p356
      %p358 = scmp.ne.s32.totalorder %s350, %s352
      %p359 = scmp.eq.s32.totalorder %s29, 1
      %p360 = por %p358, %p359
      %p361 = scmp.ne.s32.totalorder %s352, %s353
      %p362 = scmp.eq.s32.totalorder %s29, 0
      %p363 = por %p361, %p362
      %p364 = scmp.ne.s32.totalorder %s352, %s353
      %p365 = scmp.eq.s32.totalorder %s30, 1
      %p366 = por %p364, %p365
      %p368 = scmp.ne.s32.totalorder %s353, %s367
      %p369 = scmp.eq.s32.totalorder %s30, 0
      %p370 = por %p368, %p369
      %s371 = ssub.s32 %s31, %s43
      %s372 = ssub.s32 %s32, %s39
      %s373 = sor.u32 %s371, %s372
      %p374 = scmp.eq.s32.totalorder %s373, 0
      %s376 = sadd.s32 %s375, 1
      %s377 = scalar_select %p374, %s375, %s376
      %p380 = pneg %p374
      %p381 = scmp.eq.s32.totalorder %s24, 1
      %p382 = por %p380, %p381
      %p383 = scmp.ne.s32.totalorder %s375, %s378
      %p384 = scmp.eq.s32.totalorder %s24, 0
      %p385 = por %p383, %p384
      %p386 = scmp.ne.s32.totalorder %s375, %s378
      %p387 = scmp.eq.s32.totalorder %s29, 1
      %p388 = por %p386, %p387
      %p389 = scmp.ne.s32.totalorder %s378, %s379
      %p390 = scmp.eq.s32.totalorder %s29, 0
      %p391 = por %p389, %p390
      %p392 = scmp.ne.s32.totalorder %s378, %s379
      %p393 = scmp.eq.s32.totalorder %s30, 1
      %p394 = por %p392, %p393
      %p396 = scmp.ne.s32.totalorder %s379, %s395
      %p397 = scmp.eq.s32.totalorder %s30, 0
      %p398 = por %p396, %p397
      %p399 = scmp.le.s32.totalorder 1, %s24
      %p400 = scmp.lt.s32.totalorder %s24, 3
      %p401 = pnand %p399, %p400
      %p402 = pneg %p401
      // Predicated region
      $region9: #{cnn_time_signature_forward.1} parent=5 // pred_check
        _
      $region10: #{cnn_time_signature_forward.1} parent=5 // pred_check_branch
        %404 = sbr.rel (%p401) target = $region12
      $region11: #{cnn_time_signature_forward.1} parent=5 // pred_region
        %s405 = ssub.s32 %s24, 1
        // Predicated region
        $region13: #{cnn_time_signature_forward.1} parent=11 // pred_check
          %p406 = pneg %p153
        $region14: #{cnn_time_signature_forward.1} parent=11 // pred_check_branch
          %408 = sbr.rel (%p406) target = $region16
        $region15: #{cnn_time_signature_forward.1} parent=11 // pred_region
          %s410 = ssub.s32 18432, 18432
          %411 = vsyncadd [#allocation4], %s410
          %s412 = sshll.u32 [#allocation3], 4
          %s413 = int_to_ptr.vmem [resolvable:$true] %s412
          %418 = dma.hbm_to_vmem [thread:$0]  %s3, 18432, %s413, [#allocation4], 64, 64, 4
        $region16: #{cnn_time_signature_forward.1} parent=11 // pred_fallthru
          _
        // Predicated region
        $region17: #{cnn_time_signature_forward.1} parent=11 // pred_check
          %p419 = pneg %p174
        $region18: #{cnn_time_signature_forward.1} parent=11 // pred_check_branch
          %421 = sbr.rel (%p419) target = $region20
        $region19: #{cnn_time_signature_forward.1} parent=11 // pred_region
          _
        $region20: #{cnn_time_signature_forward.1} parent=11 // pred_fallthru
          _
        // Predicated region
        $region21: #{cnn_time_signature_forward.1} parent=11 // pred_check
          %p422 = pneg %p195
        $region22: #{cnn_time_signature_forward.1} parent=11 // pred_check_branch
          %424 = sbr.rel (%p422) target = $region24
        $region23: #{cnn_time_signature_forward.1} parent=11 // pred_region
          _
        $region24: #{cnn_time_signature_forward.1} parent=11 // pred_fallthru
          _
        // Predicated region
        $region25: #{cnn_time_signature_forward.1} parent=11 // pred_check
          %p425 = pneg %p216
        $region26: #{cnn_time_signature_forward.1} parent=11 // pred_check_branch
          %427 = sbr.rel (%p425) target = $region28
        $region27: #{cnn_time_signature_forward.1} parent=11 // pred_region
          %s429 = ssub.s32 9216, 9216
          %430 = vsyncadd [#allocation6], %s429
          %s431 = sshll.u32 [#allocation5], 4
          %s432 = int_to_ptr.vmem [resolvable:$true] %s431
          %437 = dma.hbm_to_vmem [thread:$0]  %s6, 9216, %s432, [#allocation6], 64, 64, 4
        $region28: #{cnn_time_signature_forward.1} parent=11 // pred_fallthru
          _
        // Predicated region
        $region29: #{cnn_time_signature_forward.1} parent=11 // pred_check
          %p438 = pneg %p237
        $region30: #{cnn_time_signature_forward.1} parent=11 // pred_check_branch
          %440 = sbr.rel (%p438) target = $region32
        $region31: #{cnn_time_signature_forward.1} parent=11 // pred_region
          _
        $region32: #{cnn_time_signature_forward.1} parent=11 // pred_fallthru
          _
        // Predicated region
        $region33: #{cnn_time_signature_forward.1} parent=11 // pred_check
          %p441 = pneg %p258
        $region34: #{cnn_time_signature_forward.1} parent=11 // pred_check_branch
          %443 = sbr.rel (%p441) target = $region36
        $region35: #{cnn_time_signature_forward.1} parent=11 // pred_region
          _
        $region36: #{cnn_time_signature_forward.1} parent=11 // pred_fallthru
          _
        // Predicated region
        $region37: #{cnn_time_signature_forward.1} parent=11 // pred_check
          %p444 = pneg %p279
        $region38: #{cnn_time_signature_forward.1} parent=11 // pred_check_branch
          %446 = sbr.rel (%p444) target = $region40
        $region39: #{cnn_time_signature_forward.1} parent=11 // pred_region
          %s448 = ssub.s32 9216, 9216
          %449 = vsyncadd [#allocation6], %s448
          %s450 = sshll.u32 [#allocation7], 4
          %s451 = int_to_ptr.vmem [resolvable:$true] %s450
          %456 = dma.hbm_to_vmem [thread:$0]  %s9, 9216, %s451, [#allocation6], 64, 64, 4
        $region40: #{cnn_time_signature_forward.1} parent=11 // pred_fallthru
          _
        // Predicated region
        $region41: #{cnn_time_signature_forward.1} parent=11 // pred_check
          %p457 = pneg %p300
        $region42: #{cnn_time_signature_forward.1} parent=11 // pred_check_branch
          %459 = sbr.rel (%p457) target = $region44
        $region43: #{cnn_time_signature_forward.1} parent=11 // pred_region
          _
        $region44: #{cnn_time_signature_forward.1} parent=11 // pred_fallthru
          _
        // Predicated region
        $region45: #{cnn_time_signature_forward.1} parent=11 // pred_check
          %p460 = pneg %p321
        $region46: #{cnn_time_signature_forward.1} parent=11 // pred_check_branch
          %462 = sbr.rel (%p460) target = $region48
        $region47: #{cnn_time_signature_forward.1} parent=11 // pred_region
          _
        $region48: #{cnn_time_signature_forward.1} parent=11 // pred_fallthru
          _
        // Predicated region
        $region49: #{cnn_time_signature_forward.1} parent=11 // pred_check
          %p463 = pneg %p342
        $region50: #{cnn_time_signature_forward.1} parent=11 // pred_check_branch
          %465 = sbr.rel (%p463) target = $region52
        $region51: #{cnn_time_signature_forward.1} parent=11 // pred_region
          _
        $region52: #{cnn_time_signature_forward.1} parent=11 // pred_fallthru
          _
        // Predicated region
        $region53: #{cnn_time_signature_forward.1} parent=11 // pred_check
          %p466 = pneg %p363
        $region54: #{cnn_time_signature_forward.1} parent=11 // pred_check_branch
          %468 = sbr.rel (%p466) target = $region56
        $region55: #{cnn_time_signature_forward.1} parent=11 // pred_region
          _
        $region56: #{cnn_time_signature_forward.1} parent=11 // pred_fallthru
          _
      $region12: #{cnn_time_signature_forward.1} parent=5 // pred_fallthru
        _
      %p469 = scmp.lt.s32.totalorder %s24, 2
      // Predicated region
      $region57: #{cnn_time_signature_forward.1} parent=5 // pred_check
        %p470 = pneg %p469
      $region58: #{cnn_time_signature_forward.1} parent=5 // pred_check_branch
        %472 = sbr.rel (%p470) target = $region60
      $region59: #{cnn_time_signature_forward.1} parent=5 // pred_region
        // Predicated region
        $region61: #{cnn_time_signature_forward.1} parent=59 // pred_check
          %p473 = pneg %p64
        $region62: #{cnn_time_signature_forward.1} parent=59 // pred_check_branch
          %475 = sbr.rel (%p473) target = $region64
        $region63: #{cnn_time_signature_forward.1} parent=59 // pred_region
          %s476 = ssub.s32 %s32, 1
          %p477 = scmp.gt.s32.totalorder %s476, 0
          %s478 = scalar_select %p477, %s476, 0
          %s479 = smul.u32 2, %s478
          %p480 = scmp.lt.s32.totalorder %s31, 1
          %s481 = scalar_select %p480, %s31, 1
          %p482 = scmp.lt.s32.totalorder %s479, 1
          %s483 = scalar_select %p482, %s479, 1
          %s484 = smul.addr %s483, 2
          %s485 = smul.addr %s481, 4
          %s486 = sadd.s32 %s484, %s485
          %s487 = smul.addr %s486, 4
          %s488 = scalar_lea.vmem %s0, %s487
          %s489 = ssub.s32 %s32, 1
          %p490 = scmp.gt.s32.totalorder %s489, 0
          %s491 = scalar_select %p490, %s489, 0
          %s492 = smul.u32 2, %s491
        $region64: #{cnn_time_signature_forward.1} parent=59 // pred_fallthru
          _
        // Predicated region
        $region65: #{cnn_time_signature_forward.1} parent=59 // pred_check
          %p493 = pneg %p92
        $region66: #{cnn_time_signature_forward.1} parent=59 // pred_check_branch
          %495 = sbr.rel (%p493) target = $region68
        $region67: #{cnn_time_signature_forward.1} parent=59 // pred_region
          %s496 = smul.u32 2, %s32
          %p497 = scmp.lt.s32.totalorder %s31, 1
          %s498 = scalar_select %p497, %s31, 1
          %p499 = scmp.lt.s32.totalorder %s496, 1
          %s500 = scalar_select %p499, %s496, 1
          %s501 = smul.addr %s500, 2
          %s502 = smul.addr %s498, 4
          %s503 = sadd.s32 %s501, %s502
          %s504 = smul.addr %s503, 4
          %s505 = scalar_lea.vmem %s1, %s504
          %s506 = smul.u32 2, %s32
        $region68: #{cnn_time_signature_forward.1} parent=59 // pred_fallthru
          _
        // Predicated region
        $region69: #{cnn_time_signature_forward.1} parent=59 // pred_check
          %p507 = pneg %p126
        $region70: #{cnn_time_signature_forward.1} parent=59 // pred_check_branch
          %509 = sbr.rel (%p507) target = $region72
        $region71: #{cnn_time_signature_forward.1} parent=59 // pred_region
          %s510 = sadd.s32 %s32, 1
          %p511 = scmp.lt.s32.totalorder %s510, 0
          %s512 = scalar_select %p511, %s510, 0
          %s513 = smul.u32 2, %s512
          %p514 = scmp.lt.s32.totalorder %s31, 1
          %s515 = scalar_select %p514, %s31, 1
          %p516 = scmp.lt.s32.totalorder %s513, 1
          %s517 = scalar_select %p516, %s513, 1
          %s518 = smul.addr %s517, 2
          %s519 = smul.addr %s515, 4
          %s520 = sadd.s32 %s518, %s519
          %s521 = smul.addr %s520, 4
          %s522 = scalar_lea.vmem %s2, %s521
          %s523 = sadd.s32 %s32, 1
          %p524 = scmp.lt.s32.totalorder %s523, 0
          %s525 = scalar_select %p524, %s523, 0
          %s526 = smul.u32 2, %s525
        $region72: #{cnn_time_signature_forward.1} parent=59 // pred_fallthru
          _
      $region60: #{cnn_time_signature_forward.1} parent=5 // pred_fallthru
        _
      %p527 = scmp.le.s32.totalorder 1, %s24
      %p528 = scmp.lt.s32.totalorder %s24, 3
      %p529 = pnand %p527, %p528
      %p530 = pneg %p529
      // Predicated region
      $region73: #{cnn_time_signature_forward.1} parent=5 // pred_check
        _
      $region74: #{cnn_time_signature_forward.1} parent=5 // pred_check_branch
        %532 = sbr.rel (%p529) target = $region76
      $region75: #{cnn_time_signature_forward.1} parent=5 // pred_region
        %s533 = ssub.s32 %s24, 1
        // Predicated region
        $region77: #{cnn_time_signature_forward.1} parent=75 // pred_check
          %p534 = pneg %p153
        $region78: #{cnn_time_signature_forward.1} parent=75 // pred_check_branch
          %536 = sbr.rel (%p534) target = $region80
        $region79: #{cnn_time_signature_forward.1} parent=75 // pred_region
          %537 = dma.done [#allocation4], 18432
        $region80: #{cnn_time_signature_forward.1} parent=75 // pred_fallthru
          _
        // Predicated region
        $region81: #{cnn_time_signature_forward.1} parent=75 // pred_check
          %p538 = pneg %p216
        $region82: #{cnn_time_signature_forward.1} parent=75 // pred_check_branch
          %540 = sbr.rel (%p538) target = $region84
        $region83: #{cnn_time_signature_forward.1} parent=75 // pred_region
          %541 = dma.done [#allocation6], 9216
        $region84: #{cnn_time_signature_forward.1} parent=75 // pred_fallthru
          _
        // Predicated region
        $region85: #{cnn_time_signature_forward.1} parent=75 // pred_check
          %p542 = pneg %p279
        $region86: #{cnn_time_signature_forward.1} parent=75 // pred_check_branch
          %544 = sbr.rel (%p542) target = $region88
        $region87: #{cnn_time_signature_forward.1} parent=75 // pred_region
          %545 = dma.done [#allocation6], 9216
        $region88: #{cnn_time_signature_forward.1} parent=75 // pred_fallthru
          _
        %s546 = ssub.s32 %s34, 1
        %p547 = scmp.gt.s32.totalorder %s546, 0
        %s548 = scalar_select %p547, %s546, 0
        %s549 = smul.u32 2, %s548
        %p550 = scmp.lt.s32.totalorder %s33, 1
        %s551 = scalar_select %p550, %s33, 1
        %p552 = scmp.lt.s32.totalorder %s549, 1
        %s553 = scalar_select %p552, %s549, 1
        %s554 = smul.addr %s553, 2
        %s555 = smul.addr %s551, 4
        %s556 = sadd.s32 %s554, %s555
        %s557 = smul.addr %s556, 4
        %s558 = scalar_lea.vmem %s0, %s557
        %p559 = pneg %p70
        %p560 = pneg %p67
        %s561 = smul.u32 2, %s34
        %p562 = scmp.lt.s32.totalorder %s33, 1
        %s563 = scalar_select %p562, %s33, 1
        %p564 = scmp.lt.s32.totalorder %s561, 1
        %s565 = scalar_select %p564, %s561, 1
        %s566 = smul.addr %s565, 2
        %s567 = smul.addr %s563, 4
        %s568 = sadd.s32 %s566, %s567
        %s569 = smul.addr %s568, 4
        %s570 = scalar_lea.vmem %s1, %s569
        %p571 = pneg %p98
        %p572 = pneg %p95
        %s573 = sadd.s32 %s34, 1
        %p574 = scmp.lt.s32.totalorder %s573, 0
        %s575 = scalar_select %p574, %s573, 0
        %s576 = smul.u32 2, %s575
        %p577 = scmp.lt.s32.totalorder %s33, 1
        %s578 = scalar_select %p577, %s33, 1
        %p579 = scmp.lt.s32.totalorder %s576, 1
        %s580 = scalar_select %p579, %s576, 1
        %s581 = smul.addr %s580, 2
        %s582 = smul.addr %s578, 4
        %s583 = sadd.s32 %s581, %s582
        %s584 = smul.addr %s583, 4
        %s585 = scalar_lea.vmem %s2, %s584
        %p586 = pneg %p132
        %p587 = pneg %p129
        %p588 = pneg %p153
        %p589 = pneg %p150
        %p590 = pneg %p174
        %p591 = pneg %p171
        %p592 = pneg %p195
        %p593 = pneg %p192
        %p594 = pneg %p216
        %p595 = pneg %p213
        %p596 = pneg %p237
        %p597 = pneg %p234
        %p598 = pneg %p258
        %p599 = pneg %p255
        %p600 = pneg %p279
        %p601 = pneg %p276
        %p602 = pneg %p300
        %p603 = pneg %p297
        %p604 = pneg %p321
        %p605 = pneg %p318
        %p606 = pneg %p342
        %p607 = pneg %p339
        %p608 = pneg %p363
        %p609 = pneg %p360
        %p610 = pneg %p391
        %p611 = pneg %p388
        %s612 = smul.u32 2, %s34
        %p613 = scmp.lt.s32.totalorder %s33, 1
        %s614 = scalar_select %p613, %s33, 1
        %p615 = scmp.lt.s32.totalorder %s612, 1
        %s616 = scalar_select %p615, %s612, 1
        %s617 = smul.addr %s614, 2
        %s618 = sadd.s32 %s616, %s617
        %s619 = smul.addr %s618, 8
        %s620 = scalar_lea.vmem %s14, %s619
        %s621 = ssub.s32 %s34, 1
        %p622 = scmp.gt.s32.totalorder %s621, 0
        %s623 = scalar_select %p622, %s621, 0
        %s624 = smul.u32 2, %s623
        %p625 = scmp.lt.s32.totalorder %s33, 1
        %s626 = scalar_select %p625, %s33, 1
        %p627 = scmp.lt.s32.totalorder %s624, 1
        %s628 = scalar_select %p627, %s624, 1
        %s629 = smul.addr %s628, 2
        %s630 = smul.addr %s626, 4
        %s631 = sadd.s32 %s629, %s630
        %s632 = smul.addr %s631, 4
        %s633 = scalar_lea.vmem %s0, %s632
        %s634 = ssub.s32 %s34, 1
        %p635 = scmp.gt.s32.totalorder %s634, 0
        %s636 = scalar_select %p635, %s634, 0
        %s637 = smul.u32 2, %s636
        %s638 = smul.u32 2, %s34
        %p639 = scmp.lt.s32.totalorder %s33, 1
        %s640 = scalar_select %p639, %s33, 1
        %p641 = scmp.lt.s32.totalorder %s638, 1
        %s642 = scalar_select %p641, %s638, 1
        %s643 = smul.addr %s642, 2
        %s644 = smul.addr %s640, 4
        %s645 = sadd.s32 %s643, %s644
        %s646 = smul.addr %s645, 4
        %s647 = scalar_lea.vmem %s1, %s646
        %s648 = smul.u32 2, %s34
        %s649 = sadd.s32 %s34, 1
        %p650 = scmp.lt.s32.totalorder %s649, 0
        %s651 = scalar_select %p650, %s649, 0
        %s652 = smul.u32 2, %s651
        %p653 = scmp.lt.s32.totalorder %s33, 1
        %s654 = scalar_select %p653, %s33, 1
        %p655 = scmp.lt.s32.totalorder %s652, 1
        %s656 = scalar_select %p655, %s652, 1
        %s657 = smul.addr %s656, 2
        %s658 = smul.addr %s654, 4
        %s659 = sadd.s32 %s657, %s658
        %s660 = smul.addr %s659, 4
        %s661 = scalar_lea.vmem %s2, %s660
        %s662 = sadd.s32 %s34, 1
        %p663 = scmp.lt.s32.totalorder %s662, 0
        %s664 = scalar_select %p663, %s662, 0
        %s665 = smul.u32 2, %s664
        %s666 = smul.u32 2, %s34
        %p667 = scmp.lt.s32.totalorder %s33, 1
        %s668 = scalar_select %p667, %s33, 1
        %p669 = scmp.lt.s32.totalorder %s666, 1
        %s670 = scalar_select %p669, %s666, 1
        %s671 = smul.addr %s668, 2
        %s672 = sadd.s32 %s670, %s671
        %s673 = smul.addr %s672, 8
        %s674 = scalar_lea.vmem %s14, %s673
        %s675 = smul.u32 2, %s34
        %s677 = smul.u32 %s34, 16
        %s678 = ssub.s32 %s677, 16
        %v679 = vld [vmem:[%s633] sm:$0xff]
        %v680 = vld [vmem:[%s633 + $0x8] sm:$0xff]
        %v681 = vunpack.c.l.bf16 %v679
        %v682 = vunpack.c.h.bf16 %v679
        %v683 = vunpack.c.l.bf16 %v680
        %v684 = vunpack.c.h.bf16 %v680
        %v685 = vld [vmem:[%s647] sm:$0xff]
        %v686 = vld [vmem:[%s647 + $0x8] sm:$0xff]
        %v687 = vunpack.c.l.bf16 %v685
        %v688 = vunpack.c.h.bf16 %v685
        %v689 = vunpack.c.l.bf16 %v686
        %v690 = vunpack.c.h.bf16 %v686
        %v691 = vld [vmem:[%s661] sm:$0xff]
        %v692 = vld [vmem:[%s661 + $0x8] sm:$0xff]
        %v693 = vunpack.c.l.bf16 %v691
        %v694 = vunpack.c.h.bf16 %v691
        %v695 = vunpack.c.l.bf16 %v692
        %v696 = vunpack.c.h.bf16 %v692
        %v697 = vlaneseq
        %v698 = vshrl.u32 %v697, 7
        %v699 = vadd.s32 %v698, 8
        %v700 = vadd.s32 %v698, 16
        %v701 = vadd.s32 %v698, 24
        %v702 = vadd.s32 %v698, 32
        %v703 = vadd.s32 %v698, 40
        %v704 = vstv %s678
        %v705 = vadd.s32 %v698, %v704
        %v706 = vadd.s32 %v699, %v704
        %v707 = vadd.s32 %v700, %v704
        %v708 = vadd.s32 %v701, %v704
        %v709 = vadd.s32 %v702, %v704
        %v710 = vadd.s32 %v703, %v704
        %vm711 = vcmp.ge.s32.totalorder %v705, 0
        %vm712 = vcmp.ge.s32.totalorder %v706, 0
        %vm713 = vcmp.ge.s32.totalorder %v707, 0
        %vm714 = vcmp.ge.s32.totalorder %v708, 0
        %vm715 = vcmp.ge.s32.totalorder %v709, 0
        %vm716 = vcmp.ge.s32.totalorder %v710, 0
        %vm717 = vcmp.lt.s32.totalorder %v705, 16
        %vm718 = vcmp.lt.s32.totalorder %v706, 16
        %vm719 = vcmp.lt.s32.totalorder %v707, 16
        %vm720 = vcmp.lt.s32.totalorder %v708, 16
        %vm721 = vcmp.lt.s32.totalorder %v709, 16
        %vm722 = vcmp.lt.s32.totalorder %v710, 16
        %vm723 = vmand %vm711, %vm717
        %vm724 = vmand %vm712, %vm718
        %vm725 = vmand %vm713, %vm719
        %vm726 = vmand %vm714, %vm720
        %vm727 = vmand %vm715, %vm721
        %vm728 = vmand %vm716, %vm722
        %v729 = vsel %vm723, 1, 0
        %v730 = vsel %vm724, 1, 0
        %v731 = vsel %vm725, 1, 0
        %v732 = vsel %vm726, 1, 0
        %v733 = vsel %vm727, 1, 0
        %v734 = vsel %vm728, 1, 0
        %vm735 = vcmp.eq.s32.totalorder %v729, 1
        %vm736 = vcmp.eq.s32.totalorder %v730, 1
        %vm737 = vcmp.eq.s32.totalorder %v731, 1
        %vm738 = vcmp.eq.s32.totalorder %v732, 1
        %vm739 = vcmp.eq.s32.totalorder %v733, 1
        %vm740 = vcmp.eq.s32.totalorder %v734, 1
        %v741 = vsel %vm735, %v681, 0.0
        %v742 = vsel %vm735, %v682, 0.0
        %v743 = vsel %vm736, %v683, 0.0
        %v744 = vsel %vm736, %v684, 0.0
        %v745 = vsel %vm737, %v687, 0.0
        %v746 = vsel %vm737, %v688, 0.0
        %v747 = vsel %vm738, %v689, 0.0
        %v748 = vsel %vm738, %v690, 0.0
        %v749 = vsel %vm739, %v693, 0.0
        %v750 = vsel %vm739, %v694, 0.0
        %v751 = vsel %vm740, %v695, 0.0
        %v752 = vsel %vm740, %v696, 0.0
        %s753 = sadd.s32 %s677, 4294967284
        %vm766 = vcmask 1046528
        %v767 = vrot.slane %v741, 1
        %v768 = vrot.slane %v743, 1
        %v769 = vsel %vm766, %v767, %v768
        %v770 = vrot.slane %v742, 1
        %v771 = vrot.slane %v744, 1
        %v772 = vsel %vm766, %v770, %v771
        %v773 = vrot.slane %v745, 1
        %v774 = vsel %vm766, %v768, %v773
        %v775 = vrot.slane %v746, 1
        %v776 = vsel %vm766, %v771, %v775
        %v777 = vrot.slane %v747, 1
        %v778 = vsel %vm766, %v773, %v777
        %v779 = vrot.slane %v748, 1
        %v780 = vsel %vm766, %v775, %v779
        %v781 = vrot.slane %v749, 1
        %v782 = vsel %vm766, %v777, %v781
        %v783 = vrot.slane %v750, 1
        %v784 = vsel %vm766, %v779, %v783
        %v785 = vrot.slane %v751, 1
        %v786 = vsel %vm766, %v781, %v785
        %v787 = vrot.slane %v752, 1
        %v788 = vsel %vm766, %v783, %v787
        %vm799 = vcmask 1045504
        %v800 = vrot.slane %v741, 2
        %v801 = vrot.slane %v743, 2
        %v802 = vsel %vm799, %v800, %v801
        %v803 = vrot.slane %v742, 2
        %v804 = vrot.slane %v744, 2
        %v805 = vsel %vm799, %v803, %v804
        %v806 = vrot.slane %v745, 2
        %v807 = vsel %vm799, %v801, %v806
        %v808 = vrot.slane %v746, 2
        %v809 = vsel %vm799, %v804, %v808
        %v810 = vrot.slane %v747, 2
        %v811 = vsel %vm799, %v806, %v810
        %v812 = vrot.slane %v748, 2
        %v813 = vsel %vm799, %v808, %v812
        %v814 = vrot.slane %v749, 2
        %v815 = vsel %vm799, %v810, %v814
        %v816 = vrot.slane %v750, 2
        %v817 = vsel %vm799, %v812, %v816
        %v818 = vrot.slane %v751, 2
        %v819 = vsel %vm799, %v814, %v818
        %v820 = vrot.slane %v752, 2
        %v821 = vsel %vm799, %v816, %v820
        %vm832 = vcmask 1044480
        %v833 = vrot.slane %v741, 3
        %v834 = vrot.slane %v743, 3
        %v835 = vsel %vm832, %v833, %v834
        %v836 = vrot.slane %v742, 3
        %v837 = vrot.slane %v744, 3
        %v838 = vsel %vm832, %v836, %v837
        %v839 = vrot.slane %v745, 3
        %v840 = vsel %vm832, %v834, %v839
        %v841 = vrot.slane %v746, 3
        %v842 = vsel %vm832, %v837, %v841
        %v843 = vrot.slane %v747, 3
        %v844 = vsel %vm832, %v839, %v843
        %v845 = vrot.slane %v748, 3
        %v846 = vsel %vm832, %v841, %v845
        %v847 = vrot.slane %v749, 3
        %v848 = vsel %vm832, %v843, %v847
        %v849 = vrot.slane %v750, 3
        %v850 = vsel %vm832, %v845, %v849
        %v851 = vrot.slane %v751, 3
        %v852 = vsel %vm832, %v847, %v851
        %v853 = vrot.slane %v752, 3
        %v854 = vsel %vm832, %v849, %v853
        %vm865 = vcmask 1043456
        %v866 = vrot.slane %v741, 4
        %v867 = vrot.slane %v743, 4
        %v868 = vsel %vm865, %v866, %v867
        %v869 = vrot.slane %v742, 4
        %v870 = vrot.slane %v744, 4
        %v871 = vsel %vm865, %v869, %v870
        %v872 = vrot.slane %v745, 4
        %v873 = vsel %vm865, %v867, %v872
        %v874 = vrot.slane %v746, 4
        %v875 = vsel %vm865, %v870, %v874
        %v876 = vrot.slane %v747, 4
        %v877 = vsel %vm865, %v872, %v876
        %v878 = vrot.slane %v748, 4
        %v879 = vsel %vm865, %v874, %v878
        %v880 = vrot.slane %v749, 4
        %v881 = vsel %vm865, %v876, %v880
        %v882 = vrot.slane %v750, 4
        %v883 = vsel %vm865, %v878, %v882
        %v884 = vrot.slane %v751, 4
        %v885 = vsel %vm865, %v880, %v884
        %v886 = vrot.slane %v752, 4
        %v887 = vsel %vm865, %v882, %v886
        %vm898 = vcmask 1042432
        %v899 = vrot.slane %v741, 5
        %v900 = vrot.slane %v743, 5
        %v901 = vsel %vm898, %v899, %v900
        %v902 = vrot.slane %v742, 5
        %v903 = vrot.slane %v744, 5
        %v904 = vsel %vm898, %v902, %v903
        %v905 = vrot.slane %v745, 5
        %v906 = vsel %vm898, %v900, %v905
        %v907 = vrot.slane %v746, 5
        %v908 = vsel %vm898, %v903, %v907
        %v909 = vrot.slane %v747, 5
        %v910 = vsel %vm898, %v905, %v909
        %v911 = vrot.slane %v748, 5
        %v912 = vsel %vm898, %v907, %v911
        %v913 = vrot.slane %v749, 5
        %v914 = vsel %vm898, %v909, %v913
        %v915 = vrot.slane %v750, 5
        %v916 = vsel %vm898, %v911, %v915
        %v917 = vrot.slane %v751, 5
        %v918 = vsel %vm898, %v913, %v917
        %v919 = vrot.slane %v752, 5
        %v920 = vsel %vm898, %v915, %v919
        %vm931 = vcmask 1041408
        %v932 = vrot.slane %v741, 6
        %v933 = vrot.slane %v743, 6
        %v934 = vsel %vm931, %v932, %v933
        %v935 = vrot.slane %v742, 6
        %v936 = vrot.slane %v744, 6
        %v937 = vsel %vm931, %v935, %v936
        %v938 = vrot.slane %v745, 6
        %v939 = vsel %vm931, %v933, %v938
        %v940 = vrot.slane %v746, 6
        %v941 = vsel %vm931, %v936, %v940
        %v942 = vrot.slane %v747, 6
        %v943 = vsel %vm931, %v938, %v942
        %v944 = vrot.slane %v748, 6
        %v945 = vsel %vm931, %v940, %v944
        %v946 = vrot.slane %v749, 6
        %v947 = vsel %vm931, %v942, %v946
        %v948 = vrot.slane %v750, 6
        %v949 = vsel %vm931, %v944, %v948
        %v950 = vrot.slane %v751, 6
        %v951 = vsel %vm931, %v946, %v950
        %v952 = vrot.slane %v752, 6
        %v953 = vsel %vm931, %v948, %v952
        %vm964 = vcmask 1040384
        %v965 = vrot.slane %v741, 7
        %v966 = vrot.slane %v743, 7
        %v967 = vsel %vm964, %v965, %v966
        %v968 = vrot.slane %v742, 7
        %v969 = vrot.slane %v744, 7
        %v970 = vsel %vm964, %v968, %v969
        %v971 = vrot.slane %v745, 7
        %v972 = vsel %vm964, %v966, %v971
        %v973 = vrot.slane %v746, 7
        %v974 = vsel %vm964, %v969, %v973
        %v975 = vrot.slane %v747, 7
        %v976 = vsel %vm964, %v971, %v975
        %v977 = vrot.slane %v748, 7
        %v978 = vsel %vm964, %v973, %v977
        %v979 = vrot.slane %v749, 7
        %v980 = vsel %vm964, %v975, %v979
        %v981 = vrot.slane %v750, 7
        %v982 = vsel %vm964, %v977, %v981
        %v983 = vrot.slane %v751, 7
        %v984 = vsel %vm964, %v979, %v983
        %v985 = vrot.slane %v752, 7
        %v986 = vsel %vm964, %v981, %v985
        %v997 = vpack.c.bf16 %v743, %v741
        %v998 = vpack.c.bf16 %v744, %v742
        %v999 = vpack.c.bf16 %v774, %v769
        %v1000 = vpack.c.bf16 %v776, %v772
        %v1001 = vpack.c.bf16 %v807, %v802
        %v1002 = vpack.c.bf16 %v809, %v805
        %v1003 = vpack.c.bf16 %v840, %v835
        %v1004 = vpack.c.bf16 %v842, %v838
        %v1005 = vpack.c.bf16 %v873, %v868
        %v1006 = vpack.c.bf16 %v875, %v871
        %v1007 = vpack.c.bf16 %v906, %v901
        %v1008 = vpack.c.bf16 %v908, %v904
        %v1009 = vpack.c.bf16 %v939, %v934
        %v1010 = vpack.c.bf16 %v941, %v937
        %v1011 = vpack.c.bf16 %v972, %v967
        %v1012 = vpack.c.bf16 %v974, %v970
        %v1013 = vpack.c.bf16 %v745, %v743
        %v1014 = vpack.c.bf16 %v746, %v744
        %v1015 = vpack.c.bf16 %v747, %v745
        %v1016 = vpack.c.bf16 %v748, %v746
        %v1017 = vpack.c.bf16 %v782, %v778
        %v1018 = vpack.c.bf16 %v784, %v780
        %v1019 = vpack.c.bf16 %v815, %v811
        %v1020 = vpack.c.bf16 %v817, %v813
        %v1021 = vpack.c.bf16 %v848, %v844
        %v1022 = vpack.c.bf16 %v850, %v846
        %v1023 = vpack.c.bf16 %v881, %v877
        %v1024 = vpack.c.bf16 %v883, %v879
        %v1025 = vpack.c.bf16 %v914, %v910
        %v1026 = vpack.c.bf16 %v916, %v912
        %v1027 = vpack.c.bf16 %v947, %v943
        %v1028 = vpack.c.bf16 %v949, %v945
        %v1029 = vpack.c.bf16 %v980, %v976
        %v1030 = vpack.c.bf16 %v982, %v978
        %v1031 = vpack.c.bf16 %v749, %v747
        %v1032 = vpack.c.bf16 %v750, %v748
        %v1033 = vpack.c.bf16 %v749, %v749
        %v1034 = vpack.c.bf16 %v750, %v750
        %v1035 = vpack.c.bf16 %v786, %v786
        %v1036 = vpack.c.bf16 %v788, %v788
        %v1037 = vpack.c.bf16 %v819, %v819
        %v1038 = vpack.c.bf16 %v821, %v821
        %v1039 = vpack.c.bf16 %v852, %v852
        %v1040 = vpack.c.bf16 %v854, %v854
        %v1041 = vpack.c.bf16 %v885, %v885
        %v1042 = vpack.c.bf16 %v887, %v887
        %v1043 = vpack.c.bf16 %v918, %v918
        %v1044 = vpack.c.bf16 %v920, %v920
        %v1045 = vpack.c.bf16 %v951, %v951
        %v1046 = vpack.c.bf16 %v953, %v953
        %v1047 = vpack.c.bf16 %v984, %v984
        %v1048 = vpack.c.bf16 %v986, %v986
        %v1049 = vpack.c.bf16 %v751, %v751
        %v1050 = vpack.c.bf16 %v752, %v752
        %v1051 = vld [vmem:[#allocation3] sm:$0xf]
        %v1052 = vld [vmem:[#allocation3 + $0x4] sm:$0xf]
        %v1053 = vld [vmem:[#allocation3 + $0x8] sm:$0xf]
        %v1054 = vld [vmem:[#allocation3 + $0xc] sm:$0xf]
        %v1055 = vld [vmem:[#allocation3 + $0x10] sm:$0xf]
        %v1056 = vld [vmem:[#allocation3 + $0x14] sm:$0xf]
        %v1057 = vld [vmem:[#allocation3 + $0x18] sm:$0xf]
        %v1058 = vld [vmem:[#allocation3 + $0x1c] sm:$0xf]
        %v1059 = vld [vmem:[#allocation3 + $0x20] sm:$0xf]
        %v1060 = vld [vmem:[#allocation3 + $0x24] sm:$0xf]
        %v1061 = vld [vmem:[#allocation3 + $0x28] sm:$0xf]
        %v1062 = vld [vmem:[#allocation3 + $0x2c] sm:$0xf]
        %v1063 = vld [vmem:[#allocation3 + $0x30] sm:$0xf]
        %v1064 = vld [vmem:[#allocation3 + $0x34] sm:$0xf]
        %v1065 = vld [vmem:[#allocation3 + $0x38] sm:$0xf]
        %v1066 = vld [vmem:[#allocation3 + $0x3c] sm:$0xf]
        %v1067 = vld [vmem:[#allocation3 + $0x40] sm:$0xf]
        %v1068 = vld [vmem:[#allocation3 + $0x44] sm:$0xf]
        %v1069 = vld [vmem:[#allocation3 + $0x48] sm:$0xf]
        %v1070 = vld [vmem:[#allocation3 + $0x4c] sm:$0xf]
        %v1071 = vld [vmem:[#allocation3 + $0x50] sm:$0xf]
        %v1072 = vld [vmem:[#allocation3 + $0x54] sm:$0xf]
        %v1073 = vld [vmem:[#allocation3 + $0x58] sm:$0xf]
        %v1074 = vld [vmem:[#allocation3 + $0x5c] sm:$0xf]
        %v1075 = vld [vmem:[#allocation3 + $0x60] sm:$0xf]
        %v1076 = vld [vmem:[#allocation3 + $0x64] sm:$0xf]
        %v1077 = vld [vmem:[#allocation3 + $0x68] sm:$0xf]
        %v1078 = vld [vmem:[#allocation3 + $0x6c] sm:$0xf]
        %v1079 = vld [vmem:[#allocation3 + $0x70] sm:$0xf]
        %v1080 = vld [vmem:[#allocation3 + $0x74] sm:$0xf]
        %v1081 = vld [vmem:[#allocation3 + $0x78] sm:$0xf]
        %v1082 = vld [vmem:[#allocation3 + $0x7c] sm:$0xf]
        %v1083 = vld [vmem:[#allocation3 + $0x80] sm:$0xf]
        %v1084 = vld [vmem:[#allocation3 + $0x84] sm:$0xf]
        %v1085 = vld [vmem:[#allocation3 + $0x88] sm:$0xf]
        %v1086 = vld [vmem:[#allocation3 + $0x8c] sm:$0xf]
        %v1087 = vld [vmem:[#allocation3 + $0x90] sm:$0xf]
        %v1088 = vld [vmem:[#allocation3 + $0x94] sm:$0xf]
        %v1089 = vld [vmem:[#allocation3 + $0x98] sm:$0xf]
        %v1090 = vld [vmem:[#allocation3 + $0x9c] sm:$0xf]
        %v1091 = vld [vmem:[#allocation3 + $0xa0] sm:$0xf]
        %v1092 = vld [vmem:[#allocation3 + $0xa4] sm:$0xf]
        %v1093 = vld [vmem:[#allocation3 + $0xa8] sm:$0xf]
        %v1094 = vld [vmem:[#allocation3 + $0xac] sm:$0xf]
        %v1095 = vld [vmem:[#allocation3 + $0xb0] sm:$0xf]
        %v1096 = vld [vmem:[#allocation3 + $0xb4] sm:$0xf]
        %v1097 = vld [vmem:[#allocation3 + $0xb8] sm:$0xf]
        %v1098 = vld [vmem:[#allocation3 + $0xbc] sm:$0xf]
        %v1099 = vld [vmem:[#allocation3 + $0xc0] sm:$0xf]
        %v1100 = vld [vmem:[#allocation3 + $0xc4] sm:$0xf]
        %v1101 = vld [vmem:[#allocation3 + $0xc8] sm:$0xf]
        %v1102 = vld [vmem:[#allocation3 + $0xcc] sm:$0xf]
        %v1103 = vld [vmem:[#allocation3 + $0xd0] sm:$0xf]
        %v1104 = vld [vmem:[#allocation3 + $0xd4] sm:$0xf]
        %v1105 = vld [vmem:[#allocation3 + $0xd8] sm:$0xf]
        %v1106 = vld [vmem:[#allocation3 + $0xdc] sm:$0xf]
        %v1107 = vld [vmem:[#allocation3 + $0xe0] sm:$0xf]
        %v1108 = vld [vmem:[#allocation3 + $0xe4] sm:$0xf]
        %v1109 = vld [vmem:[#allocation3 + $0xe8] sm:$0xf]
        %v1110 = vld [vmem:[#allocation3 + $0xec] sm:$0xf]
        %v1111 = vld [vmem:[#allocation3 + $0xf0] sm:$0xf]
        %v1112 = vld [vmem:[#allocation3 + $0xf4] sm:$0xf]
        %v1113 = vld [vmem:[#allocation3 + $0xf8] sm:$0xf]
        %v1114 = vld [vmem:[#allocation3 + $0xfc] sm:$0xf]
        %v1115 = vld [vmem:[#allocation3 + $0x100] sm:$0xf]
        %v1116 = vld [vmem:[#allocation3 + $0x104] sm:$0xf]
        %v1117 = vld [vmem:[#allocation3 + $0x108] sm:$0xf]
        %v1118 = vld [vmem:[#allocation3 + $0x10c] sm:$0xf]
        %v1119 = vld [vmem:[#allocation3 + $0x110] sm:$0xf]
        %v1120 = vld [vmem:[#allocation3 + $0x114] sm:$0xf]
        %v1121 = vld [vmem:[#allocation3 + $0x118] sm:$0xf]
        %v1122 = vld [vmem:[#allocation3 + $0x11c] sm:$0xf]
        %v1123 = vld [vmem:[#allocation3 + $0x120] sm:$0xf]
        %v1124 = vld [vmem:[#allocation3 + $0x124] sm:$0xf]
        %v1125 = vld [vmem:[#allocation3 + $0x128] sm:$0xf]
        %v1126 = vld [vmem:[#allocation3 + $0x12c] sm:$0xf]
        %v1127 = vld [vmem:[#allocation3 + $0x130] sm:$0xf]
        %v1128 = vld [vmem:[#allocation3 + $0x134] sm:$0xf]
        %v1129 = vld [vmem:[#allocation3 + $0x138] sm:$0xf]
        %v1130 = vld [vmem:[#allocation3 + $0x13c] sm:$0xf]
        %v1131 = vld [vmem:[#allocation3 + $0x140] sm:$0xf]
        %v1132 = vld [vmem:[#allocation3 + $0x144] sm:$0xf]
        %v1133 = vld [vmem:[#allocation3 + $0x148] sm:$0xf]
        %v1134 = vld [vmem:[#allocation3 + $0x14c] sm:$0xf]
        %v1135 = vld [vmem:[#allocation3 + $0x150] sm:$0xf]
        %v1136 = vld [vmem:[#allocation3 + $0x154] sm:$0xf]
        %v1137 = vld [vmem:[#allocation3 + $0x158] sm:$0xf]
        %v1138 = vld [vmem:[#allocation3 + $0x15c] sm:$0xf]
        %v1139 = vld [vmem:[#allocation3 + $0x160] sm:$0xf]
        %v1140 = vld [vmem:[#allocation3 + $0x164] sm:$0xf]
        %v1141 = vld [vmem:[#allocation3 + $0x168] sm:$0xf]
        %v1142 = vld [vmem:[#allocation3 + $0x16c] sm:$0xf]
        %v1143 = vld [vmem:[#allocation3 + $0x170] sm:$0xf]
        %v1144 = vld [vmem:[#allocation3 + $0x174] sm:$0xf]
        %v1145 = vld [vmem:[#allocation3 + $0x178] sm:$0xf]
        %v1146 = vld [vmem:[#allocation3 + $0x17c] sm:$0xf]
        %v1147 = vld [vmem:[#allocation3 + $0x180] sm:$0xf]
        %v1148 = vld [vmem:[#allocation3 + $0x184] sm:$0xf]
        %v1149 = vld [vmem:[#allocation3 + $0x188] sm:$0xf]
        %v1150 = vld [vmem:[#allocation3 + $0x18c] sm:$0xf]
        %v1151 = vld [vmem:[#allocation3 + $0x190] sm:$0xf]
        %v1152 = vld [vmem:[#allocation3 + $0x194] sm:$0xf]
        %v1153 = vld [vmem:[#allocation3 + $0x198] sm:$0xf]
        %v1154 = vld [vmem:[#allocation3 + $0x19c] sm:$0xf]
        %v1155 = vld [vmem:[#allocation3 + $0x1a0] sm:$0xf]
        %v1156 = vld [vmem:[#allocation3 + $0x1a4] sm:$0xf]
        %v1157 = vld [vmem:[#allocation3 + $0x1a8] sm:$0xf]
        %v1158 = vld [vmem:[#allocation3 + $0x1ac] sm:$0xf]
        %v1159 = vld [vmem:[#allocation3 + $0x1b0] sm:$0xf]
        %v1160 = vld [vmem:[#allocation3 + $0x1b4] sm:$0xf]
        %v1161 = vld [vmem:[#allocation3 + $0x1b8] sm:$0xf]
        %v1162 = vld [vmem:[#allocation3 + $0x1bc] sm:$0xf]
        %v1163 = vld [vmem:[#allocation3 + $0x1c0] sm:$0xf]
        %v1164 = vld [vmem:[#allocation3 + $0x1c4] sm:$0xf]
        %v1165 = vld [vmem:[#allocation3 + $0x1c8] sm:$0xf]
        %v1166 = vld [vmem:[#allocation3 + $0x1cc] sm:$0xf]
        %v1167 = vld [vmem:[#allocation3 + $0x1d0] sm:$0xf]
        %v1168 = vld [vmem:[#allocation3 + $0x1d4] sm:$0xf]
        %v1169 = vld [vmem:[#allocation3 + $0x1d8] sm:$0xf]
        %v1170 = vld [vmem:[#allocation3 + $0x1dc] sm:$0xf]
        %v1171 = vld [vmem:[#allocation3 + $0x1e0] sm:$0xf]
        %v1172 = vld [vmem:[#allocation3 + $0x1e4] sm:$0xf]
        %v1173 = vld [vmem:[#allocation3 + $0x1e8] sm:$0xf]
        %v1174 = vld [vmem:[#allocation3 + $0x1ec] sm:$0xf]
        %v1175 = vld [vmem:[#allocation3 + $0x1f0] sm:$0xf]
        %v1176 = vld [vmem:[#allocation3 + $0x1f4] sm:$0xf]
        %v1177 = vld [vmem:[#allocation3 + $0x1f8] sm:$0xf]
        %v1178 = vld [vmem:[#allocation3 + $0x1fc] sm:$0xf]
        %v1179 = vld [vmem:[#allocation3 + $0x200] sm:$0xf]
        %v1180 = vld [vmem:[#allocation3 + $0x204] sm:$0xf]
        %v1181 = vld [vmem:[#allocation3 + $0x208] sm:$0xf]
        %v1182 = vld [vmem:[#allocation3 + $0x20c] sm:$0xf]
        %v1183 = vld [vmem:[#allocation3 + $0x210] sm:$0xf]
        %v1184 = vld [vmem:[#allocation3 + $0x214] sm:$0xf]
        %v1185 = vld [vmem:[#allocation3 + $0x218] sm:$0xf]
        %v1186 = vld [vmem:[#allocation3 + $0x21c] sm:$0xf]
        %v1187 = vld [vmem:[#allocation3 + $0x220] sm:$0xf]
        %v1188 = vld [vmem:[#allocation3 + $0x224] sm:$0xf]
        %v1189 = vld [vmem:[#allocation3 + $0x228] sm:$0xf]
        %v1190 = vld [vmem:[#allocation3 + $0x22c] sm:$0xf]
        %v1191 = vld [vmem:[#allocation3 + $0x230] sm:$0xf]
        %v1192 = vld [vmem:[#allocation3 + $0x234] sm:$0xf]
        %v1193 = vld [vmem:[#allocation3 + $0x238] sm:$0xf]
        %v1194 = vld [vmem:[#allocation3 + $0x23c] sm:$0xf]
        %v1195 = vld [vmem:[#allocation3 + $0x240] sm:$0xf]
        %v1196 = vld [vmem:[#allocation3 + $0x244] sm:$0xf]
        %v1197 = vld [vmem:[#allocation3 + $0x248] sm:$0xf]
        %v1198 = vld [vmem:[#allocation3 + $0x24c] sm:$0xf]
        %v1199 = vld [vmem:[#allocation3 + $0x250] sm:$0xf]
        %v1200 = vld [vmem:[#allocation3 + $0x254] sm:$0xf]
        %v1201 = vld [vmem:[#allocation3 + $0x258] sm:$0xf]
        %v1202 = vld [vmem:[#allocation3 + $0x25c] sm:$0xf]
        %v1203 = vld [vmem:[#allocation3 + $0x260] sm:$0xf]
        %v1204 = vld [vmem:[#allocation3 + $0x264] sm:$0xf]
        %v1205 = vld [vmem:[#allocation3 + $0x268] sm:$0xf]
        %v1206 = vld [vmem:[#allocation3 + $0x26c] sm:$0xf]
        %v1207 = vld [vmem:[#allocation3 + $0x270] sm:$0xf]
        %v1208 = vld [vmem:[#allocation3 + $0x274] sm:$0xf]
        %v1209 = vld [vmem:[#allocation3 + $0x278] sm:$0xf]
        %v1210 = vld [vmem:[#allocation3 + $0x27c] sm:$0xf]
        %v1211 = vld [vmem:[#allocation3 + $0x280] sm:$0xf]
        %v1212 = vld [vmem:[#allocation3 + $0x284] sm:$0xf]
        %v1213 = vld [vmem:[#allocation3 + $0x288] sm:$0xf]
        %v1214 = vld [vmem:[#allocation3 + $0x28c] sm:$0xf]
        %v1215 = vld [vmem:[#allocation3 + $0x290] sm:$0xf]
        %v1216 = vld [vmem:[#allocation3 + $0x294] sm:$0xf]
        %v1217 = vld [vmem:[#allocation3 + $0x298] sm:$0xf]
        %v1218 = vld [vmem:[#allocation3 + $0x29c] sm:$0xf]
        %v1219 = vld [vmem:[#allocation3 + $0x2a0] sm:$0xf]
        %v1220 = vld [vmem:[#allocation3 + $0x2a4] sm:$0xf]
        %v1221 = vld [vmem:[#allocation3 + $0x2a8] sm:$0xf]
        %v1222 = vld [vmem:[#allocation3 + $0x2ac] sm:$0xf]
        %v1223 = vld [vmem:[#allocation3 + $0x2b0] sm:$0xf]
        %v1224 = vld [vmem:[#allocation3 + $0x2b4] sm:$0xf]
        %v1225 = vld [vmem:[#allocation3 + $0x2b8] sm:$0xf]
        %v1226 = vld [vmem:[#allocation3 + $0x2bc] sm:$0xf]
        %v1227 = vld [vmem:[#allocation3 + $0x2c0] sm:$0xf]
        %v1228 = vld [vmem:[#allocation3 + $0x2c4] sm:$0xf]
        %v1229 = vld [vmem:[#allocation3 + $0x2c8] sm:$0xf]
        %v1230 = vld [vmem:[#allocation3 + $0x2cc] sm:$0xf]
        %v1231 = vld [vmem:[#allocation3 + $0x2d0] sm:$0xf]
        %v1232 = vld [vmem:[#allocation3 + $0x2d4] sm:$0xf]
        %v1233 = vld [vmem:[#allocation3 + $0x2d8] sm:$0xf]
        %v1234 = vld [vmem:[#allocation3 + $0x2dc] sm:$0xf]
        %v1235 = vld [vmem:[#allocation3 + $0x2e0] sm:$0xf]
        %v1236 = vld [vmem:[#allocation3 + $0x2e4] sm:$0xf]
        %v1237 = vld [vmem:[#allocation3 + $0x2e8] sm:$0xf]
        %v1238 = vld [vmem:[#allocation3 + $0x2ec] sm:$0xf]
        %v1239 = vld [vmem:[#allocation3 + $0x2f0] sm:$0xf]
        %v1240 = vld [vmem:[#allocation3 + $0x2f4] sm:$0xf]
        %v1241 = vld [vmem:[#allocation3 + $0x2f8] sm:$0xf]
        %v1242 = vld [vmem:[#allocation3 + $0x2fc] sm:$0xf]
        %v1243 = vld [vmem:[#allocation3 + $0x300] sm:$0xf]
        %v1244 = vld [vmem:[#allocation3 + $0x304] sm:$0xf]
        %v1245 = vld [vmem:[#allocation3 + $0x308] sm:$0xf]
        %v1246 = vld [vmem:[#allocation3 + $0x30c] sm:$0xf]
        %v1247 = vld [vmem:[#allocation3 + $0x310] sm:$0xf]
        %v1248 = vld [vmem:[#allocation3 + $0x314] sm:$0xf]
        %v1249 = vld [vmem:[#allocation3 + $0x318] sm:$0xf]
        %v1250 = vld [vmem:[#allocation3 + $0x31c] sm:$0xf]
        %v1251 = vld [vmem:[#allocation3 + $0x320] sm:$0xf]
        %v1252 = vld [vmem:[#allocation3 + $0x324] sm:$0xf]
        %v1253 = vld [vmem:[#allocation3 + $0x328] sm:$0xf]
        %v1254 = vld [vmem:[#allocation3 + $0x32c] sm:$0xf]
        %v1255 = vld [vmem:[#allocation3 + $0x330] sm:$0xf]
        %v1256 = vld [vmem:[#allocation3 + $0x334] sm:$0xf]
        %v1257 = vld [vmem:[#allocation3 + $0x338] sm:$0xf]
        %v1258 = vld [vmem:[#allocation3 + $0x33c] sm:$0xf]
        %v1259 = vld [vmem:[#allocation3 + $0x340] sm:$0xf]
        %v1260 = vld [vmem:[#allocation3 + $0x344] sm:$0xf]
        %v1261 = vld [vmem:[#allocation3 + $0x348] sm:$0xf]
        %v1262 = vld [vmem:[#allocation3 + $0x34c] sm:$0xf]
        %v1263 = vld [vmem:[#allocation3 + $0x350] sm:$0xf]
        %v1264 = vld [vmem:[#allocation3 + $0x354] sm:$0xf]
        %v1265 = vld [vmem:[#allocation3 + $0x358] sm:$0xf]
        %v1266 = vld [vmem:[#allocation3 + $0x35c] sm:$0xf]
        %v1267 = vld [vmem:[#allocation3 + $0x360] sm:$0xf]
        %v1268 = vld [vmem:[#allocation3 + $0x364] sm:$0xf]
        %v1269 = vld [vmem:[#allocation3 + $0x368] sm:$0xf]
        %v1270 = vld [vmem:[#allocation3 + $0x36c] sm:$0xf]
        %v1271 = vld [vmem:[#allocation3 + $0x370] sm:$0xf]
        %v1272 = vld [vmem:[#allocation3 + $0x374] sm:$0xf]
        %v1273 = vld [vmem:[#allocation3 + $0x378] sm:$0xf]
        %v1274 = vld [vmem:[#allocation3 + $0x37c] sm:$0xf]
        %v1275 = vld [vmem:[#allocation3 + $0x380] sm:$0xf]
        %v1276 = vld [vmem:[#allocation3 + $0x384] sm:$0xf]
        %v1277 = vld [vmem:[#allocation3 + $0x388] sm:$0xf]
        %v1278 = vld [vmem:[#allocation3 + $0x38c] sm:$0xf]
        %v1279 = vld [vmem:[#allocation3 + $0x390] sm:$0xf]
        %v1280 = vld [vmem:[#allocation3 + $0x394] sm:$0xf]
        %v1281 = vld [vmem:[#allocation3 + $0x398] sm:$0xf]
        %v1282 = vld [vmem:[#allocation3 + $0x39c] sm:$0xf]
        %v1283 = vld [vmem:[#allocation3 + $0x3a0] sm:$0xf]
        %v1284 = vld [vmem:[#allocation3 + $0x3a4] sm:$0xf]
        %v1285 = vld [vmem:[#allocation3 + $0x3a8] sm:$0xf]
        %v1286 = vld [vmem:[#allocation3 + $0x3ac] sm:$0xf]
        %v1287 = vld [vmem:[#allocation3 + $0x3b0] sm:$0xf]
        %v1288 = vld [vmem:[#allocation3 + $0x3b4] sm:$0xf]
        %v1289 = vld [vmem:[#allocation3 + $0x3b8] sm:$0xf]
        %v1290 = vld [vmem:[#allocation3 + $0x3bc] sm:$0xf]
        %v1291 = vld [vmem:[#allocation3 + $0x3c0] sm:$0xf]
        %v1292 = vld [vmem:[#allocation3 + $0x3c4] sm:$0xf]
        %v1293 = vld [vmem:[#allocation3 + $0x3c8] sm:$0xf]
        %v1294 = vld [vmem:[#allocation3 + $0x3cc] sm:$0xf]
        %v1295 = vld [vmem:[#allocation3 + $0x3d0] sm:$0xf]
        %v1296 = vld [vmem:[#allocation3 + $0x3d4] sm:$0xf]
        %v1297 = vld [vmem:[#allocation3 + $0x3d8] sm:$0xf]
        %v1298 = vld [vmem:[#allocation3 + $0x3dc] sm:$0xf]
        %v1299 = vld [vmem:[#allocation3 + $0x3e0] sm:$0xf]
        %v1300 = vld [vmem:[#allocation3 + $0x3e4] sm:$0xf]
        %v1301 = vld [vmem:[#allocation3 + $0x3e8] sm:$0xf]
        %v1302 = vld [vmem:[#allocation3 + $0x3ec] sm:$0xf]
        %v1303 = vld [vmem:[#allocation3 + $0x3f0] sm:$0xf]
        %v1304 = vld [vmem:[#allocation3 + $0x3f4] sm:$0xf]
        %v1305 = vld [vmem:[#allocation3 + $0x3f8] sm:$0xf]
        %v1306 = vld [vmem:[#allocation3 + $0x3fc] sm:$0xf]
        %v1307 = vld [vmem:[#allocation3 + $0x400] sm:$0xf]
        %v1308 = vld [vmem:[#allocation3 + $0x404] sm:$0xf]
        %v1309 = vld [vmem:[#allocation3 + $0x408] sm:$0xf]
        %v1310 = vld [vmem:[#allocation3 + $0x40c] sm:$0xf]
        %v1311 = vld [vmem:[#allocation3 + $0x410] sm:$0xf]
        %v1312 = vld [vmem:[#allocation3 + $0x414] sm:$0xf]
        %v1313 = vld [vmem:[#allocation3 + $0x418] sm:$0xf]
        %v1314 = vld [vmem:[#allocation3 + $0x41c] sm:$0xf]
        %v1315 = vld [vmem:[#allocation3 + $0x420] sm:$0xf]
        %v1316 = vld [vmem:[#allocation3 + $0x424] sm:$0xf]
        %v1317 = vld [vmem:[#allocation3 + $0x428] sm:$0xf]
        %v1318 = vld [vmem:[#allocation3 + $0x42c] sm:$0xf]
        %v1319 = vld [vmem:[#allocation3 + $0x430] sm:$0xf]
        %v1320 = vld [vmem:[#allocation3 + $0x434] sm:$0xf]
        %v1321 = vld [vmem:[#allocation3 + $0x438] sm:$0xf]
        %v1322 = vld [vmem:[#allocation3 + $0x43c] sm:$0xf]
        %v1323 = vld [vmem:[#allocation3 + $0x440] sm:$0xf]
        %v1324 = vld [vmem:[#allocation3 + $0x444] sm:$0xf]
        %v1325 = vld [vmem:[#allocation3 + $0x448] sm:$0xf]
        %v1326 = vld [vmem:[#allocation3 + $0x44c] sm:$0xf]
        %v1327 = vld [vmem:[#allocation3 + $0x450] sm:$0xf]
        %v1328 = vld [vmem:[#allocation3 + $0x454] sm:$0xf]
        %v1329 = vld [vmem:[#allocation3 + $0x458] sm:$0xf]
        %v1330 = vld [vmem:[#allocation3 + $0x45c] sm:$0xf]
        %v1331 = vld [vmem:[#allocation3 + $0x460] sm:$0xf]
        %v1332 = vld [vmem:[#allocation3 + $0x464] sm:$0xf]
        %v1333 = vld [vmem:[#allocation3 + $0x468] sm:$0xf]
        %v1334 = vld [vmem:[#allocation3 + $0x46c] sm:$0xf]
        %v1335 = vld [vmem:[#allocation3 + $0x470] sm:$0xf]
        %v1336 = vld [vmem:[#allocation3 + $0x474] sm:$0xf]
        %v1337 = vld [vmem:[#allocation3 + $0x478] sm:$0xf]
        %v1338 = vld [vmem:[#allocation3 + $0x47c] sm:$0xf]
        %v1627 = vunpack.c.l.b16 %v1051
        %v1628 = vunpack.c.l.b16 %v1052
        %v1629 = vunpack.c.l.b16 %v1053
        %v1630 = vunpack.c.l.b16 %v1054
        %v1631 = vunpack.c.l.b16 %v1055
        %v1632 = vunpack.c.l.b16 %v1056
        %v1633 = vunpack.c.l.b16 %v1057
        %v1634 = vunpack.c.l.b16 %v1058
        %v1635 = vunpack.c.l.b16 %v1059
        %v1636 = vunpack.c.l.b16 %v1060
        %v1637 = vunpack.c.l.b16 %v1061
        %v1638 = vunpack.c.l.b16 %v1062
        %v1639 = vunpack.c.l.b16 %v1063
        %v1640 = vunpack.c.l.b16 %v1064
        %v1641 = vunpack.c.l.b16 %v1065
        %v1642 = vunpack.c.l.b16 %v1066
        %v1643 = vunpack.c.l.b16 %v1067
        %v1644 = vunpack.c.l.b16 %v1068
        %v1645 = vunpack.c.l.b16 %v1069
        %v1646 = vunpack.c.l.b16 %v1070
        %v1647 = vunpack.c.l.b16 %v1071
        %v1648 = vunpack.c.l.b16 %v1072
        %v1649 = vunpack.c.l.b16 %v1073
        %v1650 = vunpack.c.l.b16 %v1074
        %v1651 = vunpack.c.l.b16 %v1075
        %v1652 = vunpack.c.l.b16 %v1076
        %v1653 = vunpack.c.l.b16 %v1077
        %v1654 = vunpack.c.l.b16 %v1078
        %v1655 = vunpack.c.l.b16 %v1079
        %v1656 = vunpack.c.l.b16 %v1080
        %v1657 = vunpack.c.l.b16 %v1081
        %v1658 = vunpack.c.l.b16 %v1082
        %v1659 = vunpack.c.l.b16 %v1083
        %v1660 = vunpack.c.l.b16 %v1084
        %v1661 = vunpack.c.l.b16 %v1085
        %v1662 = vunpack.c.l.b16 %v1086
        %v1663 = vunpack.c.l.b16 %v1087
        %v1664 = vunpack.c.l.b16 %v1088
        %v1665 = vunpack.c.l.b16 %v1089
        %v1666 = vunpack.c.l.b16 %v1090
        %v1667 = vunpack.c.l.b16 %v1091
        %v1668 = vunpack.c.l.b16 %v1092
        %v1669 = vunpack.c.l.b16 %v1093
        %v1670 = vunpack.c.l.b16 %v1094
        %v1671 = vunpack.c.l.b16 %v1095
        %v1672 = vunpack.c.l.b16 %v1096
        %v1673 = vunpack.c.l.b16 %v1097
        %v1674 = vunpack.c.l.b16 %v1098
        %v1675 = vunpack.c.l.b16 %v1099
        %v1676 = vunpack.c.l.b16 %v1100
        %v1677 = vunpack.c.l.b16 %v1101
        %v1678 = vunpack.c.l.b16 %v1102
        %v1679 = vunpack.c.l.b16 %v1103
        %v1680 = vunpack.c.l.b16 %v1104
        %v1681 = vunpack.c.l.b16 %v1105
        %v1682 = vunpack.c.l.b16 %v1106
        %v1683 = vunpack.c.l.b16 %v1107
        %v1684 = vunpack.c.l.b16 %v1108
        %v1685 = vunpack.c.l.b16 %v1109
        %v1686 = vunpack.c.l.b16 %v1110
        %v1687 = vunpack.c.l.b16 %v1111
        %v1688 = vunpack.c.l.b16 %v1112
        %v1689 = vunpack.c.l.b16 %v1113
        %v1690 = vunpack.c.l.b16 %v1114
        %v1691 = vunpack.c.l.b16 %v1115
        %v1692 = vunpack.c.l.b16 %v1116
        %v1693 = vunpack.c.l.b16 %v1117
        %v1694 = vunpack.c.l.b16 %v1118
        %v1695 = vunpack.c.l.b16 %v1119
        %v1696 = vunpack.c.l.b16 %v1120
        %v1697 = vunpack.c.l.b16 %v1121
        %v1698 = vunpack.c.l.b16 %v1122
        %v1699 = vunpack.c.l.b16 %v1123
        %v1700 = vunpack.c.l.b16 %v1124
        %v1701 = vunpack.c.l.b16 %v1125
        %v1702 = vunpack.c.l.b16 %v1126
        %v1703 = vunpack.c.l.b16 %v1127
        %v1704 = vunpack.c.l.b16 %v1128
        %v1705 = vunpack.c.l.b16 %v1129
        %v1706 = vunpack.c.l.b16 %v1130
        %v1707 = vunpack.c.l.b16 %v1131
        %v1708 = vunpack.c.l.b16 %v1132
        %v1709 = vunpack.c.l.b16 %v1133
        %v1710 = vunpack.c.l.b16 %v1134
        %v1711 = vunpack.c.l.b16 %v1135
        %v1712 = vunpack.c.l.b16 %v1136
        %v1713 = vunpack.c.l.b16 %v1137
        %v1714 = vunpack.c.l.b16 %v1138
        %v1715 = vunpack.c.l.b16 %v1139
        %v1716 = vunpack.c.l.b16 %v1140
        %v1717 = vunpack.c.l.b16 %v1141
        %v1718 = vunpack.c.l.b16 %v1142
        %v1719 = vunpack.c.l.b16 %v1143
        %v1720 = vunpack.c.l.b16 %v1144
        %v1721 = vunpack.c.l.b16 %v1145
        %v1722 = vunpack.c.l.b16 %v1146
        %v1723 = vunpack.c.l.b16 %v1147
        %v1724 = vunpack.c.l.b16 %v1148
        %v1725 = vunpack.c.l.b16 %v1149
        %v1726 = vunpack.c.l.b16 %v1150
        %v1727 = vunpack.c.l.b16 %v1151
        %v1728 = vunpack.c.l.b16 %v1152
        %v1729 = vunpack.c.l.b16 %v1153
        %v1730 = vunpack.c.l.b16 %v1154
        %v1731 = vunpack.c.l.b16 %v1155
        %v1732 = vunpack.c.l.b16 %v1156
        %v1733 = vunpack.c.l.b16 %v1157
        %v1734 = vunpack.c.l.b16 %v1158
        %v1735 = vunpack.c.l.b16 %v1159
        %v1736 = vunpack.c.l.b16 %v1160
        %v1737 = vunpack.c.l.b16 %v1161
        %v1738 = vunpack.c.l.b16 %v1162
        %v1739 = vunpack.c.l.b16 %v1163
        %v1740 = vunpack.c.l.b16 %v1164
        %v1741 = vunpack.c.l.b16 %v1165
        %v1742 = vunpack.c.l.b16 %v1166
        %v1743 = vunpack.c.l.b16 %v1167
        %v1744 = vunpack.c.l.b16 %v1168
        %v1745 = vunpack.c.l.b16 %v1169
        %v1746 = vunpack.c.l.b16 %v1170
        %v1747 = vunpack.c.l.b16 %v1171
        %v1748 = vunpack.c.l.b16 %v1172
        %v1749 = vunpack.c.l.b16 %v1173
        %v1750 = vunpack.c.l.b16 %v1174
        %v1751 = vunpack.c.l.b16 %v1175
        %v1752 = vunpack.c.l.b16 %v1176
        %v1753 = vunpack.c.l.b16 %v1177
        %v1754 = vunpack.c.l.b16 %v1178
        %v1755 = vunpack.c.l.b16 %v1179
        %v1756 = vunpack.c.l.b16 %v1180
        %v1757 = vunpack.c.l.b16 %v1181
        %v1758 = vunpack.c.l.b16 %v1182
        %v1759 = vunpack.c.l.b16 %v1183
        %v1760 = vunpack.c.l.b16 %v1184
        %v1761 = vunpack.c.l.b16 %v1185
        %v1762 = vunpack.c.l.b16 %v1186
        %v1763 = vunpack.c.l.b16 %v1187
        %v1764 = vunpack.c.l.b16 %v1188
        %v1765 = vunpack.c.l.b16 %v1189
        %v1766 = vunpack.c.l.b16 %v1190
        %v1767 = vunpack.c.l.b16 %v1191
        %v1768 = vunpack.c.l.b16 %v1192
        %v1769 = vunpack.c.l.b16 %v1193
        %v1770 = vunpack.c.l.b16 %v1194
        %v1771 = vunpack.c.l.b16 %v1195
        %v1772 = vunpack.c.l.b16 %v1196
        %v1773 = vunpack.c.l.b16 %v1197
        %v1774 = vunpack.c.l.b16 %v1198
        %v1775 = vunpack.c.l.b16 %v1199
        %v1776 = vunpack.c.l.b16 %v1200
        %v1777 = vunpack.c.l.b16 %v1201
        %v1778 = vunpack.c.l.b16 %v1202
        %v1779 = vunpack.c.l.b16 %v1203
        %v1780 = vunpack.c.l.b16 %v1204
        %v1781 = vunpack.c.l.b16 %v1205
        %v1782 = vunpack.c.l.b16 %v1206
        %v1783 = vunpack.c.l.b16 %v1207
        %v1784 = vunpack.c.l.b16 %v1208
        %v1785 = vunpack.c.l.b16 %v1209
        %v1786 = vunpack.c.l.b16 %v1210
        %v1787 = vunpack.c.l.b16 %v1211
        %v1788 = vunpack.c.l.b16 %v1212
        %v1789 = vunpack.c.l.b16 %v1213
        %v1790 = vunpack.c.l.b16 %v1214
        %v1791 = vunpack.c.l.b16 %v1215
        %v1792 = vunpack.c.l.b16 %v1216
        %v1793 = vunpack.c.l.b16 %v1217
        %v1794 = vunpack.c.l.b16 %v1218
        %v1795 = vunpack.c.l.b16 %v1219
        %v1796 = vunpack.c.l.b16 %v1220
        %v1797 = vunpack.c.l.b16 %v1221
        %v1798 = vunpack.c.l.b16 %v1222
        %v1799 = vunpack.c.l.b16 %v1223
        %v1800 = vunpack.c.l.b16 %v1224
        %v1801 = vunpack.c.l.b16 %v1225
        %v1802 = vunpack.c.l.b16 %v1226
        %v1803 = vunpack.c.l.b16 %v1227
        %v1804 = vunpack.c.l.b16 %v1228
        %v1805 = vunpack.c.l.b16 %v1229
        %v1806 = vunpack.c.l.b16 %v1230
        %v1807 = vunpack.c.l.b16 %v1231
        %v1808 = vunpack.c.l.b16 %v1232
        %v1809 = vunpack.c.l.b16 %v1233
        %v1810 = vunpack.c.l.b16 %v1234
        %v1811 = vunpack.c.l.b16 %v1235
        %v1812 = vunpack.c.l.b16 %v1236
        %v1813 = vunpack.c.l.b16 %v1237
        %v1814 = vunpack.c.l.b16 %v1238
        %v1815 = vunpack.c.l.b16 %v1239
        %v1816 = vunpack.c.l.b16 %v1240
        %v1817 = vunpack.c.l.b16 %v1241
        %v1818 = vunpack.c.l.b16 %v1242
        %v1819 = vunpack.c.l.b16 %v1243
        %v1820 = vunpack.c.l.b16 %v1244
        %v1821 = vunpack.c.l.b16 %v1245
        %v1822 = vunpack.c.l.b16 %v1246
        %v1823 = vunpack.c.l.b16 %v1247
        %v1824 = vunpack.c.l.b16 %v1248
        %v1825 = vunpack.c.l.b16 %v1249
        %v1826 = vunpack.c.l.b16 %v1250
        %v1827 = vunpack.c.l.b16 %v1251
        %v1828 = vunpack.c.l.b16 %v1252
        %v1829 = vunpack.c.l.b16 %v1253
        %v1830 = vunpack.c.l.b16 %v1254
        %v1831 = vunpack.c.l.b16 %v1255
        %v1832 = vunpack.c.l.b16 %v1256
        %v1833 = vunpack.c.l.b16 %v1257
        %v1834 = vunpack.c.l.b16 %v1258
        %v1835 = vunpack.c.l.b16 %v1259
        %v1836 = vunpack.c.l.b16 %v1260
        %v1837 = vunpack.c.l.b16 %v1261
        %v1838 = vunpack.c.l.b16 %v1262
        %v1839 = vunpack.c.l.b16 %v1263
        %v1840 = vunpack.c.l.b16 %v1264
        %v1841 = vunpack.c.l.b16 %v1265
        %v1842 = vunpack.c.l.b16 %v1266
        %v1843 = vunpack.c.l.b16 %v1267
        %v1844 = vunpack.c.l.b16 %v1268
        %v1845 = vunpack.c.l.b16 %v1269
        %v1846 = vunpack.c.l.b16 %v1270
        %v1847 = vunpack.c.l.b16 %v1271
        %v1848 = vunpack.c.l.b16 %v1272
        %v1849 = vunpack.c.l.b16 %v1273
        %v1850 = vunpack.c.l.b16 %v1274
        %v1851 = vunpack.c.l.b16 %v1275
        %v1852 = vunpack.c.l.b16 %v1276
        %v1853 = vunpack.c.l.b16 %v1277
        %v1854 = vunpack.c.l.b16 %v1278
        %v1855 = vunpack.c.l.b16 %v1279
        %v1856 = vunpack.c.l.b16 %v1280
        %v1857 = vunpack.c.l.b16 %v1281
        %v1858 = vunpack.c.l.b16 %v1282
        %v1859 = vunpack.c.l.b16 %v1283
        %v1860 = vunpack.c.l.b16 %v1284
        %v1861 = vunpack.c.l.b16 %v1285
        %v1862 = vunpack.c.l.b16 %v1286
        %v1863 = vunpack.c.l.b16 %v1287
        %v1864 = vunpack.c.l.b16 %v1288
        %v1865 = vunpack.c.l.b16 %v1289
        %v1866 = vunpack.c.l.b16 %v1290
        %v1867 = vunpack.c.l.b16 %v1291
        %v1868 = vunpack.c.l.b16 %v1292
        %v1869 = vunpack.c.l.b16 %v1293
        %v1870 = vunpack.c.l.b16 %v1294
        %v1871 = vunpack.c.l.b16 %v1295
        %v1872 = vunpack.c.l.b16 %v1296
        %v1873 = vunpack.c.l.b16 %v1297
        %v1874 = vunpack.c.l.b16 %v1298
        %v1875 = vunpack.c.l.b16 %v1299
        %v1876 = vunpack.c.l.b16 %v1300
        %v1877 = vunpack.c.l.b16 %v1301
        %v1878 = vunpack.c.l.b16 %v1302
        %v1879 = vunpack.c.l.b16 %v1303
        %v1880 = vunpack.c.l.b16 %v1304
        %v1881 = vunpack.c.l.b16 %v1305
        %v1882 = vunpack.c.l.b16 %v1306
        %v1883 = vunpack.c.l.b16 %v1307
        %v1884 = vunpack.c.l.b16 %v1308
        %v1885 = vunpack.c.l.b16 %v1309
        %v1886 = vunpack.c.l.b16 %v1310
        %v1887 = vunpack.c.l.b16 %v1311
        %v1888 = vunpack.c.l.b16 %v1312
        %v1889 = vunpack.c.l.b16 %v1313
        %v1890 = vunpack.c.l.b16 %v1314
        %v1891 = vunpack.c.l.b16 %v1315
        %v1892 = vunpack.c.l.b16 %v1316
        %v1893 = vunpack.c.l.b16 %v1317
        %v1894 = vunpack.c.l.b16 %v1318
        %v1895 = vunpack.c.l.b16 %v1319
        %v1896 = vunpack.c.l.b16 %v1320
        %v1897 = vunpack.c.l.b16 %v1321
        %v1898 = vunpack.c.l.b16 %v1322
        %v1899 = vunpack.c.l.b16 %v1323
        %v1900 = vunpack.c.l.b16 %v1324
        %v1901 = vunpack.c.l.b16 %v1325
        %v1902 = vunpack.c.l.b16 %v1326
        %v1903 = vunpack.c.l.b16 %v1327
        %v1904 = vunpack.c.l.b16 %v1328
        %v1905 = vunpack.c.l.b16 %v1329
        %v1906 = vunpack.c.l.b16 %v1330
        %v1907 = vunpack.c.l.b16 %v1331
        %v1908 = vunpack.c.l.b16 %v1332
        %v1909 = vunpack.c.l.b16 %v1333
        %v1910 = vunpack.c.l.b16 %v1334
        %v1911 = vunpack.c.l.b16 %v1335
        %v1912 = vunpack.c.l.b16 %v1336
        %v1913 = vunpack.c.l.b16 %v1337
        %v1914 = vunpack.c.l.b16 %v1338
        %v1915 = vpack.c.b16 %v1628, %v1627
        %v1916 = vpack.c.b16 %v1630, %v1629
        %v1917 = vpack.c.b16 %v1632, %v1631
        %v1918 = vpack.c.b16 %v1634, %v1633
        %v1919 = vpack.c.b16 %v1636, %v1635
        %v1920 = vpack.c.b16 %v1638, %v1637
        %v1921 = vpack.c.b16 %v1640, %v1639
        %v1922 = vpack.c.b16 %v1642, %v1641
        %v1923 = vpack.c.b16 %v1644, %v1643
        %v1924 = vpack.c.b16 %v1646, %v1645
        %v1925 = vpack.c.b16 %v1648, %v1647
        %v1926 = vpack.c.b16 %v1650, %v1649
        %v1927 = vpack.c.b16 %v1652, %v1651
        %v1928 = vpack.c.b16 %v1654, %v1653
        %v1929 = vpack.c.b16 %v1656, %v1655
        %v1930 = vpack.c.b16 %v1658, %v1657
        %v1931 = vpack.c.b16 %v1660, %v1659
        %v1932 = vpack.c.b16 %v1662, %v1661
        %v1933 = vpack.c.b16 %v1664, %v1663
        %v1934 = vpack.c.b16 %v1666, %v1665
        %v1935 = vpack.c.b16 %v1668, %v1667
        %v1936 = vpack.c.b16 %v1670, %v1669
        %v1937 = vpack.c.b16 %v1672, %v1671
        %v1938 = vpack.c.b16 %v1674, %v1673
        %v1939 = vpack.c.b16 %v1676, %v1675
        %v1940 = vpack.c.b16 %v1678, %v1677
        %v1941 = vpack.c.b16 %v1680, %v1679
        %v1942 = vpack.c.b16 %v1682, %v1681
        %v1943 = vpack.c.b16 %v1684, %v1683
        %v1944 = vpack.c.b16 %v1686, %v1685
        %v1945 = vpack.c.b16 %v1688, %v1687
        %v1946 = vpack.c.b16 %v1690, %v1689
        %v1947 = vpack.c.b16 %v1692, %v1691
        %v1948 = vpack.c.b16 %v1694, %v1693
        %v1949 = vpack.c.b16 %v1696, %v1695
        %v1950 = vpack.c.b16 %v1698, %v1697
        %v1951 = vpack.c.b16 %v1700, %v1699
        %v1952 = vpack.c.b16 %v1702, %v1701
        %v1953 = vpack.c.b16 %v1704, %v1703
        %v1954 = vpack.c.b16 %v1706, %v1705
        %v1955 = vpack.c.b16 %v1708, %v1707
        %v1956 = vpack.c.b16 %v1710, %v1709
        %v1957 = vpack.c.b16 %v1712, %v1711
        %v1958 = vpack.c.b16 %v1714, %v1713
        %v1959 = vpack.c.b16 %v1716, %v1715
        %v1960 = vpack.c.b16 %v1718, %v1717
        %v1961 = vpack.c.b16 %v1720, %v1719
        %v1962 = vpack.c.b16 %v1722, %v1721
        %v1963 = vpack.c.b16 %v1724, %v1723
        %v1964 = vpack.c.b16 %v1726, %v1725
        %v1965 = vpack.c.b16 %v1728, %v1727
        %v1966 = vpack.c.b16 %v1730, %v1729
        %v1967 = vpack.c.b16 %v1732, %v1731
        %v1968 = vpack.c.b16 %v1734, %v1733
        %v1969 = vpack.c.b16 %v1736, %v1735
        %v1970 = vpack.c.b16 %v1738, %v1737
        %v1971 = vpack.c.b16 %v1740, %v1739
        %v1972 = vpack.c.b16 %v1742, %v1741
        %v1973 = vpack.c.b16 %v1744, %v1743
        %v1974 = vpack.c.b16 %v1746, %v1745
        %v1975 = vpack.c.b16 %v1748, %v1747
        %v1976 = vpack.c.b16 %v1750, %v1749
        %v1977 = vpack.c.b16 %v1752, %v1751
        %v1978 = vpack.c.b16 %v1754, %v1753
        %v1979 = vpack.c.b16 %v1756, %v1755
        %v1980 = vpack.c.b16 %v1758, %v1757
        %v1981 = vpack.c.b16 %v1760, %v1759
        %v1982 = vpack.c.b16 %v1762, %v1761
        %v1983 = vpack.c.b16 %v1764, %v1763
        %v1984 = vpack.c.b16 %v1766, %v1765
        %v1985 = vpack.c.b16 %v1768, %v1767
        %v1986 = vpack.c.b16 %v1770, %v1769
        %v1987 = vpack.c.b16 %v1772, %v1771
        %v1988 = vpack.c.b16 %v1774, %v1773
        %v1989 = vpack.c.b16 %v1776, %v1775
        %v1990 = vpack.c.b16 %v1778, %v1777
        %v1991 = vpack.c.b16 %v1780, %v1779
        %v1992 = vpack.c.b16 %v1782, %v1781
        %v1993 = vpack.c.b16 %v1784, %v1783
        %v1994 = vpack.c.b16 %v1786, %v1785
        %v1995 = vpack.c.b16 %v1788, %v1787
        %v1996 = vpack.c.b16 %v1790, %v1789
        %v1997 = vpack.c.b16 %v1792, %v1791
        %v1998 = vpack.c.b16 %v1794, %v1793
        %v1999 = vpack.c.b16 %v1796, %v1795
        %v2000 = vpack.c.b16 %v1798, %v1797
        %v2001 = vpack.c.b16 %v1800, %v1799
        %v2002 = vpack.c.b16 %v1802, %v1801
        %v2003 = vpack.c.b16 %v1804, %v1803
        %v2004 = vpack.c.b16 %v1806, %v1805
        %v2005 = vpack.c.b16 %v1808, %v1807
        %v2006 = vpack.c.b16 %v1810, %v1809
        %v2007 = vpack.c.b16 %v1812, %v1811
        %v2008 = vpack.c.b16 %v1814, %v1813
        %v2009 = vpack.c.b16 %v1816, %v1815
        %v2010 = vpack.c.b16 %v1818, %v1817
        %v2011 = vpack.c.b16 %v1820, %v1819
        %v2012 = vpack.c.b16 %v1822, %v1821
        %v2013 = vpack.c.b16 %v1824, %v1823
        %v2014 = vpack.c.b16 %v1826, %v1825
        %v2015 = vpack.c.b16 %v1828, %v1827
        %v2016 = vpack.c.b16 %v1830, %v1829
        %v2017 = vpack.c.b16 %v1832, %v1831
        %v2018 = vpack.c.b16 %v1834, %v1833
        %v2019 = vpack.c.b16 %v1836, %v1835
        %v2020 = vpack.c.b16 %v1838, %v1837
        %v2021 = vpack.c.b16 %v1840, %v1839
        %v2022 = vpack.c.b16 %v1842, %v1841
        %v2023 = vpack.c.b16 %v1844, %v1843
        %v2024 = vpack.c.b16 %v1846, %v1845
        %v2025 = vpack.c.b16 %v1848, %v1847
        %v2026 = vpack.c.b16 %v1850, %v1849
        %v2027 = vpack.c.b16 %v1852, %v1851
        %v2028 = vpack.c.b16 %v1854, %v1853
        %v2029 = vpack.c.b16 %v1856, %v1855
        %v2030 = vpack.c.b16 %v1858, %v1857
        %v2031 = vpack.c.b16 %v1860, %v1859
        %v2032 = vpack.c.b16 %v1862, %v1861
        %v2033 = vpack.c.b16 %v1864, %v1863
        %v2034 = vpack.c.b16 %v1866, %v1865
        %v2035 = vpack.c.b16 %v1868, %v1867
        %v2036 = vpack.c.b16 %v1870, %v1869
        %v2037 = vpack.c.b16 %v1872, %v1871
        %v2038 = vpack.c.b16 %v1874, %v1873
        %v2039 = vpack.c.b16 %v1876, %v1875
        %v2040 = vpack.c.b16 %v1878, %v1877
        %v2041 = vpack.c.b16 %v1880, %v1879
        %v2042 = vpack.c.b16 %v1882, %v1881
        %v2043 = vpack.c.b16 %v1884, %v1883
        %v2044 = vpack.c.b16 %v1886, %v1885
        %v2045 = vpack.c.b16 %v1888, %v1887
        %v2046 = vpack.c.b16 %v1890, %v1889
        %v2047 = vpack.c.b16 %v1892, %v1891
        %v2048 = vpack.c.b16 %v1894, %v1893
        %v2049 = vpack.c.b16 %v1896, %v1895
        %v2050 = vpack.c.b16 %v1898, %v1897
        %v2051 = vpack.c.b16 %v1900, %v1899
        %v2052 = vpack.c.b16 %v1902, %v1901
        %v2053 = vpack.c.b16 %v1904, %v1903
        %v2054 = vpack.c.b16 %v1906, %v1905
        %v2055 = vpack.c.b16 %v1908, %v1907
        %v2056 = vpack.c.b16 %v1910, %v1909
        %v2057 = vpack.c.b16 %v1912, %v1911
        %v2058 = vpack.c.b16 %v1914, %v1913
        %2203 = vmatprep.subr.bf16.mxu0 0
        %2204 = vmatpush1.bf16.msra.mxu0 %v1915
        %2205 = vmatprep.subr.bf16.mxu0 0
        %2206 = vmatpush1.bf16.msra.mxu0 %v1916
        %2207 = vmatprep.subr.bf16.mxu0 0
        %2208 = vmatpush1.bf16.msra.mxu0 %v1917
        %2209 = vmatprep.subr.bf16.mxu0 0
        %2210 = vmatpush1.bf16.msra.mxu0 %v1918
        %2211 = vmatprep.subr.bf16.mxu0 0
        %2212 = vmatpush1.bf16.msra.mxu0 %v1919
        %2213 = vmatprep.subr.bf16.mxu0 0
        %2214 = vmatpush1.bf16.msra.mxu0 %v1920
        %2215 = vmatprep.subr.bf16.mxu0 0
        %2216 = vmatpush1.bf16.msra.mxu0 %v1921
        %2217 = vmatprep.subr.bf16.mxu0 0
        %2218 = vmatpush1.bf16.msra.mxu0 %v1922
        %2219 = vmatprep.subr.bf16.mxu0 0
        %2220 = vmatpush1.bf16.msra.mxu0 %v1923
        %2221 = vmatprep.subr.bf16.mxu0 0
        %2222 = vmatpush1.bf16.msra.mxu0 %v1924
        %2223 = vmatprep.subr.bf16.mxu0 0
        %2224 = vmatpush1.bf16.msra.mxu0 %v1925
        %2225 = vmatprep.subr.bf16.mxu0 0
        %2226 = vmatpush1.bf16.msra.mxu0 %v1926
        %2227 = vmatprep.subr.bf16.mxu0 0
        %2228 = vmatpush1.bf16.msra.mxu0 %v1927
        %2229 = vmatprep.subr.bf16.mxu0 0
        %2230 = vmatpush1.bf16.msra.mxu0 %v1928
        %2231 = vmatprep.subr.bf16.mxu0 0
        %2232 = vmatpush1.bf16.msra.mxu0 %v1929
        %2233 = vmatprep.subr.bf16.mxu0 0
        %2234 = vmatpush1.bf16.msra.mxu0 %v1930
        %2235 = vmatprep.mubr.bf16.mxu0 %v998
        %2236 = vmatmul.mubr.bf16.gmra.mrb[0].mxu0 %v997
        %v2237 = vpop.f32.mrb[0].mxu0
        %v2238 = vadd.f32 0.0, %v2237
        %v2239 = vpop.f32.mrb[0].mxu0
        %v2240 = vpop.f32.mrb[0].mxu0
        %v2241 = vadd.f32 0.0, %v2240
        %v2242 = vpop.f32.mrb[0].mxu0
        %2243 = vmatprep.mubr.bf16.mxu0 %v1016
        %2244 = vmatmul.mubr.bf16.gmra.mrb[0].mxu0 %v1015
        %v2245 = vpop.f32.mrb[0].mxu0
        %v2246 = vadd.f32 0.0, %v2245
        %v2247 = vpop.f32.mrb[0].mxu0
        %v2248 = vpop.f32.mrb[0].mxu0
        %v2249 = vadd.f32 0.0, %v2248
        %v2250 = vpop.f32.mrb[0].mxu0
        %2251 = vmatprep.mubr.bf16.mxu0 %v1034
        %2252 = vmatmul.mubr.bf16.gmra.mrb[0].mxu0 %v1033
        %v2253 = vpop.f32.mrb[0].mxu0
        %v2254 = vadd.f32 0.0, %v2253
        %v2255 = vpop.f32.mrb[0].mxu0
        %v2256 = vpop.f32.mrb[0].mxu0
        %v2257 = vpop.f32.mrb[0].mxu0
        %2258 = vdwg.mxu0
        %2259 = vmatprep.subr.bf16.mxu0 0
        %2260 = vmatpush1.bf16.msra.mxu0 %v1931
        %2261 = vmatprep.subr.bf16.mxu0 0
        %2262 = vmatpush1.bf16.msra.mxu0 %v1932
        %2263 = vmatprep.subr.bf16.mxu0 0
        %2264 = vmatpush1.bf16.msra.mxu0 %v1933
        %2265 = vmatprep.subr.bf16.mxu0 0
        %2266 = vmatpush1.bf16.msra.mxu0 %v1934
        %2267 = vmatprep.subr.bf16.mxu0 0
        %2268 = vmatpush1.bf16.msra.mxu0 %v1935
        %2269 = vmatprep.subr.bf16.mxu0 0
        %2270 = vmatpush1.bf16.msra.mxu0 %v1936
        %2271 = vmatprep.subr.bf16.mxu0 0
        %2272 = vmatpush1.bf16.msra.mxu0 %v1937
        %2273 = vmatprep.subr.bf16.mxu0 0
        %2274 = vmatpush1.bf16.msra.mxu0 %v1938
        %2275 = vmatprep.subr.bf16.mxu0 0
        %2276 = vmatpush1.bf16.msra.mxu0 %v1939
        %2277 = vmatprep.subr.bf16.mxu0 0
        %2278 = vmatpush1.bf16.msra.mxu0 %v1940
        %2279 = vmatprep.subr.bf16.mxu0 0
        %2280 = vmatpush1.bf16.msra.mxu0 %v1941
        %2281 = vmatprep.subr.bf16.mxu0 0
        %2282 = vmatpush1.bf16.msra.mxu0 %v1942
        %2283 = vmatprep.subr.bf16.mxu0 0
        %2284 = vmatpush1.bf16.msra.mxu0 %v1943
        %2285 = vmatprep.subr.bf16.mxu0 0
        %2286 = vmatpush1.bf16.msra.mxu0 %v1944
        %2287 = vmatprep.subr.bf16.mxu0 0
        %2288 = vmatpush1.bf16.msra.mxu0 %v1945
        %2289 = vmatprep.subr.bf16.mxu0 0
        %2290 = vmatpush1.bf16.msra.mxu0 %v1946
        %2291 = vmatprep.mubr.bf16.mxu0 %v1000
        %2292 = vmatmul.mubr.bf16.gmra.mrb[0].mxu0 %v999
        %v2293 = vpop.f32.mrb[0].mxu0
        %v2294 = vadd.f32 %v2238, %v2293
        %v2295 = vpop.f32.mrb[0].mxu0
        %v2296 = vpop.f32.mrb[0].mxu0
        %v2297 = vadd.f32 %v2241, %v2296
        %v2298 = vpop.f32.mrb[0].mxu0
        %2299 = vmatprep.mubr.bf16.mxu0 %v1018
        %2300 = vmatmul.mubr.bf16.gmra.mrb[0].mxu0 %v1017
        %v2301 = vpop.f32.mrb[0].mxu0
        %v2302 = vadd.f32 %v2246, %v2301
        %v2303 = vpop.f32.mrb[0].mxu0
        %v2304 = vpop.f32.mrb[0].mxu0
        %v2305 = vadd.f32 %v2249, %v2304
        %v2306 = vpop.f32.mrb[0].mxu0
        %2307 = vmatprep.mubr.bf16.mxu0 %v1036
        %2308 = vmatmul.mubr.bf16.gmra.mrb[0].mxu0 %v1035
        %v2309 = vpop.f32.mrb[0].mxu0
        %v2310 = vadd.f32 %v2254, %v2309
        %v2311 = vpop.f32.mrb[0].mxu0
        %v2312 = vpop.f32.mrb[0].mxu0
        %v2313 = vpop.f32.mrb[0].mxu0
        %2314 = vdwg.mxu0
        %2315 = vmatprep.subr.bf16.mxu0 0
        %2316 = vmatpush1.bf16.msra.mxu0 %v1947
        %2317 = vmatprep.subr.bf16.mxu0 0
        %2318 = vmatpush1.bf16.msra.mxu0 %v1948
        %2319 = vmatprep.subr.bf16.mxu0 0
        %2320 = vmatpush1.bf16.msra.mxu0 %v1949
        %2321 = vmatprep.subr.bf16.mxu0 0
        %2322 = vmatpush1.bf16.msra.mxu0 %v1950
        %2323 = vmatprep.subr.bf16.mxu0 0
        %2324 = vmatpush1.bf16.msra.mxu0 %v1951
        %2325 = vmatprep.subr.bf16.mxu0 0
        %2326 = vmatpush1.bf16.msra.mxu0 %v1952
        %2327 = vmatprep.subr.bf16.mxu0 0
        %2328 = vmatpush1.bf16.msra.mxu0 %v1953
        %2329 = vmatprep.subr.bf16.mxu0 0
        %2330 = vmatpush1.bf16.msra.mxu0 %v1954
        %2331 = vmatprep.subr.bf16.mxu0 0
        %2332 = vmatpush1.bf16.msra.mxu0 %v1955
        %2333 = vmatprep.subr.bf16.mxu0 0
        %2334 = vmatpush1.bf16.msra.mxu0 %v1956
        %2335 = vmatprep.subr.bf16.mxu0 0
        %2336 = vmatpush1.bf16.msra.mxu0 %v1957
        %2337 = vmatprep.subr.bf16.mxu0 0
        %2338 = vmatpush1.bf16.msra.mxu0 %v1958
        %2339 = vmatprep.subr.bf16.mxu0 0
        %2340 = vmatpush1.bf16.msra.mxu0 %v1959
        %2341 = vmatprep.subr.bf16.mxu0 0
        %2342 = vmatpush1.bf16.msra.mxu0 %v1960
        %2343 = vmatprep.subr.bf16.mxu0 0
        %2344 = vmatpush1.bf16.msra.mxu0 %v1961
        %2345 = vmatprep.subr.bf16.mxu0 0
        %2346 = vmatpush1.bf16.msra.mxu0 %v1962
        %2347 = vmatprep.mubr.bf16.mxu0 %v1002
        %2348 = vmatmul.mubr.bf16.gmra.mrb[0].mxu0 %v1001
        %v2349 = vpop.f32.mrb[0].mxu0
        %v2350 = vadd.f32 %v2294, %v2349
        %v2351 = vpop.f32.mrb[0].mxu0
        %v2352 = vpop.f32.mrb[0].mxu0
        %v2353 = vadd.f32 %v2297, %v2352
        %v2354 = vpop.f32.mrb[0].mxu0
        %2355 = vmatprep.mubr.bf16.mxu0 %v1020
        %2356 = vmatmul.mubr.bf16.gmra.mrb[0].mxu0 %v1019
        %v2357 = vpop.f32.mrb[0].mxu0
        %v2358 = vadd.f32 %v2302, %v2357
        %v2359 = vpop.f32.mrb[0].mxu0
        %v2360 = vpop.f32.mrb[0].mxu0
        %v2361 = vadd.f32 %v2305, %v2360
        %v2362 = vpop.f32.mrb[0].mxu0
        %2363 = vmatprep.mubr.bf16.mxu0 %v1038
        %2364 = vmatmul.mubr.bf16.gmra.mrb[0].mxu0 %v1037
        %v2365 = vpop.f32.mrb[0].mxu0
        %v2366 = vadd.f32 %v2310, %v2365
        %v2367 = vpop.f32.mrb[0].mxu0
        %v2368 = vpop.f32.mrb[0].mxu0
        %v2369 = vpop.f32.mrb[0].mxu0
        %2370 = vdwg.mxu0
        %2371 = vmatprep.subr.bf16.mxu0 0
        %2372 = vmatpush1.bf16.msra.mxu0 %v1963
        %2373 = vmatprep.subr.bf16.mxu0 0
        %2374 = vmatpush1.bf16.msra.mxu0 %v1964
        %2375 = vmatprep.subr.bf16.mxu0 0
        %2376 = vmatpush1.bf16.msra.mxu0 %v1965
        %2377 = vmatprep.subr.bf16.mxu0 0
        %2378 = vmatpush1.bf16.msra.mxu0 %v1966
        %2379 = vmatprep.subr.bf16.mxu0 0
        %2380 = vmatpush1.bf16.msra.mxu0 %v1967
        %2381 = vmatprep.subr.bf16.mxu0 0
        %2382 = vmatpush1.bf16.msra.mxu0 %v1968
        %2383 = vmatprep.subr.bf16.mxu0 0
        %2384 = vmatpush1.bf16.msra.mxu0 %v1969
        %2385 = vmatprep.subr.bf16.mxu0 0
        %2386 = vmatpush1.bf16.msra.mxu0 %v1970
        %2387 = vmatprep.subr.bf16.mxu0 0
        %2388 = vmatpush1.bf16.msra.mxu0 %v1971
        %2389 = vmatprep.subr.bf16.mxu0 0
        %2390 = vmatpush1.bf16.msra.mxu0 %v1972
        %2391 = vmatprep.subr.bf16.mxu0 0
        %2392 = vmatpush1.bf16.msra.mxu0 %v1973
        %2393 = vmatprep.subr.bf16.mxu0 0
        %2394 = vmatpush1.bf16.msra.mxu0 %v1974
        %2395 = vmatprep.subr.bf16.mxu0 0
        %2396 = vmatpush1.bf16.msra.mxu0 %v1975
        %2397 = vmatprep.subr.bf16.mxu0 0
        %2398 = vmatpush1.bf16.msra.mxu0 %v1976
        %2399 = vmatprep.subr.bf16.mxu0 0
        %2400 = vmatpush1.bf16.msra.mxu0 %v1977
        %2401 = vmatprep.subr.bf16.mxu0 0
        %2402 = vmatpush1.bf16.msra.mxu0 %v1978
        %2403 = vmatprep.mubr.bf16.mxu0 %v1004
        %2404 = vmatmul.mubr.bf16.gmra.mrb[0].mxu0 %v1003
        %v2405 = vpop.f32.mrb[0].mxu0
        %v2406 = vadd.f32 %v2350, %v2405
        %v2407 = vpop.f32.mrb[0].mxu0
        %v2408 = vpop.f32.mrb[0].mxu0
        %v2409 = vadd.f32 %v2353, %v2408
        %v2410 = vpop.f32.mrb[0].mxu0
        %2411 = vmatprep.mubr.bf16.mxu0 %v1022
        %2412 = vmatmul.mubr.bf16.gmra.mrb[0].mxu0 %v1021
        %v2413 = vpop.f32.mrb[0].mxu0
        %v2414 = vadd.f32 %v2358, %v2413
        %v2415 = vpop.f32.mrb[0].mxu0
        %v2416 = vpop.f32.mrb[0].mxu0
        %v2417 = vadd.f32 %v2361, %v2416
        %v2418 = vpop.f32.mrb[0].mxu0
        %2419 = vmatprep.mubr.bf16.mxu0 %v1040
        %2420 = vmatmul.mubr.bf16.gmra.mrb[0].mxu0 %v1039
        %v2421 = vpop.f32.mrb[0].mxu0
        %v2422 = vadd.f32 %v2366, %v2421
        %v2423 = vpop.f32.mrb[0].mxu0
        %v2424 = vpop.f32.mrb[0].mxu0
        %v2425 = vpop.f32.mrb[0].mxu0
        %2426 = vdwg.mxu0
        %2427 = vmatprep.subr.bf16.mxu0 0
        %2428 = vmatpush1.bf16.msra.mxu0 %v1979
        %2429 = vmatprep.subr.bf16.mxu0 0
        %2430 = vmatpush1.bf16.msra.mxu0 %v1980
        %2431 = vmatprep.subr.bf16.mxu0 0
        %2432 = vmatpush1.bf16.msra.mxu0 %v1981
        %2433 = vmatprep.subr.bf16.mxu0 0
        %2434 = vmatpush1.bf16.msra.mxu0 %v1982
        %2435 = vmatprep.subr.bf16.mxu0 0
        %2436 = vmatpush1.bf16.msra.mxu0 %v1983
        %2437 = vmatprep.subr.bf16.mxu0 0
        %2438 = vmatpush1.bf16.msra.mxu0 %v1984
        %2439 = vmatprep.subr.bf16.mxu0 0
        %2440 = vmatpush1.bf16.msra.mxu0 %v1985
        %2441 = vmatprep.subr.bf16.mxu0 0
        %2442 = vmatpush1.bf16.msra.mxu0 %v1986
        %2443 = vmatprep.subr.bf16.mxu0 0
        %2444 = vmatpush1.bf16.msra.mxu0 %v1987
        %2445 = vmatprep.subr.bf16.mxu0 0
        %2446 = vmatpush1.bf16.msra.mxu0 %v1988
        %2447 = vmatprep.subr.bf16.mxu0 0
        %2448 = vmatpush1.bf16.msra.mxu0 %v1989
        %2449 = vmatprep.subr.bf16.mxu0 0
        %2450 = vmatpush1.bf16.msra.mxu0 %v1990
        %2451 = vmatprep.subr.bf16.mxu0 0
        %2452 = vmatpush1.bf16.msra.mxu0 %v1991
        %2453 = vmatprep.subr.bf16.mxu0 0
        %2454 = vmatpush1.bf16.msra.mxu0 %v1992
        %2455 = vmatprep.subr.bf16.mxu0 0
        %2456 = vmatpush1.bf16.msra.mxu0 %v1993
        %2457 = vmatprep.subr.bf16.mxu0 0
        %2458 = vmatpush1.bf16.msra.mxu0 %v1994
        %2459 = vmatprep.mubr.bf16.mxu0 %v1006
        %2460 = vmatmul.mubr.bf16.gmra.mrb[0].mxu0 %v1005
        %v2461 = vpop.f32.mrb[0].mxu0
        %v2462 = vadd.f32 %v2406, %v2461
        %v2463 = vpop.f32.mrb[0].mxu0
        %v2464 = vpop.f32.mrb[0].mxu0
        %v2465 = vadd.f32 %v2409, %v2464
        %v2466 = vpop.f32.mrb[0].mxu0
        %2467 = vmatprep.mubr.bf16.mxu0 %v1024
        %2468 = vmatmul.mubr.bf16.gmra.mrb[0].mxu0 %v1023
        %v2469 = vpop.f32.mrb[0].mxu0
        %v2470 = vadd.f32 %v2414, %v2469
        %v2471 = vpop.f32.mrb[0].mxu0
        %v2472 = vpop.f32.mrb[0].mxu0
        %v2473 = vadd.f32 %v2417, %v2472
        %v2474 = vpop.f32.mrb[0].mxu0
        %2475 = vmatprep.mubr.bf16.mxu0 %v1042
        %2476 = vmatmul.mubr.bf16.gmra.mrb[0].mxu0 %v1041
        %v2477 = vpop.f32.mrb[0].mxu0
        %v2478 = vadd.f32 %v2422, %v2477
        %v2479 = vpop.f32.mrb[0].mxu0
        %v2480 = vpop.f32.mrb[0].mxu0
        %v2481 = vpop.f32.mrb[0].mxu0
        %2482 = vdwg.mxu0
        %2483 = vmatprep.subr.bf16.mxu0 0
        %2484 = vmatpush1.bf16.msra.mxu0 %v1995
        %2485 = vmatprep.subr.bf16.mxu0 0
        %2486 = vmatpush1.bf16.msra.mxu0 %v1996
        %2487 = vmatprep.subr.bf16.mxu0 0
        %2488 = vmatpush1.bf16.msra.mxu0 %v1997
        %2489 = vmatprep.subr.bf16.mxu0 0
        %2490 = vmatpush1.bf16.msra.mxu0 %v1998
        %2491 = vmatprep.subr.bf16.mxu0 0
        %2492 = vmatpush1.bf16.msra.mxu0 %v1999
        %2493 = vmatprep.subr.bf16.mxu0 0
        %2494 = vmatpush1.bf16.msra.mxu0 %v2000
        %2495 = vmatprep.subr.bf16.mxu0 0
        %2496 = vmatpush1.bf16.msra.mxu0 %v2001
        %2497 = vmatprep.subr.bf16.mxu0 0
        %2498 = vmatpush1.bf16.msra.mxu0 %v2002
        %2499 = vmatprep.subr.bf16.mxu0 0
        %2500 = vmatpush1.bf16.msra.mxu0 %v2003
        %2501 = vmatprep.subr.bf16.mxu0 0
        %2502 = vmatpush1.bf16.msra.mxu0 %v2004
        %2503 = vmatprep.subr.bf16.mxu0 0
        %2504 = vmatpush1.bf16.msra.mxu0 %v2005
        %2505 = vmatprep.subr.bf16.mxu0 0
        %2506 = vmatpush1.bf16.msra.mxu0 %v2006
        %2507 = vmatprep.subr.bf16.mxu0 0
        %2508 = vmatpush1.bf16.msra.mxu0 %v2007
        %2509 = vmatprep.subr.bf16.mxu0 0
        %2510 = vmatpush1.bf16.msra.mxu0 %v2008
        %2511 = vmatprep.subr.bf16.mxu0 0
        %2512 = vmatpush1.bf16.msra.mxu0 %v2009
        %2513 = vmatprep.subr.bf16.mxu0 0
        %2514 = vmatpush1.bf16.msra.mxu0 %v2010
        %2515 = vmatprep.mubr.bf16.mxu0 %v1008
        %2516 = vmatmul.mubr.bf16.gmra.mrb[0].mxu0 %v1007
        %v2517 = vpop.f32.mrb[0].mxu0
        %v2518 = vadd.f32 %v2462, %v2517
        %v2519 = vpop.f32.mrb[0].mxu0
        %v2520 = vpop.f32.mrb[0].mxu0
        %v2521 = vadd.f32 %v2465, %v2520
        %v2522 = vpop.f32.mrb[0].mxu0
        %2523 = vmatprep.mubr.bf16.mxu0 %v1026
        %2524 = vmatmul.mubr.bf16.gmra.mrb[0].mxu0 %v1025
        %v2525 = vpop.f32.mrb[0].mxu0
        %v2526 = vadd.f32 %v2470, %v2525
        %v2527 = vpop.f32.mrb[0].mxu0
        %v2528 = vpop.f32.mrb[0].mxu0
        %v2529 = vadd.f32 %v2473, %v2528
        %v2530 = vpop.f32.mrb[0].mxu0
        %2531 = vmatprep.mubr.bf16.mxu0 %v1044
        %2532 = vmatmul.mubr.bf16.gmra.mrb[0].mxu0 %v1043
        %v2533 = vpop.f32.mrb[0].mxu0
        %v2534 = vadd.f32 %v2478, %v2533
        %v2535 = vpop.f32.mrb[0].mxu0
        %v2536 = vpop.f32.mrb[0].mxu0
        %v2537 = vpop.f32.mrb[0].mxu0
        %2538 = vdwg.mxu0
        %2539 = vmatprep.subr.bf16.mxu0 0
        %2540 = vmatpush1.bf16.msra.mxu0 %v2011
        %2541 = vmatprep.subr.bf16.mxu0 0
        %2542 = vmatpush1.bf16.msra.mxu0 %v2012
        %2543 = vmatprep.subr.bf16.mxu0 0
        %2544 = vmatpush1.bf16.msra.mxu0 %v2013
        %2545 = vmatprep.subr.bf16.mxu0 0
        %2546 = vmatpush1.bf16.msra.mxu0 %v2014
        %2547 = vmatprep.subr.bf16.mxu0 0
        %2548 = vmatpush1.bf16.msra.mxu0 %v2015
        %2549 = vmatprep.subr.bf16.mxu0 0
        %2550 = vmatpush1.bf16.msra.mxu0 %v2016
        %2551 = vmatprep.subr.bf16.mxu0 0
        %2552 = vmatpush1.bf16.msra.mxu0 %v2017
        %2553 = vmatprep.subr.bf16.mxu0 0
        %2554 = vmatpush1.bf16.msra.mxu0 %v2018
        %2555 = vmatprep.subr.bf16.mxu0 0
        %2556 = vmatpush1.bf16.msra.mxu0 %v2019
        %2557 = vmatprep.subr.bf16.mxu0 0
        %2558 = vmatpush1.bf16.msra.mxu0 %v2020
        %2559 = vmatprep.subr.bf16.mxu0 0
        %2560 = vmatpush1.bf16.msra.mxu0 %v2021
        %2561 = vmatprep.subr.bf16.mxu0 0
        %2562 = vmatpush1.bf16.msra.mxu0 %v2022
        %2563 = vmatprep.subr.bf16.mxu0 0
        %2564 = vmatpush1.bf16.msra.mxu0 %v2023
        %2565 = vmatprep.subr.bf16.mxu0 0
        %2566 = vmatpush1.bf16.msra.mxu0 %v2024
        %2567 = vmatprep.subr.bf16.mxu0 0
        %2568 = vmatpush1.bf16.msra.mxu0 %v2025
        %2569 = vmatprep.subr.bf16.mxu0 0
        %2570 = vmatpush1.bf16.msra.mxu0 %v2026
        %2571 = vmatprep.mubr.bf16.mxu0 %v1010
        %2572 = vmatmul.mubr.bf16.gmra.mrb[0].mxu0 %v1009
        %v2573 = vpop.f32.mrb[0].mxu0
        %v2574 = vadd.f32 %v2518, %v2573
        %v2575 = vpop.f32.mrb[0].mxu0
        %v2576 = vpop.f32.mrb[0].mxu0
        %v2577 = vadd.f32 %v2521, %v2576
        %v2578 = vpop.f32.mrb[0].mxu0
        %2579 = vmatprep.mubr.bf16.mxu0 %v1028
        %2580 = vmatmul.mubr.bf16.gmra.mrb[0].mxu0 %v1027
        %v2581 = vpop.f32.mrb[0].mxu0
        %v2582 = vadd.f32 %v2526, %v2581
        %v2583 = vpop.f32.mrb[0].mxu0
        %v2584 = vpop.f32.mrb[0].mxu0
        %v2585 = vadd.f32 %v2529, %v2584
        %v2586 = vpop.f32.mrb[0].mxu0
        %2587 = vmatprep.mubr.bf16.mxu0 %v1046
        %2588 = vmatmul.mubr.bf16.gmra.mrb[0].mxu0 %v1045
        %v2589 = vpop.f32.mrb[0].mxu0
        %v2590 = vadd.f32 %v2534, %v2589
        %v2591 = vpop.f32.mrb[0].mxu0
        %v2592 = vpop.f32.mrb[0].mxu0
        %v2593 = vpop.f32.mrb[0].mxu0
        %2594 = vdwg.mxu0
        %2595 = vmatprep.subr.bf16.mxu0 0
        %2596 = vmatpush1.bf16.msra.mxu0 %v2027
        %2597 = vmatprep.subr.bf16.mxu0 0
        %2598 = vmatpush1.bf16.msra.mxu0 %v2028
        %2599 = vmatprep.subr.bf16.mxu0 0
        %2600 = vmatpush1.bf16.msra.mxu0 %v2029
        %2601 = vmatprep.subr.bf16.mxu0 0
        %2602 = vmatpush1.bf16.msra.mxu0 %v2030
        %2603 = vmatprep.subr.bf16.mxu0 0
        %2604 = vmatpush1.bf16.msra.mxu0 %v2031
        %2605 = vmatprep.subr.bf16.mxu0 0
        %2606 = vmatpush1.bf16.msra.mxu0 %v2032
        %2607 = vmatprep.subr.bf16.mxu0 0
        %2608 = vmatpush1.bf16.msra.mxu0 %v2033
        %2609 = vmatprep.subr.bf16.mxu0 0
        %2610 = vmatpush1.bf16.msra.mxu0 %v2034
        %2611 = vmatprep.subr.bf16.mxu0 0
        %2612 = vmatpush1.bf16.msra.mxu0 %v2035
        %2613 = vmatprep.subr.bf16.mxu0 0
        %2614 = vmatpush1.bf16.msra.mxu0 %v2036
        %2615 = vmatprep.subr.bf16.mxu0 0
        %2616 = vmatpush1.bf16.msra.mxu0 %v2037
        %2617 = vmatprep.subr.bf16.mxu0 0
        %2618 = vmatpush1.bf16.msra.mxu0 %v2038
        %2619 = vmatprep.subr.bf16.mxu0 0
        %2620 = vmatpush1.bf16.msra.mxu0 %v2039
        %2621 = vmatprep.subr.bf16.mxu0 0
        %2622 = vmatpush1.bf16.msra.mxu0 %v2040
        %2623 = vmatprep.subr.bf16.mxu0 0
        %2624 = vmatpush1.bf16.msra.mxu0 %v2041
        %2625 = vmatprep.subr.bf16.mxu0 0
        %2626 = vmatpush1.bf16.msra.mxu0 %v2042
        %2627 = vmatprep.mubr.bf16.mxu0 %v1012
        %2628 = vmatmul.mubr.bf16.gmra.mrb[0].mxu0 %v1011
        %v2629 = vpop.f32.mrb[0].mxu0
        %v2630 = vadd.f32 %v2574, %v2629
        %v2631 = vpop.f32.mrb[0].mxu0
        %v2632 = vpop.f32.mrb[0].mxu0
        %v2633 = vadd.f32 %v2577, %v2632
        %v2634 = vpop.f32.mrb[0].mxu0
        %2635 = vmatprep.mubr.bf16.mxu0 %v1030
        %2636 = vmatmul.mubr.bf16.gmra.mrb[0].mxu0 %v1029
        %v2637 = vpop.f32.mrb[0].mxu0
        %v2638 = vadd.f32 %v2582, %v2637
        %v2639 = vpop.f32.mrb[0].mxu0
        %v2640 = vpop.f32.mrb[0].mxu0
        %v2641 = vadd.f32 %v2585, %v2640
        %v2642 = vpop.f32.mrb[0].mxu0
        %2643 = vmatprep.mubr.bf16.mxu0 %v1048
        %2644 = vmatmul.mubr.bf16.gmra.mrb[0].mxu0 %v1047
        %v2645 = vpop.f32.mrb[0].mxu0
        %v2646 = vadd.f32 %v2590, %v2645
        %v2647 = vpop.f32.mrb[0].mxu0
        %v2648 = vpop.f32.mrb[0].mxu0
        %v2649 = vpop.f32.mrb[0].mxu0
        %2650 = vdwg.mxu0
        %2651 = vmatprep.subr.bf16.mxu0 0
        %2652 = vmatpush1.bf16.msra.mxu0 %v2043
        %2653 = vmatprep.subr.bf16.mxu0 0
        %2654 = vmatpush1.bf16.msra.mxu0 %v2044
        %2655 = vmatprep.subr.bf16.mxu0 0
        %2656 = vmatpush1.bf16.msra.mxu0 %v2045
        %2657 = vmatprep.subr.bf16.mxu0 0
        %2658 = vmatpush1.bf16.msra.mxu0 %v2046
        %2659 = vmatprep.subr.bf16.mxu0 0
        %2660 = vmatpush1.bf16.msra.mxu0 %v2047
        %2661 = vmatprep.subr.bf16.mxu0 0
        %2662 = vmatpush1.bf16.msra.mxu0 %v2048
        %2663 = vmatprep.subr.bf16.mxu0 0
        %2664 = vmatpush1.bf16.msra.mxu0 %v2049
        %2665 = vmatprep.subr.bf16.mxu0 0
        %2666 = vmatpush1.bf16.msra.mxu0 %v2050
        %2667 = vmatprep.subr.bf16.mxu0 0
        %2668 = vmatpush1.bf16.msra.mxu0 %v2051
        %2669 = vmatprep.subr.bf16.mxu0 0
        %2670 = vmatpush1.bf16.msra.mxu0 %v2052
        %2671 = vmatprep.subr.bf16.mxu0 0
        %2672 = vmatpush1.bf16.msra.mxu0 %v2053
        %2673 = vmatprep.subr.bf16.mxu0 0
        %2674 = vmatpush1.bf16.msra.mxu0 %v2054
        %2675 = vmatprep.subr.bf16.mxu0 0
        %2676 = vmatpush1.bf16.msra.mxu0 %v2055
        %2677 = vmatprep.subr.bf16.mxu0 0
        %2678 = vmatpush1.bf16.msra.mxu0 %v2056
        %2679 = vmatprep.subr.bf16.mxu0 0
        %2680 = vmatpush1.bf16.msra.mxu0 %v2057
        %2681 = vmatprep.subr.bf16.mxu0 0
        %2682 = vmatpush1.bf16.msra.mxu0 %v2058
        %2683 = vmatprep.mubr.bf16.mxu0 %v1014
        %2684 = vmatmul.mubr.bf16.gmra.mrb[0].mxu0 %v1013
        %v2685 = vpop.f32.mrb[0].mxu0
        %v2686 = vadd.f32 %v2630, %v2685
        %v2687 = vpop.f32.mrb[0].mxu0
        %v2688 = vpop.f32.mrb[0].mxu0
        %v2689 = vadd.f32 %v2633, %v2688
        %v2690 = vpop.f32.mrb[0].mxu0
        %2691 = vmatprep.mubr.bf16.mxu0 %v1032
        %2692 = vmatmul.mubr.bf16.gmra.mrb[0].mxu0 %v1031
        %v2693 = vpop.f32.mrb[0].mxu0
        %v2694 = vadd.f32 %v2638, %v2693
        %v2695 = vpop.f32.mrb[0].mxu0
        %v2696 = vpop.f32.mrb[0].mxu0
        %v2697 = vadd.f32 %v2641, %v2696
        %v2698 = vpop.f32.mrb[0].mxu0
        %2699 = vmatprep.mubr.bf16.mxu0 %v1050
        %2700 = vmatmul.mubr.bf16.gmra.mrb[0].mxu0 %v1049
        %v2701 = vpop.f32.mrb[0].mxu0
        %v2702 = vadd.f32 %v2646, %v2701
        %v2703 = vpop.f32.mrb[0].mxu0
        %v2704 = vpop.f32.mrb[0].mxu0
        %v2705 = vpop.f32.mrb[0].mxu0
        %2706 = vdwg.mxu0
        %v2707 = vld [vmem:[%s4] sm:$0x1]
        %v2709 = vlaneseq
        %v2710 = vshrl.u32 %v2709, 7
        %v2711 = vsub.s32 0, %v2710
        %v2712 = vrot.slane %v2707, %v2711
        %v2714 = vmul.f32 %v2686, %v2712
        %v2715 = vmul.f32 %v2689, %v2712
        %v2716 = vmul.f32 %v2694, %v2712
        %v2717 = vmul.f32 %v2697, %v2712
        %v2718 = vmul.f32 %v2702, %v2712
        %v2719 = vld [vmem:[%s5] sm:$0x1]
        %v2721 = vlaneseq
        %v2722 = vshrl.u32 %v2721, 7
        %v2723 = vsub.s32 0, %v2722
        %v2724 = vrot.slane %v2719, %v2723
        %v2726 = vadd.f32 %v2714, %v2724
        %v2727 = vadd.f32 %v2715, %v2724
        %v2728 = vadd.f32 %v2716, %v2724
        %v2729 = vadd.f32 %v2717, %v2724
        %v2730 = vadd.f32 %v2718, %v2724
        %v2731 = vmax.f32 %v2726, 0.0
        %v2732 = vmax.f32 %v2727, 0.0
        %v2733 = vmax.f32 %v2728, 0.0
        %v2734 = vmax.f32 %v2729, 0.0
        %v2735 = vmax.f32 %v2730, 0.0
        %v2736 = vstv %s753
        %v2737 = vadd.s32 %v698, %v2736
        %v2738 = vadd.s32 %v699, %v2736
        %v2739 = vadd.s32 %v700, %v2736
        %v2740 = vadd.s32 %v701, %v2736
        %v2741 = vadd.s32 %v702, %v2736
        %vm2742 = vcmp.ge.s32.totalorder %v2737, 0
        %vm2743 = vcmp.ge.s32.totalorder %v2738, 0
        %vm2744 = vcmp.ge.s32.totalorder %v2739, 0
        %vm2745 = vcmp.ge.s32.totalorder %v2740, 0
        %vm2746 = vcmp.ge.s32.totalorder %v2741, 0
        %vm2747 = vcmp.lt.s32.totalorder %v2737, 16
        %vm2748 = vcmp.lt.s32.totalorder %v2738, 16
        %vm2749 = vcmp.lt.s32.totalorder %v2739, 16
        %vm2750 = vcmp.lt.s32.totalorder %v2740, 16
        %vm2751 = vcmp.lt.s32.totalorder %v2741, 16
        %vm2752 = vmand %vm2742, %vm2747
        %vm2753 = vmand %vm2743, %vm2748
        %vm2754 = vmand %vm2744, %vm2749
        %vm2755 = vmand %vm2745, %vm2750
        %vm2756 = vmand %vm2746, %vm2751
        %v2757 = vsel %vm2752, 1, 0
        %v2758 = vsel %vm2753, 1, 0
        %v2759 = vsel %vm2754, 1, 0
        %v2760 = vsel %vm2755, 1, 0
        %v2761 = vsel %vm2756, 1, 0
        %vm2762 = vcmp.eq.s32.totalorder %v2757, 1
        %vm2763 = vcmp.eq.s32.totalorder %v2758, 1
        %vm2764 = vcmp.eq.s32.totalorder %v2759, 1
        %vm2765 = vcmp.eq.s32.totalorder %v2760, 1
        %vm2766 = vcmp.eq.s32.totalorder %v2761, 1
        %v2767 = vsel %vm2762, %v2731, 0.0
        %v2768 = vsel %vm2763, %v2732, 0.0
        %v2769 = vsel %vm2764, %v2733, 0.0
        %v2770 = vsel %vm2765, %v2734, 0.0
        %v2771 = vsel %vm2766, %v2735, 0.0
        %s2772 = sadd.s32 %s677, 4294967288
        %v2778 = vrot.slane %v2767, 1
        %v2779 = vrot.slane %v2768, 1
        %v2780 = vsel %vm766, %v2778, %v2779
        %v2781 = vrot.slane %v2769, 1
        %v2782 = vsel %vm766, %v2779, %v2781
        %v2783 = vrot.slane %v2770, 1
        %v2784 = vsel %vm766, %v2781, %v2783
        %v2785 = vrot.slane %v2771, 1
        %v2786 = vsel %vm766, %v2783, %v2785
        %v2791 = vrot.slane %v2767, 2
        %v2792 = vrot.slane %v2768, 2
        %v2793 = vsel %vm799, %v2791, %v2792
        %v2794 = vrot.slane %v2769, 2
        %v2795 = vsel %vm799, %v2792, %v2794
        %v2796 = vrot.slane %v2770, 2
        %v2797 = vsel %vm799, %v2794, %v2796
        %v2798 = vrot.slane %v2771, 2
        %v2799 = vsel %vm799, %v2796, %v2798
        %v2804 = vrot.slane %v2767, 3
        %v2805 = vrot.slane %v2768, 3
        %v2806 = vsel %vm832, %v2804, %v2805
        %v2807 = vrot.slane %v2769, 3
        %v2808 = vsel %vm832, %v2805, %v2807
        %v2809 = vrot.slane %v2770, 3
        %v2810 = vsel %vm832, %v2807, %v2809
        %v2811 = vrot.slane %v2771, 3
        %v2812 = vsel %vm832, %v2809, %v2811
        %v2817 = vrot.slane %v2767, 4
        %v2818 = vrot.slane %v2768, 4
        %v2819 = vsel %vm865, %v2817, %v2818
        %v2820 = vrot.slane %v2769, 4
        %v2821 = vsel %vm865, %v2818, %v2820
        %v2822 = vrot.slane %v2770, 4
        %v2823 = vsel %vm865, %v2820, %v2822
        %v2824 = vrot.slane %v2771, 4
        %v2825 = vsel %vm865, %v2822, %v2824
        %v2830 = vrot.slane %v2767, 5
        %v2831 = vrot.slane %v2768, 5
        %v2832 = vsel %vm898, %v2830, %v2831
        %v2833 = vrot.slane %v2769, 5
        %v2834 = vsel %vm898, %v2831, %v2833
        %v2835 = vrot.slane %v2770, 5
        %v2836 = vsel %vm898, %v2833, %v2835
        %v2837 = vrot.slane %v2771, 5
        %v2838 = vsel %vm898, %v2835, %v2837
        %v2843 = vrot.slane %v2767, 6
        %v2844 = vrot.slane %v2768, 6
        %v2845 = vsel %vm931, %v2843, %v2844
        %v2846 = vrot.slane %v2769, 6
        %v2847 = vsel %vm931, %v2844, %v2846
        %v2848 = vrot.slane %v2770, 6
        %v2849 = vsel %vm931, %v2846, %v2848
        %v2850 = vrot.slane %v2771, 6
        %v2851 = vsel %vm931, %v2848, %v2850
        %v2856 = vrot.slane %v2767, 7
        %v2857 = vrot.slane %v2768, 7
        %v2858 = vsel %vm964, %v2856, %v2857
        %v2859 = vrot.slane %v2769, 7
        %v2860 = vsel %vm964, %v2857, %v2859
        %v2861 = vrot.slane %v2770, 7
        %v2862 = vsel %vm964, %v2859, %v2861
        %v2863 = vrot.slane %v2771, 7
        %v2864 = vsel %vm964, %v2861, %v2863
        %v2869 = vpack.c.bf16 %v2768, %v2767
        %v2870 = vpack.c.bf16 %v2782, %v2780
        %v2871 = vpack.c.bf16 %v2795, %v2793
        %v2872 = vpack.c.bf16 %v2808, %v2806
        %v2873 = vpack.c.bf16 %v2821, %v2819
        %v2874 = vpack.c.bf16 %v2834, %v2832
        %v2875 = vpack.c.bf16 %v2847, %v2845
        %v2876 = vpack.c.bf16 %v2860, %v2858
        %v2877 = vpack.c.bf16 %v2769, %v2768
        %v2878 = vpack.c.bf16 %v2770, %v2769
        %v2879 = vpack.c.bf16 %v2786, %v2784
        %v2880 = vpack.c.bf16 %v2799, %v2797
        %v2881 = vpack.c.bf16 %v2812, %v2810
        %v2882 = vpack.c.bf16 %v2825, %v2823
        %v2883 = vpack.c.bf16 %v2838, %v2836
        %v2884 = vpack.c.bf16 %v2851, %v2849
        %v2885 = vpack.c.bf16 %v2864, %v2862
        %v2886 = vpack.c.bf16 %v2771, %v2770
        %v2887 = vld [vmem:[#allocation5] sm:$0xf]
        %v2888 = vld [vmem:[#allocation5 + $0x4] sm:$0xf]
        %v2889 = vld [vmem:[#allocation5 + $0x8] sm:$0xf]
        %v2890 = vld [vmem:[#allocation5 + $0xc] sm:$0xf]
        %v2891 = vld [vmem:[#allocation5 + $0x10] sm:$0xf]
        %v2892 = vld [vmem:[#allocation5 + $0x14] sm:$0xf]
        %v2893 = vld [vmem:[#allocation5 + $0x18] sm:$0xf]
        %v2894 = vld [vmem:[#allocation5 + $0x1c] sm:$0xf]
        %v2895 = vld [vmem:[#allocation5 + $0x20] sm:$0xf]
        %v2896 = vld [vmem:[#allocation5 + $0x24] sm:$0xf]
        %v2897 = vld [vmem:[#allocation5 + $0x28] sm:$0xf]
        %v2898 = vld [vmem:[#allocation5 + $0x2c] sm:$0xf]
        %v2899 = vld [vmem:[#allocation5 + $0x30] sm:$0xf]
        %v2900 = vld [vmem:[#allocation5 + $0x34] sm:$0xf]
        %v2901 = vld [vmem:[#allocation5 + $0x38] sm:$0xf]
        %v2902 = vld [vmem:[#allocation5 + $0x3c] sm:$0xf]
        %v2903 = vld [vmem:[#allocation5 + $0x40] sm:$0xf]
        %v2904 = vld [vmem:[#allocation5 + $0x44] sm:$0xf]
        %v2905 = vld [vmem:[#allocation5 + $0x48] sm:$0xf]
        %v2906 = vld [vmem:[#allocation5 + $0x4c] sm:$0xf]
        %v2907 = vld [vmem:[#allocation5 + $0x50] sm:$0xf]
        %v2908 = vld [vmem:[#allocation5 + $0x54] sm:$0xf]
        %v2909 = vld [vmem:[#allocation5 + $0x58] sm:$0xf]
        %v2910 = vld [vmem:[#allocation5 + $0x5c] sm:$0xf]
        %v2911 = vld [vmem:[#allocation5 + $0x60] sm:$0xf]
        %v2912 = vld [vmem:[#allocation5 + $0x64] sm:$0xf]
        %v2913 = vld [vmem:[#allocation5 + $0x68] sm:$0xf]
        %v2914 = vld [vmem:[#allocation5 + $0x6c] sm:$0xf]
        %v2915 = vld [vmem:[#allocation5 + $0x70] sm:$0xf]
        %v2916 = vld [vmem:[#allocation5 + $0x74] sm:$0xf]
        %v2917 = vld [vmem:[#allocation5 + $0x78] sm:$0xf]
        %v2918 = vld [vmem:[#allocation5 + $0x7c] sm:$0xf]
        %v2919 = vld [vmem:[#allocation5 + $0x80] sm:$0xf]
        %v2920 = vld [vmem:[#allocation5 + $0x84] sm:$0xf]
        %v2921 = vld [vmem:[#allocation5 + $0x88] sm:$0xf]
        %v2922 = vld [vmem:[#allocation5 + $0x8c] sm:$0xf]
        %v2923 = vld [vmem:[#allocation5 + $0x90] sm:$0xf]
        %v2924 = vld [vmem:[#allocation5 + $0x94] sm:$0xf]
        %v2925 = vld [vmem:[#allocation5 + $0x98] sm:$0xf]
        %v2926 = vld [vmem:[#allocation5 + $0x9c] sm:$0xf]
        %v2927 = vld [vmem:[#allocation5 + $0xa0] sm:$0xf]
        %v2928 = vld [vmem:[#allocation5 + $0xa4] sm:$0xf]
        %v2929 = vld [vmem:[#allocation5 + $0xa8] sm:$0xf]
        %v2930 = vld [vmem:[#allocation5 + $0xac] sm:$0xf]
        %v2931 = vld [vmem:[#allocation5 + $0xb0] sm:$0xf]
        %v2932 = vld [vmem:[#allocation5 + $0xb4] sm:$0xf]
        %v2933 = vld [vmem:[#allocation5 + $0xb8] sm:$0xf]
        %v2934 = vld [vmem:[#allocation5 + $0xbc] sm:$0xf]
        %v2935 = vld [vmem:[#allocation5 + $0xc0] sm:$0xf]
        %v2936 = vld [vmem:[#allocation5 + $0xc4] sm:$0xf]
        %v2937 = vld [vmem:[#allocation5 + $0xc8] sm:$0xf]
        %v2938 = vld [vmem:[#allocation5 + $0xcc] sm:$0xf]
        %v2939 = vld [vmem:[#allocation5 + $0xd0] sm:$0xf]
        %v2940 = vld [vmem:[#allocation5 + $0xd4] sm:$0xf]
        %v2941 = vld [vmem:[#allocation5 + $0xd8] sm:$0xf]
        %v2942 = vld [vmem:[#allocation5 + $0xdc] sm:$0xf]
        %v2943 = vld [vmem:[#allocation5 + $0xe0] sm:$0xf]
        %v2944 = vld [vmem:[#allocation5 + $0xe4] sm:$0xf]
        %v2945 = vld [vmem:[#allocation5 + $0xe8] sm:$0xf]
        %v2946 = vld [vmem:[#allocation5 + $0xec] sm:$0xf]
        %v2947 = vld [vmem:[#allocation5 + $0xf0] sm:$0xf]
        %v2948 = vld [vmem:[#allocation5 + $0xf4] sm:$0xf]
        %v2949 = vld [vmem:[#allocation5 + $0xf8] sm:$0xf]
        %v2950 = vld [vmem:[#allocation5 + $0xfc] sm:$0xf]
        %v2951 = vld [vmem:[#allocation5 + $0x100] sm:$0xf]
        %v2952 = vld [vmem:[#allocation5 + $0x104] sm:$0xf]
        %v2953 = vld [vmem:[#allocation5 + $0x108] sm:$0xf]
        %v2954 = vld [vmem:[#allocation5 + $0x10c] sm:$0xf]
        %v2955 = vld [vmem:[#allocation5 + $0x110] sm:$0xf]
        %v2956 = vld [vmem:[#allocation5 + $0x114] sm:$0xf]
        %v2957 = vld [vmem:[#allocation5 + $0x118] sm:$0xf]
        %v2958 = vld [vmem:[#allocation5 + $0x11c] sm:$0xf]
        %v2959 = vld [vmem:[#allocation5 + $0x120] sm:$0xf]
        %v2960 = vld [vmem:[#allocation5 + $0x124] sm:$0xf]
        %v2961 = vld [vmem:[#allocation5 + $0x128] sm:$0xf]
        %v2962 = vld [vmem:[#allocation5 + $0x12c] sm:$0xf]
        %v2963 = vld [vmem:[#allocation5 + $0x130] sm:$0xf]
        %v2964 = vld [vmem:[#allocation5 + $0x134] sm:$0xf]
        %v2965 = vld [vmem:[#allocation5 + $0x138] sm:$0xf]
        %v2966 = vld [vmem:[#allocation5 + $0x13c] sm:$0xf]
        %v2967 = vld [vmem:[#allocation5 + $0x140] sm:$0xf]
        %v2968 = vld [vmem:[#allocation5 + $0x144] sm:$0xf]
        %v2969 = vld [vmem:[#allocation5 + $0x148] sm:$0xf]
        %v2970 = vld [vmem:[#allocation5 + $0x14c] sm:$0xf]
        %v2971 = vld [vmem:[#allocation5 + $0x150] sm:$0xf]
        %v2972 = vld [vmem:[#allocation5 + $0x154] sm:$0xf]
        %v2973 = vld [vmem:[#allocation5 + $0x158] sm:$0xf]
        %v2974 = vld [vmem:[#allocation5 + $0x15c] sm:$0xf]
        %v2975 = vld [vmem:[#allocation5 + $0x160] sm:$0xf]
        %v2976 = vld [vmem:[#allocation5 + $0x164] sm:$0xf]
        %v2977 = vld [vmem:[#allocation5 + $0x168] sm:$0xf]
        %v2978 = vld [vmem:[#allocation5 + $0x16c] sm:$0xf]
        %v2979 = vld [vmem:[#allocation5 + $0x170] sm:$0xf]
        %v2980 = vld [vmem:[#allocation5 + $0x174] sm:$0xf]
        %v2981 = vld [vmem:[#allocation5 + $0x178] sm:$0xf]
        %v2982 = vld [vmem:[#allocation5 + $0x17c] sm:$0xf]
        %v2983 = vld [vmem:[#allocation5 + $0x180] sm:$0xf]
        %v2984 = vld [vmem:[#allocation5 + $0x184] sm:$0xf]
        %v2985 = vld [vmem:[#allocation5 + $0x188] sm:$0xf]
        %v2986 = vld [vmem:[#allocation5 + $0x18c] sm:$0xf]
        %v2987 = vld [vmem:[#allocation5 + $0x190] sm:$0xf]
        %v2988 = vld [vmem:[#allocation5 + $0x194] sm:$0xf]
        %v2989 = vld [vmem:[#allocation5 + $0x198] sm:$0xf]
        %v2990 = vld [vmem:[#allocation5 + $0x19c] sm:$0xf]
        %v2991 = vld [vmem:[#allocation5 + $0x1a0] sm:$0xf]
        %v2992 = vld [vmem:[#allocation5 + $0x1a4] sm:$0xf]
        %v2993 = vld [vmem:[#allocation5 + $0x1a8] sm:$0xf]
        %v2994 = vld [vmem:[#allocation5 + $0x1ac] sm:$0xf]
        %v2995 = vld [vmem:[#allocation5 + $0x1b0] sm:$0xf]
        %v2996 = vld [vmem:[#allocation5 + $0x1b4] sm:$0xf]
        %v2997 = vld [vmem:[#allocation5 + $0x1b8] sm:$0xf]
        %v2998 = vld [vmem:[#allocation5 + $0x1bc] sm:$0xf]
        %v2999 = vld [vmem:[#allocation5 + $0x1c0] sm:$0xf]
        %v3000 = vld [vmem:[#allocation5 + $0x1c4] sm:$0xf]
        %v3001 = vld [vmem:[#allocation5 + $0x1c8] sm:$0xf]
        %v3002 = vld [vmem:[#allocation5 + $0x1cc] sm:$0xf]
        %v3003 = vld [vmem:[#allocation5 + $0x1d0] sm:$0xf]
        %v3004 = vld [vmem:[#allocation5 + $0x1d4] sm:$0xf]
        %v3005 = vld [vmem:[#allocation5 + $0x1d8] sm:$0xf]
        %v3006 = vld [vmem:[#allocation5 + $0x1dc] sm:$0xf]
        %v3007 = vld [vmem:[#allocation5 + $0x1e0] sm:$0xf]
        %v3008 = vld [vmem:[#allocation5 + $0x1e4] sm:$0xf]
        %v3009 = vld [vmem:[#allocation5 + $0x1e8] sm:$0xf]
        %v3010 = vld [vmem:[#allocation5 + $0x1ec] sm:$0xf]
        %v3011 = vld [vmem:[#allocation5 + $0x1f0] sm:$0xf]
        %v3012 = vld [vmem:[#allocation5 + $0x1f4] sm:$0xf]
        %v3013 = vld [vmem:[#allocation5 + $0x1f8] sm:$0xf]
        %v3014 = vld [vmem:[#allocation5 + $0x1fc] sm:$0xf]
        %v3015 = vld [vmem:[#allocation5 + $0x200] sm:$0xf]
        %v3016 = vld [vmem:[#allocation5 + $0x204] sm:$0xf]
        %v3017 = vld [vmem:[#allocation5 + $0x208] sm:$0xf]
        %v3018 = vld [vmem:[#allocation5 + $0x20c] sm:$0xf]
        %v3019 = vld [vmem:[#allocation5 + $0x210] sm:$0xf]
        %v3020 = vld [vmem:[#allocation5 + $0x214] sm:$0xf]
        %v3021 = vld [vmem:[#allocation5 + $0x218] sm:$0xf]
        %v3022 = vld [vmem:[#allocation5 + $0x21c] sm:$0xf]
        %v3023 = vld [vmem:[#allocation5 + $0x220] sm:$0xf]
        %v3024 = vld [vmem:[#allocation5 + $0x224] sm:$0xf]
        %v3025 = vld [vmem:[#allocation5 + $0x228] sm:$0xf]
        %v3026 = vld [vmem:[#allocation5 + $0x22c] sm:$0xf]
        %v3027 = vld [vmem:[#allocation5 + $0x230] sm:$0xf]
        %v3028 = vld [vmem:[#allocation5 + $0x234] sm:$0xf]
        %v3029 = vld [vmem:[#allocation5 + $0x238] sm:$0xf]
        %v3030 = vld [vmem:[#allocation5 + $0x23c] sm:$0xf]
        %v3175 = vunpack.c.l.b16 %v2887
        %v3176 = vunpack.c.l.b16 %v2888
        %v3177 = vunpack.c.l.b16 %v2889
        %v3178 = vunpack.c.l.b16 %v2890
        %v3179 = vunpack.c.l.b16 %v2891
        %v3180 = vunpack.c.l.b16 %v2892
        %v3181 = vunpack.c.l.b16 %v2893
        %v3182 = vunpack.c.l.b16 %v2894
        %v3183 = vunpack.c.l.b16 %v2895
        %v3184 = vunpack.c.l.b16 %v2896
        %v3185 = vunpack.c.l.b16 %v2897
        %v3186 = vunpack.c.l.b16 %v2898
        %v3187 = vunpack.c.l.b16 %v2899
        %v3188 = vunpack.c.l.b16 %v2900
        %v3189 = vunpack.c.l.b16 %v2901
        %v3190 = vunpack.c.l.b16 %v2902
        %v3191 = vunpack.c.l.b16 %v2903
        %v3192 = vunpack.c.l.b16 %v2904
        %v3193 = vunpack.c.l.b16 %v2905
        %v3194 = vunpack.c.l.b16 %v2906
        %v3195 = vunpack.c.l.b16 %v2907
        %v3196 = vunpack.c.l.b16 %v2908
        %v3197 = vunpack.c.l.b16 %v2909
        %v3198 = vunpack.c.l.b16 %v2910
        %v3199 = vunpack.c.l.b16 %v2911
        %v3200 = vunpack.c.l.b16 %v2912
        %v3201 = vunpack.c.l.b16 %v2913
        %v3202 = vunpack.c.l.b16 %v2914
        %v3203 = vunpack.c.l.b16 %v2915
        %v3204 = vunpack.c.l.b16 %v2916
        %v3205 = vunpack.c.l.b16 %v2917
        %v3206 = vunpack.c.l.b16 %v2918
        %v3207 = vunpack.c.l.b16 %v2919
        %v3208 = vunpack.c.l.b16 %v2920
        %v3209 = vunpack.c.l.b16 %v2921
        %v3210 = vunpack.c.l.b16 %v2922
        %v3211 = vunpack.c.l.b16 %v2923
        %v3212 = vunpack.c.l.b16 %v2924
        %v3213 = vunpack.c.l.b16 %v2925
        %v3214 = vunpack.c.l.b16 %v2926
        %v3215 = vunpack.c.l.b16 %v2927
        %v3216 = vunpack.c.l.b16 %v2928
        %v3217 = vunpack.c.l.b16 %v2929
        %v3218 = vunpack.c.l.b16 %v2930
        %v3219 = vunpack.c.l.b16 %v2931
        %v3220 = vunpack.c.l.b16 %v2932
        %v3221 = vunpack.c.l.b16 %v2933
        %v3222 = vunpack.c.l.b16 %v2934
        %v3223 = vunpack.c.l.b16 %v2935
        %v3224 = vunpack.c.l.b16 %v2936
        %v3225 = vunpack.c.l.b16 %v2937
        %v3226 = vunpack.c.l.b16 %v2938
        %v3227 = vunpack.c.l.b16 %v2939
        %v3228 = vunpack.c.l.b16 %v2940
        %v3229 = vunpack.c.l.b16 %v2941
        %v3230 = vunpack.c.l.b16 %v2942
        %v3231 = vunpack.c.l.b16 %v2943
        %v3232 = vunpack.c.l.b16 %v2944
        %v3233 = vunpack.c.l.b16 %v2945
        %v3234 = vunpack.c.l.b16 %v2946
        %v3235 = vunpack.c.l.b16 %v2947
        %v3236 = vunpack.c.l.b16 %v2948
        %v3237 = vunpack.c.l.b16 %v2949
        %v3238 = vunpack.c.l.b16 %v2950
        %v3239 = vunpack.c.l.b16 %v2951
        %v3240 = vunpack.c.l.b16 %v2952
        %v3241 = vunpack.c.l.b16 %v2953
        %v3242 = vunpack.c.l.b16 %v2954
        %v3243 = vunpack.c.l.b16 %v2955
        %v3244 = vunpack.c.l.b16 %v2956
        %v3245 = vunpack.c.l.b16 %v2957
        %v3246 = vunpack.c.l.b16 %v2958
        %v3247 = vunpack.c.l.b16 %v2959
        %v3248 = vunpack.c.l.b16 %v2960
        %v3249 = vunpack.c.l.b16 %v2961
        %v3250 = vunpack.c.l.b16 %v2962
        %v3251 = vunpack.c.l.b16 %v2963
        %v3252 = vunpack.c.l.b16 %v2964
        %v3253 = vunpack.c.l.b16 %v2965
        %v3254 = vunpack.c.l.b16 %v2966
        %v3255 = vunpack.c.l.b16 %v2967
        %v3256 = vunpack.c.l.b16 %v2968
        %v3257 = vunpack.c.l.b16 %v2969
        %v3258 = vunpack.c.l.b16 %v2970
        %v3259 = vunpack.c.l.b16 %v2971
        %v3260 = vunpack.c.l.b16 %v2972
        %v3261 = vunpack.c.l.b16 %v2973
        %v3262 = vunpack.c.l.b16 %v2974
        %v3263 = vunpack.c.l.b16 %v2975
        %v3264 = vunpack.c.l.b16 %v2976
        %v3265 = vunpack.c.l.b16 %v2977
        %v3266 = vunpack.c.l.b16 %v2978
        %v3267 = vunpack.c.l.b16 %v2979
        %v3268 = vunpack.c.l.b16 %v2980
        %v3269 = vunpack.c.l.b16 %v2981
        %v3270 = vunpack.c.l.b16 %v2982
        %v3271 = vunpack.c.l.b16 %v2983
        %v3272 = vunpack.c.l.b16 %v2984
        %v3273 = vunpack.c.l.b16 %v2985
        %v3274 = vunpack.c.l.b16 %v2986
        %v3275 = vunpack.c.l.b16 %v2987
        %v3276 = vunpack.c.l.b16 %v2988
        %v3277 = vunpack.c.l.b16 %v2989
        %v3278 = vunpack.c.l.b16 %v2990
        %v3279 = vunpack.c.l.b16 %v2991
        %v3280 = vunpack.c.l.b16 %v2992
        %v3281 = vunpack.c.l.b16 %v2993
        %v3282 = vunpack.c.l.b16 %v2994
        %v3283 = vunpack.c.l.b16 %v2995
        %v3284 = vunpack.c.l.b16 %v2996
        %v3285 = vunpack.c.l.b16 %v2997
        %v3286 = vunpack.c.l.b16 %v2998
        %v3287 = vunpack.c.l.b16 %v2999
        %v3288 = vunpack.c.l.b16 %v3000
        %v3289 = vunpack.c.l.b16 %v3001
        %v3290 = vunpack.c.l.b16 %v3002
        %v3291 = vunpack.c.l.b16 %v3003
        %v3292 = vunpack.c.l.b16 %v3004
        %v3293 = vunpack.c.l.b16 %v3005
        %v3294 = vunpack.c.l.b16 %v3006
        %v3295 = vunpack.c.l.b16 %v3007
        %v3296 = vunpack.c.l.b16 %v3008
        %v3297 = vunpack.c.l.b16 %v3009
        %v3298 = vunpack.c.l.b16 %v3010
        %v3299 = vunpack.c.l.b16 %v3011
        %v3300 = vunpack.c.l.b16 %v3012
        %v3301 = vunpack.c.l.b16 %v3013
        %v3302 = vunpack.c.l.b16 %v3014
        %v3303 = vunpack.c.l.b16 %v3015
        %v3304 = vunpack.c.l.b16 %v3016
        %v3305 = vunpack.c.l.b16 %v3017
        %v3306 = vunpack.c.l.b16 %v3018
        %v3307 = vunpack.c.l.b16 %v3019
        %v3308 = vunpack.c.l.b16 %v3020
        %v3309 = vunpack.c.l.b16 %v3021
        %v3310 = vunpack.c.l.b16 %v3022
        %v3311 = vunpack.c.l.b16 %v3023
        %v3312 = vunpack.c.l.b16 %v3024
        %v3313 = vunpack.c.l.b16 %v3025
        %v3314 = vunpack.c.l.b16 %v3026
        %v3315 = vunpack.c.l.b16 %v3027
        %v3316 = vunpack.c.l.b16 %v3028
        %v3317 = vunpack.c.l.b16 %v3029
        %v3318 = vunpack.c.l.b16 %v3030
        %v3319 = vpack.c.b16 %v3176, %v3175
        %v3320 = vpack.c.b16 %v3178, %v3177
        %v3321 = vpack.c.b16 %v3180, %v3179
        %v3322 = vpack.c.b16 %v3182, %v3181
        %v3323 = vpack.c.b16 %v3184, %v3183
        %v3324 = vpack.c.b16 %v3186, %v3185
        %v3325 = vpack.c.b16 %v3188, %v3187
        %v3326 = vpack.c.b16 %v3190, %v3189
        %v3327 = vpack.c.b16 %v3192, %v3191
        %v3328 = vpack.c.b16 %v3194, %v3193
        %v3329 = vpack.c.b16 %v3196, %v3195
        %v3330 = vpack.c.b16 %v3198, %v3197
        %v3331 = vpack.c.b16 %v3200, %v3199
        %v3332 = vpack.c.b16 %v3202, %v3201
        %v3333 = vpack.c.b16 %v3204, %v3203
        %v3334 = vpack.c.b16 %v3206, %v3205
        %v3335 = vpack.c.b16 %v3208, %v3207
        %v3336 = vpack.c.b16 %v3210, %v3209
        %v3337 = vpack.c.b16 %v3212, %v3211
        %v3338 = vpack.c.b16 %v3214, %v3213
        %v3339 = vpack.c.b16 %v3216, %v3215
        %v3340 = vpack.c.b16 %v3218, %v3217
        %v3341 = vpack.c.b16 %v3220, %v3219
        %v3342 = vpack.c.b16 %v3222, %v3221
        %v3343 = vpack.c.b16 %v3224, %v3223
        %v3344 = vpack.c.b16 %v3226, %v3225
        %v3345 = vpack.c.b16 %v3228, %v3227
        %v3346 = vpack.c.b16 %v3230, %v3229
        %v3347 = vpack.c.b16 %v3232, %v3231
        %v3348 = vpack.c.b16 %v3234, %v3233
        %v3349 = vpack.c.b16 %v3236, %v3235
        %v3350 = vpack.c.b16 %v3238, %v3237
        %v3351 = vpack.c.b16 %v3240, %v3239
        %v3352 = vpack.c.b16 %v3242, %v3241
        %v3353 = vpack.c.b16 %v3244, %v3243
        %v3354 = vpack.c.b16 %v3246, %v3245
        %v3355 = vpack.c.b16 %v3248, %v3247
        %v3356 = vpack.c.b16 %v3250, %v3249
        %v3357 = vpack.c.b16 %v3252, %v3251
        %v3358 = vpack.c.b16 %v3254, %v3253
        %v3359 = vpack.c.b16 %v3256, %v3255
        %v3360 = vpack.c.b16 %v3258, %v3257
        %v3361 = vpack.c.b16 %v3260, %v3259
        %v3362 = vpack.c.b16 %v3262, %v3261
        %v3363 = vpack.c.b16 %v3264, %v3263
        %v3364 = vpack.c.b16 %v3266, %v3265
        %v3365 = vpack.c.b16 %v3268, %v3267
        %v3366 = vpack.c.b16 %v3270, %v3269
        %v3367 = vpack.c.b16 %v3272, %v3271
        %v3368 = vpack.c.b16 %v3274, %v3273
        %v3369 = vpack.c.b16 %v3276, %v3275
        %v3370 = vpack.c.b16 %v3278, %v3277
        %v3371 = vpack.c.b16 %v3280, %v3279
        %v3372 = vpack.c.b16 %v3282, %v3281
        %v3373 = vpack.c.b16 %v3284, %v3283
        %v3374 = vpack.c.b16 %v3286, %v3285
        %v3375 = vpack.c.b16 %v3288, %v3287
        %v3376 = vpack.c.b16 %v3290, %v3289
        %v3377 = vpack.c.b16 %v3292, %v3291
        %v3378 = vpack.c.b16 %v3294, %v3293
        %v3379 = vpack.c.b16 %v3296, %v3295
        %v3380 = vpack.c.b16 %v3298, %v3297
        %v3381 = vpack.c.b16 %v3300, %v3299
        %v3382 = vpack.c.b16 %v3302, %v3301
        %v3383 = vpack.c.b16 %v3304, %v3303
        %v3384 = vpack.c.b16 %v3306, %v3305
        %v3385 = vpack.c.b16 %v3308, %v3307
        %v3386 = vpack.c.b16 %v3310, %v3309
        %v3387 = vpack.c.b16 %v3312, %v3311
        %v3388 = vpack.c.b16 %v3314, %v3313
        %v3389 = vpack.c.b16 %v3316, %v3315
        %v3390 = vpack.c.b16 %v3318, %v3317
        %3463 = vmatprep.subr.bf16.mxu0 0
        %3464 = vmatpush1.bf16.msra.mxu0 %v3319
        %3465 = vmatprep.subr.bf16.mxu0 0
        %3466 = vmatpush1.bf16.msra.mxu0 %v3320
        %3467 = vmatprep.subr.bf16.mxu0 0
        %3468 = vmatpush1.bf16.msra.mxu0 %v3321
        %3469 = vmatprep.subr.bf16.mxu0 0
        %3470 = vmatpush1.bf16.msra.mxu0 %v3322
        %3471 = vmatprep.subr.bf16.mxu0 0
        %3472 = vmatpush1.bf16.msra.mxu0 %v3323
        %3473 = vmatprep.subr.bf16.mxu0 0
        %3474 = vmatpush1.bf16.msra.mxu0 %v3324
        %3475 = vmatprep.subr.bf16.mxu0 0
        %3476 = vmatpush1.bf16.msra.mxu0 %v3325
        %3477 = vmatprep.subr.bf16.mxu0 0
        %3478 = vmatpush1.bf16.msra.mxu0 %v3326
        %3479 = vmatprep.subr.bf16.mxu0 0
        %3480 = vmatpush1.bf16.msra.mxu0 %v3327
        %3481 = vmatprep.subr.bf16.mxu0 0
        %3482 = vmatpush1.bf16.msra.mxu0 %v3328
        %3483 = vmatprep.subr.bf16.mxu0 0
        %3484 = vmatpush1.bf16.msra.mxu0 %v3329
        %3485 = vmatprep.subr.bf16.mxu0 0
        %3486 = vmatpush1.bf16.msra.mxu0 %v3330
        %3487 = vmatprep.subr.bf16.mxu0 0
        %3488 = vmatpush1.bf16.msra.mxu0 %v3331
        %3489 = vmatprep.subr.bf16.mxu0 0
        %3490 = vmatpush1.bf16.msra.mxu0 %v3332
        %3491 = vmatprep.subr.bf16.mxu0 0
        %3492 = vmatpush1.bf16.msra.mxu0 %v3333
        %3493 = vmatprep.subr.bf16.mxu0 0
        %3494 = vmatpush1.bf16.msra.mxu0 %v3334
        %3495 = vmatprep.mubr.bf16.mxu0 %v2870
        %3496 = vmatmul.mubr.bf16.gmra.mrb[0].mxu0 %v2869
        %v3497 = vpop.f32.mrb[0].mxu0
        %v3498 = vadd.f32 0.0, %v3497
        %v3499 = vpop.f32.mrb[0].mxu0
        %v3500 = vpop.f32.mrb[0].mxu0
        %v3501 = vadd.f32 0.0, %v3500
        %v3502 = vpop.f32.mrb[0].mxu0
        %3503 = vmatprep.mubr.bf16.mxu0 %v2879
        %3504 = vmatmul.mubr.bf16.gmra.mrb[0].mxu0 %v2878
        %v3505 = vpop.f32.mrb[0].mxu0
        %v3506 = vadd.f32 0.0, %v3505
        %v3507 = vpop.f32.mrb[0].mxu0
        %v3508 = vpop.f32.mrb[0].mxu0
        %v3509 = vadd.f32 0.0, %v3508
        %v3510 = vpop.f32.mrb[0].mxu0
        %3511 = vdwg.mxu0
        %3512 = vmatprep.subr.bf16.mxu0 0
        %3513 = vmatpush1.bf16.msra.mxu0 %v3335
        %3514 = vmatprep.subr.bf16.mxu0 0
        %3515 = vmatpush1.bf16.msra.mxu0 %v3336
        %3516 = vmatprep.subr.bf16.mxu0 0
        %3517 = vmatpush1.bf16.msra.mxu0 %v3337
        %3518 = vmatprep.subr.bf16.mxu0 0
        %3519 = vmatpush1.bf16.msra.mxu0 %v3338
        %3520 = vmatprep.subr.bf16.mxu0 0
        %3521 = vmatpush1.bf16.msra.mxu0 %v3339
        %3522 = vmatprep.subr.bf16.mxu0 0
        %3523 = vmatpush1.bf16.msra.mxu0 %v3340
        %3524 = vmatprep.subr.bf16.mxu0 0
        %3525 = vmatpush1.bf16.msra.mxu0 %v3341
        %3526 = vmatprep.subr.bf16.mxu0 0
        %3527 = vmatpush1.bf16.msra.mxu0 %v3342
        %3528 = vmatprep.subr.bf16.mxu0 0
        %3529 = vmatpush1.bf16.msra.mxu0 %v3343
        %3530 = vmatprep.subr.bf16.mxu0 0
        %3531 = vmatpush1.bf16.msra.mxu0 %v3344
        %3532 = vmatprep.subr.bf16.mxu0 0
        %3533 = vmatpush1.bf16.msra.mxu0 %v3345
        %3534 = vmatprep.subr.bf16.mxu0 0
        %3535 = vmatpush1.bf16.msra.mxu0 %v3346
        %3536 = vmatprep.subr.bf16.mxu0 0
        %3537 = vmatpush1.bf16.msra.mxu0 %v3347
        %3538 = vmatprep.subr.bf16.mxu0 0
        %3539 = vmatpush1.bf16.msra.mxu0 %v3348
        %3540 = vmatprep.subr.bf16.mxu0 0
        %3541 = vmatpush1.bf16.msra.mxu0 %v3349
        %3542 = vmatprep.subr.bf16.mxu0 0
        %3543 = vmatpush1.bf16.msra.mxu0 %v3350
        %3544 = vmatprep.mubr.bf16.mxu0 %v2872
        %3545 = vmatmul.mubr.bf16.gmra.mrb[0].mxu0 %v2871
        %v3546 = vpop.f32.mrb[0].mxu0
        %v3547 = vadd.f32 %v3498, %v3546
        %v3548 = vpop.f32.mrb[0].mxu0
        %v3549 = vpop.f32.mrb[0].mxu0
        %v3550 = vadd.f32 %v3501, %v3549
        %v3551 = vpop.f32.mrb[0].mxu0
        %3552 = vmatprep.mubr.bf16.mxu0 %v2881
        %3553 = vmatmul.mubr.bf16.gmra.mrb[0].mxu0 %v2880
        %v3554 = vpop.f32.mrb[0].mxu0
        %v3555 = vadd.f32 %v3506, %v3554
        %v3556 = vpop.f32.mrb[0].mxu0
        %v3557 = vpop.f32.mrb[0].mxu0
        %v3558 = vadd.f32 %v3509, %v3557
        %v3559 = vpop.f32.mrb[0].mxu0
        %3560 = vdwg.mxu0
        %3561 = vmatprep.subr.bf16.mxu0 0
        %3562 = vmatpush1.bf16.msra.mxu0 %v3351
        %3563 = vmatprep.subr.bf16.mxu0 0
        %3564 = vmatpush1.bf16.msra.mxu0 %v3352
        %3565 = vmatprep.subr.bf16.mxu0 0
        %3566 = vmatpush1.bf16.msra.mxu0 %v3353
        %3567 = vmatprep.subr.bf16.mxu0 0
        %3568 = vmatpush1.bf16.msra.mxu0 %v3354
        %3569 = vmatprep.subr.bf16.mxu0 0
        %3570 = vmatpush1.bf16.msra.mxu0 %v3355
        %3571 = vmatprep.subr.bf16.mxu0 0
        %3572 = vmatpush1.bf16.msra.mxu0 %v3356
        %3573 = vmatprep.subr.bf16.mxu0 0
        %3574 = vmatpush1.bf16.msra.mxu0 %v3357
        %3575 = vmatprep.subr.bf16.mxu0 0
        %3576 = vmatpush1.bf16.msra.mxu0 %v3358
        %3577 = vmatprep.subr.bf16.mxu0 0
        %3578 = vmatpush1.bf16.msra.mxu0 %v3359
        %3579 = vmatprep.subr.bf16.mxu0 0
        %3580 = vmatpush1.bf16.msra.mxu0 %v3360
        %3581 = vmatprep.subr.bf16.mxu0 0
        %3582 = vmatpush1.bf16.msra.mxu0 %v3361
        %3583 = vmatprep.subr.bf16.mxu0 0
        %3584 = vmatpush1.bf16.msra.mxu0 %v3362
        %3585 = vmatprep.subr.bf16.mxu0 0
        %3586 = vmatpush1.bf16.msra.mxu0 %v3363
        %3587 = vmatprep.subr.bf16.mxu0 0
        %3588 = vmatpush1.bf16.msra.mxu0 %v3364
        %3589 = vmatprep.subr.bf16.mxu0 0
        %3590 = vmatpush1.bf16.msra.mxu0 %v3365
        %3591 = vmatprep.subr.bf16.mxu0 0
        %3592 = vmatpush1.bf16.msra.mxu0 %v3366
        %3593 = vmatprep.mubr.bf16.mxu0 %v2874
        %3594 = vmatmul.mubr.bf16.gmra.mrb[0].mxu0 %v2873
        %v3595 = vpop.f32.mrb[0].mxu0
        %v3596 = vadd.f32 %v3547, %v3595
        %v3597 = vpop.f32.mrb[0].mxu0
        %v3598 = vpop.f32.mrb[0].mxu0
        %v3599 = vadd.f32 %v3550, %v3598
        %v3600 = vpop.f32.mrb[0].mxu0
        %3601 = vmatprep.mubr.bf16.mxu0 %v2883
        %3602 = vmatmul.mubr.bf16.gmra.mrb[0].mxu0 %v2882
        %v3603 = vpop.f32.mrb[0].mxu0
        %v3604 = vadd.f32 %v3555, %v3603
        %v3605 = vpop.f32.mrb[0].mxu0
        %v3606 = vpop.f32.mrb[0].mxu0
        %v3607 = vadd.f32 %v3558, %v3606
        %v3608 = vpop.f32.mrb[0].mxu0
        %3609 = vdwg.mxu0
        %3610 = vmatprep.subr.bf16.mxu0 0
        %3611 = vmatpush1.bf16.msra.mxu0 %v3367
        %3612 = vmatprep.subr.bf16.mxu0 0
        %3613 = vmatpush1.bf16.msra.mxu0 %v3368
        %3614 = vmatprep.subr.bf16.mxu0 0
        %3615 = vmatpush1.bf16.msra.mxu0 %v3369
        %3616 = vmatprep.subr.bf16.mxu0 0
        %3617 = vmatpush1.bf16.msra.mxu0 %v3370
        %3618 = vmatprep.subr.bf16.mxu0 0
        %3619 = vmatpush1.bf16.msra.mxu0 %v3371
        %3620 = vmatprep.subr.bf16.mxu0 0
        %3621 = vmatpush1.bf16.msra.mxu0 %v3372
        %3622 = vmatprep.subr.bf16.mxu0 0
        %3623 = vmatpush1.bf16.msra.mxu0 %v3373
        %3624 = vmatprep.subr.bf16.mxu0 0
        %3625 = vmatpush1.bf16.msra.mxu0 %v3374
        %3626 = vmatprep.subr.bf16.mxu0 0
        %3627 = vmatpush1.bf16.msra.mxu0 %v3375
        %3628 = vmatprep.subr.bf16.mxu0 0
        %3629 = vmatpush1.bf16.msra.mxu0 %v3376
        %3630 = vmatprep.subr.bf16.mxu0 0
        %3631 = vmatpush1.bf16.msra.mxu0 %v3377
        %3632 = vmatprep.subr.bf16.mxu0 0
        %3633 = vmatpush1.bf16.msra.mxu0 %v3378
        %3634 = vmatprep.subr.bf16.mxu0 0
        %3635 = vmatpush1.bf16.msra.mxu0 %v3379
        %3636 = vmatprep.subr.bf16.mxu0 0
        %3637 = vmatpush1.bf16.msra.mxu0 %v3380
        %3638 = vmatprep.subr.bf16.mxu0 0
        %3639 = vmatpush1.bf16.msra.mxu0 %v3381
        %3640 = vmatprep.subr.bf16.mxu0 0
        %3641 = vmatpush1.bf16.msra.mxu0 %v3382
        %3642 = vmatprep.mubr.bf16.mxu0 %v2876
        %3643 = vmatmul.mubr.bf16.gmra.mrb[0].mxu0 %v2875
        %v3644 = vpop.f32.mrb[0].mxu0
        %v3645 = vadd.f32 %v3596, %v3644
        %v3646 = vpop.f32.mrb[0].mxu0
        %v3647 = vpop.f32.mrb[0].mxu0
        %v3648 = vadd.f32 %v3599, %v3647
        %v3649 = vpop.f32.mrb[0].mxu0
        %3650 = vmatprep.mubr.bf16.mxu0 %v2885
        %3651 = vmatmul.mubr.bf16.gmra.mrb[0].mxu0 %v2884
        %v3652 = vpop.f32.mrb[0].mxu0
        %v3653 = vadd.f32 %v3604, %v3652
        %v3654 = vpop.f32.mrb[0].mxu0
        %v3655 = vpop.f32.mrb[0].mxu0
        %v3656 = vadd.f32 %v3607, %v3655
        %v3657 = vpop.f32.mrb[0].mxu0
        %3658 = vdwg.mxu0
        %3659 = vmatprep.subr.bf16.mxu0 0
        %3660 = vmatpush1.bf16.msra.mxu0 %v3383
        %3661 = vmatprep.subr.bf16.mxu0 0
        %3662 = vmatpush1.bf16.msra.mxu0 %v3384
        %3663 = vmatprep.subr.bf16.mxu0 0
        %3664 = vmatpush1.bf16.msra.mxu0 %v3385
        %3665 = vmatprep.subr.bf16.mxu0 0
        %3666 = vmatpush1.bf16.msra.mxu0 %v3386
        %3667 = vmatprep.subr.bf16.mxu0 0
        %3668 = vmatpush1.bf16.msra.mxu0 %v3387
        %3669 = vmatprep.subr.bf16.mxu0 0
        %3670 = vmatpush1.bf16.msra.mxu0 %v3388
        %3671 = vmatprep.subr.bf16.mxu0 0
        %3672 = vmatpush1.bf16.msra.mxu0 %v3389
        %3673 = vmatprep.subr.bf16.mxu0 0
        %3674 = vmatpush1.bf16.msra.mxu0 %v3390
        %3675 = vmatprep.subr.bf16.mxu0 0
        %3676 = vmatpush1.bf16.msra.mxu0 0
        %3677 = vmatprep.subr.bf16.mxu0 0
        %3678 = vmatpush1.bf16.msra.mxu0 0
        %3679 = vmatprep.subr.bf16.mxu0 0
        %3680 = vmatpush1.bf16.msra.mxu0 0
        %3681 = vmatprep.subr.bf16.mxu0 0
        %3682 = vmatpush1.bf16.msra.mxu0 0
        %3683 = vmatprep.subr.bf16.mxu0 0
        %3684 = vmatpush1.bf16.msra.mxu0 0
        %3685 = vmatprep.subr.bf16.mxu0 0
        %3686 = vmatpush1.bf16.msra.mxu0 0
        %3687 = vmatprep.subr.bf16.mxu0 0
        %3688 = vmatpush1.bf16.msra.mxu0 0
        %3689 = vmatprep.subr.bf16.mxu0 0
        %3690 = vmatpush1.bf16.msra.mxu0 0
        %3691 = vmatprep.mubr.bf16.mxu0 0
        %3692 = vmatmul.mubr.bf16.gmra.mrb[0].mxu0 %v2877
        %v3693 = vpop.f32.mrb[0].mxu0
        %v3694 = vadd.f32 %v3645, %v3693
        %v3695 = vpop.f32.mrb[0].mxu0
        %v3696 = vpop.f32.mrb[0].mxu0
        %v3697 = vadd.f32 %v3648, %v3696
        %v3698 = vpop.f32.mrb[0].mxu0
        %3699 = vmatprep.mubr.bf16.mxu0 0
        %3700 = vmatmul.mubr.bf16.gmra.mrb[0].mxu0 %v2886
        %v3701 = vpop.f32.mrb[0].mxu0
        %v3702 = vadd.f32 %v3653, %v3701
        %v3703 = vpop.f32.mrb[0].mxu0
        %v3704 = vpop.f32.mrb[0].mxu0
        %v3705 = vadd.f32 %v3656, %v3704
        %v3706 = vpop.f32.mrb[0].mxu0
        %3707 = vdwg.mxu0
        %v3708 = vld [vmem:[%s7] sm:$0x1]
        %v3710 = vlaneseq
        %v3711 = vshrl.u32 %v3710, 7
        %v3712 = vsub.s32 0, %v3711
        %v3713 = vrot.slane %v3708, %v3712
        %v3715 = vmul.f32 %v3694, %v3713
        %v3716 = vmul.f32 %v3697, %v3713
        %v3717 = vmul.f32 %v3702, %v3713
        %v3718 = vmul.f32 %v3705, %v3713
        %v3719 = vld [vmem:[%s8] sm:$0x1]
        %v3721 = vlaneseq
        %v3722 = vshrl.u32 %v3721, 7
        %v3723 = vsub.s32 0, %v3722
        %v3724 = vrot.slane %v3719, %v3723
        %v3726 = vadd.f32 %v3715, %v3724
        %v3727 = vadd.f32 %v3716, %v3724
        %v3728 = vadd.f32 %v3717, %v3724
        %v3729 = vadd.f32 %v3718, %v3724
        %v3730 = vmax.f32 %v3726, 0.0
        %v3731 = vmax.f32 %v3727, 0.0
        %v3732 = vmax.f32 %v3728, 0.0
        %v3733 = vmax.f32 %v3729, 0.0
        %v3734 = vstv %s2772
        %v3735 = vadd.s32 %v698, %v3734
        %v3736 = vadd.s32 %v699, %v3734
        %v3737 = vadd.s32 %v700, %v3734
        %v3738 = vadd.s32 %v701, %v3734
        %vm3739 = vcmp.ge.s32.totalorder %v3735, 0
        %vm3740 = vcmp.ge.s32.totalorder %v3736, 0
        %vm3741 = vcmp.ge.s32.totalorder %v3737, 0
        %vm3742 = vcmp.ge.s32.totalorder %v3738, 0
        %vm3743 = vcmp.lt.s32.totalorder %v3735, 16
        %vm3744 = vcmp.lt.s32.totalorder %v3736, 16
        %vm3745 = vcmp.lt.s32.totalorder %v3737, 16
        %vm3746 = vcmp.lt.s32.totalorder %v3738, 16
        %vm3747 = vmand %vm3739, %vm3743
        %vm3748 = vmand %vm3740, %vm3744
        %vm3749 = vmand %vm3741, %vm3745
        %vm3750 = vmand %vm3742, %vm3746
        %v3751 = vsel %vm3747, 1, 0
        %v3752 = vsel %vm3748, 1, 0
        %v3753 = vsel %vm3749, 1, 0
        %v3754 = vsel %vm3750, 1, 0
        %vm3755 = vcmp.eq.s32.totalorder %v3751, 1
        %vm3756 = vcmp.eq.s32.totalorder %v3752, 1
        %vm3757 = vcmp.eq.s32.totalorder %v3753, 1
        %vm3758 = vcmp.eq.s32.totalorder %v3754, 1
        %v3759 = vsel %vm3755, %v3730, 0.0
        %v3760 = vsel %vm3756, %v3731, 0.0
        %v3761 = vsel %vm3757, %v3732, 0.0
        %v3762 = vsel %vm3758, %v3733, 0.0
        %s3763 = sadd.s32 %s677, 4294967292
        %v3768 = vrot.slane %v3759, 1
        %v3769 = vrot.slane %v3760, 1
        %v3770 = vsel %vm766, %v3768, %v3769
        %v3771 = vrot.slane %v3761, 1
        %v3772 = vsel %vm766, %v3769, %v3771
        %v3773 = vrot.slane %v3762, 1
        %v3774 = vsel %vm766, %v3771, %v3773
        %v3778 = vrot.slane %v3759, 2
        %v3779 = vrot.slane %v3760, 2
        %v3780 = vsel %vm799, %v3778, %v3779
        %v3781 = vrot.slane %v3761, 2
        %v3782 = vsel %vm799, %v3779, %v3781
        %v3783 = vrot.slane %v3762, 2
        %v3784 = vsel %vm799, %v3781, %v3783
        %v3788 = vrot.slane %v3759, 3
        %v3789 = vrot.slane %v3760, 3
        %v3790 = vsel %vm832, %v3788, %v3789
        %v3791 = vrot.slane %v3761, 3
        %v3792 = vsel %vm832, %v3789, %v3791
        %v3793 = vrot.slane %v3762, 3
        %v3794 = vsel %vm832, %v3791, %v3793
        %v3798 = vrot.slane %v3759, 4
        %v3799 = vrot.slane %v3760, 4
        %v3800 = vsel %vm865, %v3798, %v3799
        %v3801 = vrot.slane %v3761, 4
        %v3802 = vsel %vm865, %v3799, %v3801
        %v3803 = vrot.slane %v3762, 4
        %v3804 = vsel %vm865, %v3801, %v3803
        %v3808 = vrot.slane %v3759, 5
        %v3809 = vrot.slane %v3760, 5
        %v3810 = vsel %vm898, %v3808, %v3809
        %v3811 = vrot.slane %v3761, 5
        %v3812 = vsel %vm898, %v3809, %v3811
        %v3813 = vrot.slane %v3762, 5
        %v3814 = vsel %vm898, %v3811, %v3813
        %v3818 = vrot.slane %v3759, 6
        %v3819 = vrot.slane %v3760, 6
        %v3820 = vsel %vm931, %v3818, %v3819
        %v3821 = vrot.slane %v3761, 6
        %v3822 = vsel %vm931, %v3819, %v3821
        %v3823 = vrot.slane %v3762, 6
        %v3824 = vsel %vm931, %v3821, %v3823
        %v3828 = vrot.slane %v3759, 7
        %v3829 = vrot.slane %v3760, 7
        %v3830 = vsel %vm964, %v3828, %v3829
        %v3831 = vrot.slane %v3761, 7
        %v3832 = vsel %vm964, %v3829, %v3831
        %v3833 = vrot.slane %v3762, 7
        %v3834 = vsel %vm964, %v3831, %v3833
        %v3838 = vpack.c.bf16 %v3760, %v3759
        %v3839 = vpack.c.bf16 %v3772, %v3770
        %v3840 = vpack.c.bf16 %v3782, %v3780
        %v3841 = vpack.c.bf16 %v3792, %v3790
        %v3842 = vpack.c.bf16 %v3802, %v3800
        %v3843 = vpack.c.bf16 %v3812, %v3810
        %v3844 = vpack.c.bf16 %v3822, %v3820
        %v3845 = vpack.c.bf16 %v3832, %v3830
        %v3846 = vpack.c.bf16 %v3761, %v3760
        %v3847 = vpack.c.bf16 %v3761, %v3761
        %v3848 = vpack.c.bf16 %v3774, %v3774
        %v3849 = vpack.c.bf16 %v3784, %v3784
        %v3850 = vpack.c.bf16 %v3794, %v3794
        %v3851 = vpack.c.bf16 %v3804, %v3804
        %v3852 = vpack.c.bf16 %v3814, %v3814
        %v3853 = vpack.c.bf16 %v3824, %v3824
        %v3854 = vpack.c.bf16 %v3834, %v3834
        %v3855 = vpack.c.bf16 %v3762, %v3762
        %v3856 = vld [vmem:[#allocation7] sm:$0xf]
        %v3857 = vld [vmem:[#allocation7 + $0x4] sm:$0xf]
        %v3858 = vld [vmem:[#allocation7 + $0x8] sm:$0xf]
        %v3859 = vld [vmem:[#allocation7 + $0xc] sm:$0xf]
        %v3860 = vld [vmem:[#allocation7 + $0x10] sm:$0xf]
        %v3861 = vld [vmem:[#allocation7 + $0x14] sm:$0xf]
        %v3862 = vld [vmem:[#allocation7 + $0x18] sm:$0xf]
        %v3863 = vld [vmem:[#allocation7 + $0x1c] sm:$0xf]
        %v3864 = vld [vmem:[#allocation7 + $0x20] sm:$0xf]
        %v3865 = vld [vmem:[#allocation7 + $0x24] sm:$0xf]
        %v3866 = vld [vmem:[#allocation7 + $0x28] sm:$0xf]
        %v3867 = vld [vmem:[#allocation7 + $0x2c] sm:$0xf]
        %v3868 = vld [vmem:[#allocation7 + $0x30] sm:$0xf]
        %v3869 = vld [vmem:[#allocation7 + $0x34] sm:$0xf]
        %v3870 = vld [vmem:[#allocation7 + $0x38] sm:$0xf]
        %v3871 = vld [vmem:[#allocation7 + $0x3c] sm:$0xf]
        %v3872 = vld [vmem:[#allocation7 + $0x40] sm:$0xf]
        %v3873 = vld [vmem:[#allocation7 + $0x44] sm:$0xf]
        %v3874 = vld [vmem:[#allocation7 + $0x48] sm:$0xf]
        %v3875 = vld [vmem:[#allocation7 + $0x4c] sm:$0xf]
        %v3876 = vld [vmem:[#allocation7 + $0x50] sm:$0xf]
        %v3877 = vld [vmem:[#allocation7 + $0x54] sm:$0xf]
        %v3878 = vld [vmem:[#allocation7 + $0x58] sm:$0xf]
        %v3879 = vld [vmem:[#allocation7 + $0x5c] sm:$0xf]
        %v3880 = vld [vmem:[#allocation7 + $0x60] sm:$0xf]
        %v3881 = vld [vmem:[#allocation7 + $0x64] sm:$0xf]
        %v3882 = vld [vmem:[#allocation7 + $0x68] sm:$0xf]
        %v3883 = vld [vmem:[#allocation7 + $0x6c] sm:$0xf]
        %v3884 = vld [vmem:[#allocation7 + $0x70] sm:$0xf]
        %v3885 = vld [vmem:[#allocation7 + $0x74] sm:$0xf]
        %v3886 = vld [vmem:[#allocation7 + $0x78] sm:$0xf]
        %v3887 = vld [vmem:[#allocation7 + $0x7c] sm:$0xf]
        %v3888 = vld [vmem:[#allocation7 + $0x80] sm:$0xf]
        %v3889 = vld [vmem:[#allocation7 + $0x84] sm:$0xf]
        %v3890 = vld [vmem:[#allocation7 + $0x88] sm:$0xf]
        %v3891 = vld [vmem:[#allocation7 + $0x8c] sm:$0xf]
        %v3892 = vld [vmem:[#allocation7 + $0x90] sm:$0xf]
        %v3893 = vld [vmem:[#allocation7 + $0x94] sm:$0xf]
        %v3894 = vld [vmem:[#allocation7 + $0x98] sm:$0xf]
        %v3895 = vld [vmem:[#allocation7 + $0x9c] sm:$0xf]
        %v3896 = vld [vmem:[#allocation7 + $0xa0] sm:$0xf]
        %v3897 = vld [vmem:[#allocation7 + $0xa4] sm:$0xf]
        %v3898 = vld [vmem:[#allocation7 + $0xa8] sm:$0xf]
        %v3899 = vld [vmem:[#allocation7 + $0xac] sm:$0xf]
        %v3900 = vld [vmem:[#allocation7 + $0xb0] sm:$0xf]
        %v3901 = vld [vmem:[#allocation7 + $0xb4] sm:$0xf]
        %v3902 = vld [vmem:[#allocation7 + $0xb8] sm:$0xf]
        %v3903 = vld [vmem:[#allocation7 + $0xbc] sm:$0xf]
        %v3904 = vld [vmem:[#allocation7 + $0xc0] sm:$0xf]
        %v3905 = vld [vmem:[#allocation7 + $0xc4] sm:$0xf]
        %v3906 = vld [vmem:[#allocation7 + $0xc8] sm:$0xf]
        %v3907 = vld [vmem:[#allocation7 + $0xcc] sm:$0xf]
        %v3908 = vld [vmem:[#allocation7 + $0xd0] sm:$0xf]
        %v3909 = vld [vmem:[#allocation7 + $0xd4] sm:$0xf]
        %v3910 = vld [vmem:[#allocation7 + $0xd8] sm:$0xf]
        %v3911 = vld [vmem:[#allocation7 + $0xdc] sm:$0xf]
        %v3912 = vld [vmem:[#allocation7 + $0xe0] sm:$0xf]
        %v3913 = vld [vmem:[#allocation7 + $0xe4] sm:$0xf]
        %v3914 = vld [vmem:[#allocation7 + $0xe8] sm:$0xf]
        %v3915 = vld [vmem:[#allocation7 + $0xec] sm:$0xf]
        %v3916 = vld [vmem:[#allocation7 + $0xf0] sm:$0xf]
        %v3917 = vld [vmem:[#allocation7 + $0xf4] sm:$0xf]
        %v3918 = vld [vmem:[#allocation7 + $0xf8] sm:$0xf]
        %v3919 = vld [vmem:[#allocation7 + $0xfc] sm:$0xf]
        %v3920 = vld [vmem:[#allocation7 + $0x100] sm:$0xf]
        %v3921 = vld [vmem:[#allocation7 + $0x104] sm:$0xf]
        %v3922 = vld [vmem:[#allocation7 + $0x108] sm:$0xf]
        %v3923 = vld [vmem:[#allocation7 + $0x10c] sm:$0xf]
        %v3924 = vld [vmem:[#allocation7 + $0x110] sm:$0xf]
        %v3925 = vld [vmem:[#allocation7 + $0x114] sm:$0xf]
        %v3926 = vld [vmem:[#allocation7 + $0x118] sm:$0xf]
        %v3927 = vld [vmem:[#allocation7 + $0x11c] sm:$0xf]
        %v3928 = vld [vmem:[#allocation7 + $0x120] sm:$0xf]
        %v3929 = vld [vmem:[#allocation7 + $0x124] sm:$0xf]
        %v3930 = vld [vmem:[#allocation7 + $0x128] sm:$0xf]
        %v3931 = vld [vmem:[#allocation7 + $0x12c] sm:$0xf]
        %v3932 = vld [vmem:[#allocation7 + $0x130] sm:$0xf]
        %v3933 = vld [vmem:[#allocation7 + $0x134] sm:$0xf]
        %v3934 = vld [vmem:[#allocation7 + $0x138] sm:$0xf]
        %v3935 = vld [vmem:[#allocation7 + $0x13c] sm:$0xf]
        %v3936 = vld [vmem:[#allocation7 + $0x140] sm:$0xf]
        %v3937 = vld [vmem:[#allocation7 + $0x144] sm:$0xf]
        %v3938 = vld [vmem:[#allocation7 + $0x148] sm:$0xf]
        %v3939 = vld [vmem:[#allocation7 + $0x14c] sm:$0xf]
        %v3940 = vld [vmem:[#allocation7 + $0x150] sm:$0xf]
        %v3941 = vld [vmem:[#allocation7 + $0x154] sm:$0xf]
        %v3942 = vld [vmem:[#allocation7 + $0x158] sm:$0xf]
        %v3943 = vld [vmem:[#allocation7 + $0x15c] sm:$0xf]
        %v3944 = vld [vmem:[#allocation7 + $0x160] sm:$0xf]
        %v3945 = vld [vmem:[#allocation7 + $0x164] sm:$0xf]
        %v3946 = vld [vmem:[#allocation7 + $0x168] sm:$0xf]
        %v3947 = vld [vmem:[#allocation7 + $0x16c] sm:$0xf]
        %v3948 = vld [vmem:[#allocation7 + $0x170] sm:$0xf]
        %v3949 = vld [vmem:[#allocation7 + $0x174] sm:$0xf]
        %v3950 = vld [vmem:[#allocation7 + $0x178] sm:$0xf]
        %v3951 = vld [vmem:[#allocation7 + $0x17c] sm:$0xf]
        %v3952 = vld [vmem:[#allocation7 + $0x180] sm:$0xf]
        %v3953 = vld [vmem:[#allocation7 + $0x184] sm:$0xf]
        %v3954 = vld [vmem:[#allocation7 + $0x188] sm:$0xf]
        %v3955 = vld [vmem:[#allocation7 + $0x18c] sm:$0xf]
        %v3956 = vld [vmem:[#allocation7 + $0x190] sm:$0xf]
        %v3957 = vld [vmem:[#allocation7 + $0x194] sm:$0xf]
        %v3958 = vld [vmem:[#allocation7 + $0x198] sm:$0xf]
        %v3959 = vld [vmem:[#allocation7 + $0x19c] sm:$0xf]
        %v3960 = vld [vmem:[#allocation7 + $0x1a0] sm:$0xf]
        %v3961 = vld [vmem:[#allocation7 + $0x1a4] sm:$0xf]
        %v3962 = vld [vmem:[#allocation7 + $0x1a8] sm:$0xf]
        %v3963 = vld [vmem:[#allocation7 + $0x1ac] sm:$0xf]
        %v3964 = vld [vmem:[#allocation7 + $0x1b0] sm:$0xf]
        %v3965 = vld [vmem:[#allocation7 + $0x1b4] sm:$0xf]
        %v3966 = vld [vmem:[#allocation7 + $0x1b8] sm:$0xf]
        %v3967 = vld [vmem:[#allocation7 + $0x1bc] sm:$0xf]
        %v3968 = vld [vmem:[#allocation7 + $0x1c0] sm:$0xf]
        %v3969 = vld [vmem:[#allocation7 + $0x1c4] sm:$0xf]
        %v3970 = vld [vmem:[#allocation7 + $0x1c8] sm:$0xf]
        %v3971 = vld [vmem:[#allocation7 + $0x1cc] sm:$0xf]
        %v3972 = vld [vmem:[#allocation7 + $0x1d0] sm:$0xf]
        %v3973 = vld [vmem:[#allocation7 + $0x1d4] sm:$0xf]
        %v3974 = vld [vmem:[#allocation7 + $0x1d8] sm:$0xf]
        %v3975 = vld [vmem:[#allocation7 + $0x1dc] sm:$0xf]
        %v3976 = vld [vmem:[#allocation7 + $0x1e0] sm:$0xf]
        %v3977 = vld [vmem:[#allocation7 + $0x1e4] sm:$0xf]
        %v3978 = vld [vmem:[#allocation7 + $0x1e8] sm:$0xf]
        %v3979 = vld [vmem:[#allocation7 + $0x1ec] sm:$0xf]
        %v3980 = vld [vmem:[#allocation7 + $0x1f0] sm:$0xf]
        %v3981 = vld [vmem:[#allocation7 + $0x1f4] sm:$0xf]
        %v3982 = vld [vmem:[#allocation7 + $0x1f8] sm:$0xf]
        %v3983 = vld [vmem:[#allocation7 + $0x1fc] sm:$0xf]
        %v3984 = vld [vmem:[#allocation7 + $0x200] sm:$0xf]
        %v3985 = vld [vmem:[#allocation7 + $0x204] sm:$0xf]
        %v3986 = vld [vmem:[#allocation7 + $0x208] sm:$0xf]
        %v3987 = vld [vmem:[#allocation7 + $0x20c] sm:$0xf]
        %v3988 = vld [vmem:[#allocation7 + $0x210] sm:$0xf]
        %v3989 = vld [vmem:[#allocation7 + $0x214] sm:$0xf]
        %v3990 = vld [vmem:[#allocation7 + $0x218] sm:$0xf]
        %v3991 = vld [vmem:[#allocation7 + $0x21c] sm:$0xf]
        %v3992 = vld [vmem:[#allocation7 + $0x220] sm:$0xf]
        %v3993 = vld [vmem:[#allocation7 + $0x224] sm:$0xf]
        %v3994 = vld [vmem:[#allocation7 + $0x228] sm:$0xf]
        %v3995 = vld [vmem:[#allocation7 + $0x22c] sm:$0xf]
        %v3996 = vld [vmem:[#allocation7 + $0x230] sm:$0xf]
        %v3997 = vld [vmem:[#allocation7 + $0x234] sm:$0xf]
        %v3998 = vld [vmem:[#allocation7 + $0x238] sm:$0xf]
        %v3999 = vld [vmem:[#allocation7 + $0x23c] sm:$0xf]
        %v4144 = vunpack.c.l.b16 %v3856
        %v4145 = vunpack.c.l.b16 %v3857
        %v4146 = vunpack.c.l.b16 %v3858
        %v4147 = vunpack.c.l.b16 %v3859
        %v4148 = vunpack.c.l.b16 %v3860
        %v4149 = vunpack.c.l.b16 %v3861
        %v4150 = vunpack.c.l.b16 %v3862
        %v4151 = vunpack.c.l.b16 %v3863
        %v4152 = vunpack.c.l.b16 %v3864
        %v4153 = vunpack.c.l.b16 %v3865
        %v4154 = vunpack.c.l.b16 %v3866
        %v4155 = vunpack.c.l.b16 %v3867
        %v4156 = vunpack.c.l.b16 %v3868
        %v4157 = vunpack.c.l.b16 %v3869
        %v4158 = vunpack.c.l.b16 %v3870
        %v4159 = vunpack.c.l.b16 %v3871
        %v4160 = vunpack.c.l.b16 %v3872
        %v4161 = vunpack.c.l.b16 %v3873
        %v4162 = vunpack.c.l.b16 %v3874
        %v4163 = vunpack.c.l.b16 %v3875
        %v4164 = vunpack.c.l.b16 %v3876
        %v4165 = vunpack.c.l.b16 %v3877
        %v4166 = vunpack.c.l.b16 %v3878
        %v4167 = vunpack.c.l.b16 %v3879
        %v4168 = vunpack.c.l.b16 %v3880
        %v4169 = vunpack.c.l.b16 %v3881
        %v4170 = vunpack.c.l.b16 %v3882
        %v4171 = vunpack.c.l.b16 %v3883
        %v4172 = vunpack.c.l.b16 %v3884
        %v4173 = vunpack.c.l.b16 %v3885
        %v4174 = vunpack.c.l.b16 %v3886
        %v4175 = vunpack.c.l.b16 %v3887
        %v4176 = vunpack.c.l.b16 %v3888
        %v4177 = vunpack.c.l.b16 %v3889
        %v4178 = vunpack.c.l.b16 %v3890
        %v4179 = vunpack.c.l.b16 %v3891
        %v4180 = vunpack.c.l.b16 %v3892
        %v4181 = vunpack.c.l.b16 %v3893
        %v4182 = vunpack.c.l.b16 %v3894
        %v4183 = vunpack.c.l.b16 %v3895
        %v4184 = vunpack.c.l.b16 %v3896
        %v4185 = vunpack.c.l.b16 %v3897
        %v4186 = vunpack.c.l.b16 %v3898
        %v4187 = vunpack.c.l.b16 %v3899
        %v4188 = vunpack.c.l.b16 %v3900
        %v4189 = vunpack.c.l.b16 %v3901
        %v4190 = vunpack.c.l.b16 %v3902
        %v4191 = vunpack.c.l.b16 %v3903
        %v4192 = vunpack.c.l.b16 %v3904
        %v4193 = vunpack.c.l.b16 %v3905
        %v4194 = vunpack.c.l.b16 %v3906
        %v4195 = vunpack.c.l.b16 %v3907
        %v4196 = vunpack.c.l.b16 %v3908
        %v4197 = vunpack.c.l.b16 %v3909
        %v4198 = vunpack.c.l.b16 %v3910
        %v4199 = vunpack.c.l.b16 %v3911
        %v4200 = vunpack.c.l.b16 %v3912
        %v4201 = vunpack.c.l.b16 %v3913
        %v4202 = vunpack.c.l.b16 %v3914
        %v4203 = vunpack.c.l.b16 %v3915
        %v4204 = vunpack.c.l.b16 %v3916
        %v4205 = vunpack.c.l.b16 %v3917
        %v4206 = vunpack.c.l.b16 %v3918
        %v4207 = vunpack.c.l.b16 %v3919
        %v4208 = vunpack.c.l.b16 %v3920
        %v4209 = vunpack.c.l.b16 %v3921
        %v4210 = vunpack.c.l.b16 %v3922
        %v4211 = vunpack.c.l.b16 %v3923
        %v4212 = vunpack.c.l.b16 %v3924
        %v4213 = vunpack.c.l.b16 %v3925
        %v4214 = vunpack.c.l.b16 %v3926
        %v4215 = vunpack.c.l.b16 %v3927
        %v4216 = vunpack.c.l.b16 %v3928
        %v4217 = vunpack.c.l.b16 %v3929
        %v4218 = vunpack.c.l.b16 %v3930
        %v4219 = vunpack.c.l.b16 %v3931
        %v4220 = vunpack.c.l.b16 %v3932
        %v4221 = vunpack.c.l.b16 %v3933
        %v4222 = vunpack.c.l.b16 %v3934
        %v4223 = vunpack.c.l.b16 %v3935
        %v4224 = vunpack.c.l.b16 %v3936
        %v4225 = vunpack.c.l.b16 %v3937
        %v4226 = vunpack.c.l.b16 %v3938
        %v4227 = vunpack.c.l.b16 %v3939
        %v4228 = vunpack.c.l.b16 %v3940
        %v4229 = vunpack.c.l.b16 %v3941
        %v4230 = vunpack.c.l.b16 %v3942
        %v4231 = vunpack.c.l.b16 %v3943
        %v4232 = vunpack.c.l.b16 %v3944
        %v4233 = vunpack.c.l.b16 %v3945
        %v4234 = vunpack.c.l.b16 %v3946
        %v4235 = vunpack.c.l.b16 %v3947
        %v4236 = vunpack.c.l.b16 %v3948
        %v4237 = vunpack.c.l.b16 %v3949
        %v4238 = vunpack.c.l.b16 %v3950
        %v4239 = vunpack.c.l.b16 %v3951
        %v4240 = vunpack.c.l.b16 %v3952
        %v4241 = vunpack.c.l.b16 %v3953
        %v4242 = vunpack.c.l.b16 %v3954
        %v4243 = vunpack.c.l.b16 %v3955
        %v4244 = vunpack.c.l.b16 %v3956
        %v4245 = vunpack.c.l.b16 %v3957
        %v4246 = vunpack.c.l.b16 %v3958
        %v4247 = vunpack.c.l.b16 %v3959
        %v4248 = vunpack.c.l.b16 %v3960
        %v4249 = vunpack.c.l.b16 %v3961
        %v4250 = vunpack.c.l.b16 %v3962
        %v4251 = vunpack.c.l.b16 %v3963
        %v4252 = vunpack.c.l.b16 %v3964
        %v4253 = vunpack.c.l.b16 %v3965
        %v4254 = vunpack.c.l.b16 %v3966
        %v4255 = vunpack.c.l.b16 %v3967
        %v4256 = vunpack.c.l.b16 %v3968
        %v4257 = vunpack.c.l.b16 %v3969
        %v4258 = vunpack.c.l.b16 %v3970
        %v4259 = vunpack.c.l.b16 %v3971
        %v4260 = vunpack.c.l.b16 %v3972
        %v4261 = vunpack.c.l.b16 %v3973
        %v4262 = vunpack.c.l.b16 %v3974
        %v4263 = vunpack.c.l.b16 %v3975
        %v4264 = vunpack.c.l.b16 %v3976
        %v4265 = vunpack.c.l.b16 %v3977
        %v4266 = vunpack.c.l.b16 %v3978
        %v4267 = vunpack.c.l.b16 %v3979
        %v4268 = vunpack.c.l.b16 %v3980
        %v4269 = vunpack.c.l.b16 %v3981
        %v4270 = vunpack.c.l.b16 %v3982
        %v4271 = vunpack.c.l.b16 %v3983
        %v4272 = vunpack.c.l.b16 %v3984
        %v4273 = vunpack.c.l.b16 %v3985
        %v4274 = vunpack.c.l.b16 %v3986
        %v4275 = vunpack.c.l.b16 %v3987
        %v4276 = vunpack.c.l.b16 %v3988
        %v4277 = vunpack.c.l.b16 %v3989
        %v4278 = vunpack.c.l.b16 %v3990
        %v4279 = vunpack.c.l.b16 %v3991
        %v4280 = vunpack.c.l.b16 %v3992
        %v4281 = vunpack.c.l.b16 %v3993
        %v4282 = vunpack.c.l.b16 %v3994
        %v4283 = vunpack.c.l.b16 %v3995
        %v4284 = vunpack.c.l.b16 %v3996
        %v4285 = vunpack.c.l.b16 %v3997
        %v4286 = vunpack.c.l.b16 %v3998
        %v4287 = vunpack.c.l.b16 %v3999
        %v4288 = vpack.c.b16 %v4145, %v4144
        %v4289 = vpack.c.b16 %v4147, %v4146
        %v4290 = vpack.c.b16 %v4149, %v4148
        %v4291 = vpack.c.b16 %v4151, %v4150
        %v4292 = vpack.c.b16 %v4153, %v4152
        %v4293 = vpack.c.b16 %v4155, %v4154
        %v4294 = vpack.c.b16 %v4157, %v4156
        %v4295 = vpack.c.b16 %v4159, %v4158
        %v4296 = vpack.c.b16 %v4161, %v4160
        %v4297 = vpack.c.b16 %v4163, %v4162
        %v4298 = vpack.c.b16 %v4165, %v4164
        %v4299 = vpack.c.b16 %v4167, %v4166
        %v4300 = vpack.c.b16 %v4169, %v4168
        %v4301 = vpack.c.b16 %v4171, %v4170
        %v4302 = vpack.c.b16 %v4173, %v4172
        %v4303 = vpack.c.b16 %v4175, %v4174
        %v4304 = vpack.c.b16 %v4177, %v4176
        %v4305 = vpack.c.b16 %v4179, %v4178
        %v4306 = vpack.c.b16 %v4181, %v4180
        %v4307 = vpack.c.b16 %v4183, %v4182
        %v4308 = vpack.c.b16 %v4185, %v4184
        %v4309 = vpack.c.b16 %v4187, %v4186
        %v4310 = vpack.c.b16 %v4189, %v4188
        %v4311 = vpack.c.b16 %v4191, %v4190
        %v4312 = vpack.c.b16 %v4193, %v4192
        %v4313 = vpack.c.b16 %v4195, %v4194
        %v4314 = vpack.c.b16 %v4197, %v4196
        %v4315 = vpack.c.b16 %v4199, %v4198
        %v4316 = vpack.c.b16 %v4201, %v4200
        %v4317 = vpack.c.b16 %v4203, %v4202
        %v4318 = vpack.c.b16 %v4205, %v4204
        %v4319 = vpack.c.b16 %v4207, %v4206
        %v4320 = vpack.c.b16 %v4209, %v4208
        %v4321 = vpack.c.b16 %v4211, %v4210
        %v4322 = vpack.c.b16 %v4213, %v4212
        %v4323 = vpack.c.b16 %v4215, %v4214
        %v4324 = vpack.c.b16 %v4217, %v4216
        %v4325 = vpack.c.b16 %v4219, %v4218
        %v4326 = vpack.c.b16 %v4221, %v4220
        %v4327 = vpack.c.b16 %v4223, %v4222
        %v4328 = vpack.c.b16 %v4225, %v4224
        %v4329 = vpack.c.b16 %v4227, %v4226
        %v4330 = vpack.c.b16 %v4229, %v4228
        %v4331 = vpack.c.b16 %v4231, %v4230
        %v4332 = vpack.c.b16 %v4233, %v4232
        %v4333 = vpack.c.b16 %v4235, %v4234
        %v4334 = vpack.c.b16 %v4237, %v4236
        %v4335 = vpack.c.b16 %v4239, %v4238
        %v4336 = vpack.c.b16 %v4241, %v4240
        %v4337 = vpack.c.b16 %v4243, %v4242
        %v4338 = vpack.c.b16 %v4245, %v4244
        %v4339 = vpack.c.b16 %v4247, %v4246
        %v4340 = vpack.c.b16 %v4249, %v4248
        %v4341 = vpack.c.b16 %v4251, %v4250
        %v4342 = vpack.c.b16 %v4253, %v4252
        %v4343 = vpack.c.b16 %v4255, %v4254
        %v4344 = vpack.c.b16 %v4257, %v4256
        %v4345 = vpack.c.b16 %v4259, %v4258
        %v4346 = vpack.c.b16 %v4261, %v4260
        %v4347 = vpack.c.b16 %v4263, %v4262
        %v4348 = vpack.c.b16 %v4265, %v4264
        %v4349 = vpack.c.b16 %v4267, %v4266
        %v4350 = vpack.c.b16 %v4269, %v4268
        %v4351 = vpack.c.b16 %v4271, %v4270
        %v4352 = vpack.c.b16 %v4273, %v4272
        %v4353 = vpack.c.b16 %v4275, %v4274
        %v4354 = vpack.c.b16 %v4277, %v4276
        %v4355 = vpack.c.b16 %v4279, %v4278
        %v4356 = vpack.c.b16 %v4281, %v4280
        %v4357 = vpack.c.b16 %v4283, %v4282
        %v4358 = vpack.c.b16 %v4285, %v4284
        %v4359 = vpack.c.b16 %v4287, %v4286
        %4432 = vmatprep.subr.bf16.mxu0 0
        %4433 = vmatpush1.bf16.msra.mxu0 %v4288
        %4434 = vmatprep.subr.bf16.mxu0 0
        %4435 = vmatpush1.bf16.msra.mxu0 %v4289
        %4436 = vmatprep.subr.bf16.mxu0 0
        %4437 = vmatpush1.bf16.msra.mxu0 %v4290
        %4438 = vmatprep.subr.bf16.mxu0 0
        %4439 = vmatpush1.bf16.msra.mxu0 %v4291
        %4440 = vmatprep.subr.bf16.mxu0 0
        %4441 = vmatpush1.bf16.msra.mxu0 %v4292
        %4442 = vmatprep.subr.bf16.mxu0 0
        %4443 = vmatpush1.bf16.msra.mxu0 %v4293
        %4444 = vmatprep.subr.bf16.mxu0 0
        %4445 = vmatpush1.bf16.msra.mxu0 %v4294
        %4446 = vmatprep.subr.bf16.mxu0 0
        %4447 = vmatpush1.bf16.msra.mxu0 %v4295
        %4448 = vmatprep.subr.bf16.mxu0 0
        %4449 = vmatpush1.bf16.msra.mxu0 %v4296
        %4450 = vmatprep.subr.bf16.mxu0 0
        %4451 = vmatpush1.bf16.msra.mxu0 %v4297
        %4452 = vmatprep.subr.bf16.mxu0 0
        %4453 = vmatpush1.bf16.msra.mxu0 %v4298
        %4454 = vmatprep.subr.bf16.mxu0 0
        %4455 = vmatpush1.bf16.msra.mxu0 %v4299
        %4456 = vmatprep.subr.bf16.mxu0 0
        %4457 = vmatpush1.bf16.msra.mxu0 %v4300
        %4458 = vmatprep.subr.bf16.mxu0 0
        %4459 = vmatpush1.bf16.msra.mxu0 %v4301
        %4460 = vmatprep.subr.bf16.mxu0 0
        %4461 = vmatpush1.bf16.msra.mxu0 %v4302
        %4462 = vmatprep.subr.bf16.mxu0 0
        %4463 = vmatpush1.bf16.msra.mxu0 %v4303
        %4464 = vmatprep.mubr.bf16.mxu0 %v3839
        %4465 = vmatmul.mubr.bf16.gmra.mrb[0].mxu0 %v3838
        %v4466 = vpop.f32.mrb[0].mxu0
        %v4467 = vadd.f32 0.0, %v4466
        %v4468 = vpop.f32.mrb[0].mxu0
        %v4469 = vpop.f32.mrb[0].mxu0
        %v4470 = vadd.f32 0.0, %v4469
        %v4471 = vpop.f32.mrb[0].mxu0
        %4472 = vmatprep.mubr.bf16.mxu0 %v3848
        %4473 = vmatmul.mubr.bf16.gmra.mrb[0].mxu0 %v3847
        %v4474 = vpop.f32.mrb[0].mxu0
        %v4475 = vadd.f32 0.0, %v4474
        %v4476 = vpop.f32.mrb[0].mxu0
        %v4477 = vpop.f32.mrb[0].mxu0
        %v4478 = vpop.f32.mrb[0].mxu0
        %4479 = vdwg.mxu0
        %4480 = vmatprep.subr.bf16.mxu0 0
        %4481 = vmatpush1.bf16.msra.mxu0 %v4304
        %4482 = vmatprep.subr.bf16.mxu0 0
        %4483 = vmatpush1.bf16.msra.mxu0 %v4305
        %4484 = vmatprep.subr.bf16.mxu0 0
        %4485 = vmatpush1.bf16.msra.mxu0 %v4306
        %4486 = vmatprep.subr.bf16.mxu0 0
        %4487 = vmatpush1.bf16.msra.mxu0 %v4307
        %4488 = vmatprep.subr.bf16.mxu0 0
        %4489 = vmatpush1.bf16.msra.mxu0 %v4308
        %4490 = vmatprep.subr.bf16.mxu0 0
        %4491 = vmatpush1.bf16.msra.mxu0 %v4309
        %4492 = vmatprep.subr.bf16.mxu0 0
        %4493 = vmatpush1.bf16.msra.mxu0 %v4310
        %4494 = vmatprep.subr.bf16.mxu0 0
        %4495 = vmatpush1.bf16.msra.mxu0 %v4311
        %4496 = vmatprep.subr.bf16.mxu0 0
        %4497 = vmatpush1.bf16.msra.mxu0 %v4312
        %4498 = vmatprep.subr.bf16.mxu0 0
        %4499 = vmatpush1.bf16.msra.mxu0 %v4313
        %4500 = vmatprep.subr.bf16.mxu0 0
        %4501 = vmatpush1.bf16.msra.mxu0 %v4314
        %4502 = vmatprep.subr.bf16.mxu0 0
        %4503 = vmatpush1.bf16.msra.mxu0 %v4315
        %4504 = vmatprep.subr.bf16.mxu0 0
        %4505 = vmatpush1.bf16.msra.mxu0 %v4316
        %4506 = vmatprep.subr.bf16.mxu0 0
        %4507 = vmatpush1.bf16.msra.mxu0 %v4317
        %4508 = vmatprep.subr.bf16.mxu0 0
        %4509 = vmatpush1.bf16.msra.mxu0 %v4318
        %4510 = vmatprep.subr.bf16.mxu0 0
        %4511 = vmatpush1.bf16.msra.mxu0 %v4319
        %4512 = vmatprep.mubr.bf16.mxu0 %v3841
        %4513 = vmatmul.mubr.bf16.gmra.mrb[0].mxu0 %v3840
        %v4514 = vpop.f32.mrb[0].mxu0
        %v4515 = vadd.f32 %v4467, %v4514
        %v4516 = vpop.f32.mrb[0].mxu0
        %v4517 = vpop.f32.mrb[0].mxu0
        %v4518 = vadd.f32 %v4470, %v4517
        %v4519 = vpop.f32.mrb[0].mxu0
        %4520 = vmatprep.mubr.bf16.mxu0 %v3850
        %4521 = vmatmul.mubr.bf16.gmra.mrb[0].mxu0 %v3849
        %v4522 = vpop.f32.mrb[0].mxu0
        %v4523 = vadd.f32 %v4475, %v4522
        %v4524 = vpop.f32.mrb[0].mxu0
        %v4525 = vpop.f32.mrb[0].mxu0
        %v4526 = vpop.f32.mrb[0].mxu0
        %4527 = vdwg.mxu0
        %4528 = vmatprep.subr.bf16.mxu0 0
        %4529 = vmatpush1.bf16.msra.mxu0 %v4320
        %4530 = vmatprep.subr.bf16.mxu0 0
        %4531 = vmatpush1.bf16.msra.mxu0 %v4321
        %4532 = vmatprep.subr.bf16.mxu0 0
        %4533 = vmatpush1.bf16.msra.mxu0 %v4322
        %4534 = vmatprep.subr.bf16.mxu0 0
        %4535 = vmatpush1.bf16.msra.mxu0 %v4323
        %4536 = vmatprep.subr.bf16.mxu0 0
        %4537 = vmatpush1.bf16.msra.mxu0 %v4324
        %4538 = vmatprep.subr.bf16.mxu0 0
        %4539 = vmatpush1.bf16.msra.mxu0 %v4325
        %4540 = vmatprep.subr.bf16.mxu0 0
        %4541 = vmatpush1.bf16.msra.mxu0 %v4326
        %4542 = vmatprep.subr.bf16.mxu0 0
        %4543 = vmatpush1.bf16.msra.mxu0 %v4327
        %4544 = vmatprep.subr.bf16.mxu0 0
        %4545 = vmatpush1.bf16.msra.mxu0 %v4328
        %4546 = vmatprep.subr.bf16.mxu0 0
        %4547 = vmatpush1.bf16.msra.mxu0 %v4329
        %4548 = vmatprep.subr.bf16.mxu0 0
        %4549 = vmatpush1.bf16.msra.mxu0 %v4330
        %4550 = vmatprep.subr.bf16.mxu0 0
        %4551 = vmatpush1.bf16.msra.mxu0 %v4331
        %4552 = vmatprep.subr.bf16.mxu0 0
        %4553 = vmatpush1.bf16.msra.mxu0 %v4332
        %4554 = vmatprep.subr.bf16.mxu0 0
        %4555 = vmatpush1.bf16.msra.mxu0 %v4333
        %4556 = vmatprep.subr.bf16.mxu0 0
        %4557 = vmatpush1.bf16.msra.mxu0 %v4334
        %4558 = vmatprep.subr.bf16.mxu0 0
        %4559 = vmatpush1.bf16.msra.mxu0 %v4335
        %4560 = vmatprep.mubr.bf16.mxu0 %v3843
        %4561 = vmatmul.mubr.bf16.gmra.mrb[0].mxu0 %v3842
        %v4562 = vpop.f32.mrb[0].mxu0
        %v4563 = vadd.f32 %v4515, %v4562
        %v4564 = vpop.f32.mrb[0].mxu0
        %v4565 = vpop.f32.mrb[0].mxu0
        %v4566 = vadd.f32 %v4518, %v4565
        %v4567 = vpop.f32.mrb[0].mxu0
        %4568 = vmatprep.mubr.bf16.mxu0 %v3852
        %4569 = vmatmul.mubr.bf16.gmra.mrb[0].mxu0 %v3851
        %v4570 = vpop.f32.mrb[0].mxu0
        %v4571 = vadd.f32 %v4523, %v4570
        %v4572 = vpop.f32.mrb[0].mxu0
        %v4573 = vpop.f32.mrb[0].mxu0
        %v4574 = vpop.f32.mrb[0].mxu0
        %4575 = vdwg.mxu0
        %4576 = vmatprep.subr.bf16.mxu0 0
        %4577 = vmatpush1.bf16.msra.mxu0 %v4336
        %4578 = vmatprep.subr.bf16.mxu0 0
        %4579 = vmatpush1.bf16.msra.mxu0 %v4337
        %4580 = vmatprep.subr.bf16.mxu0 0
        %4581 = vmatpush1.bf16.msra.mxu0 %v4338
        %4582 = vmatprep.subr.bf16.mxu0 0
        %4583 = vmatpush1.bf16.msra.mxu0 %v4339
        %4584 = vmatprep.subr.bf16.mxu0 0
        %4585 = vmatpush1.bf16.msra.mxu0 %v4340
        %4586 = vmatprep.subr.bf16.mxu0 0
        %4587 = vmatpush1.bf16.msra.mxu0 %v4341
        %4588 = vmatprep.subr.bf16.mxu0 0
        %4589 = vmatpush1.bf16.msra.mxu0 %v4342
        %4590 = vmatprep.subr.bf16.mxu0 0
        %4591 = vmatpush1.bf16.msra.mxu0 %v4343
        %4592 = vmatprep.subr.bf16.mxu0 0
        %4593 = vmatpush1.bf16.msra.mxu0 %v4344
        %4594 = vmatprep.subr.bf16.mxu0 0
        %4595 = vmatpush1.bf16.msra.mxu0 %v4345
        %4596 = vmatprep.subr.bf16.mxu0 0
        %4597 = vmatpush1.bf16.msra.mxu0 %v4346
        %4598 = vmatprep.subr.bf16.mxu0 0
        %4599 = vmatpush1.bf16.msra.mxu0 %v4347
        %4600 = vmatprep.subr.bf16.mxu0 0
        %4601 = vmatpush1.bf16.msra.mxu0 %v4348
        %4602 = vmatprep.subr.bf16.mxu0 0
        %4603 = vmatpush1.bf16.msra.mxu0 %v4349
        %4604 = vmatprep.subr.bf16.mxu0 0
        %4605 = vmatpush1.bf16.msra.mxu0 %v4350
        %4606 = vmatprep.subr.bf16.mxu0 0
        %4607 = vmatpush1.bf16.msra.mxu0 %v4351
        %4608 = vmatprep.mubr.bf16.mxu0 %v3845
        %4609 = vmatmul.mubr.bf16.gmra.mrb[0].mxu0 %v3844
        %v4610 = vpop.f32.mrb[0].mxu0
        %v4611 = vadd.f32 %v4563, %v4610
        %v4612 = vpop.f32.mrb[0].mxu0
        %v4613 = vpop.f32.mrb[0].mxu0
        %v4614 = vadd.f32 %v4566, %v4613
        %v4615 = vpop.f32.mrb[0].mxu0
        %4616 = vmatprep.mubr.bf16.mxu0 %v3854
        %4617 = vmatmul.mubr.bf16.gmra.mrb[0].mxu0 %v3853
        %v4618 = vpop.f32.mrb[0].mxu0
        %v4619 = vadd.f32 %v4571, %v4618
        %v4620 = vpop.f32.mrb[0].mxu0
        %v4621 = vpop.f32.mrb[0].mxu0
        %v4622 = vpop.f32.mrb[0].mxu0
        %4623 = vdwg.mxu0
        %4624 = vmatprep.subr.bf16.mxu0 0
        %4625 = vmatpush1.bf16.msra.mxu0 %v4352
        %4626 = vmatprep.subr.bf16.mxu0 0
        %4627 = vmatpush1.bf16.msra.mxu0 %v4353
        %4628 = vmatprep.subr.bf16.mxu0 0
        %4629 = vmatpush1.bf16.msra.mxu0 %v4354
        %4630 = vmatprep.subr.bf16.mxu0 0
        %4631 = vmatpush1.bf16.msra.mxu0 %v4355
        %4632 = vmatprep.subr.bf16.mxu0 0
        %4633 = vmatpush1.bf16.msra.mxu0 %v4356
        %4634 = vmatprep.subr.bf16.mxu0 0
        %4635 = vmatpush1.bf16.msra.mxu0 %v4357
        %4636 = vmatprep.subr.bf16.mxu0 0
        %4637 = vmatpush1.bf16.msra.mxu0 %v4358
        %4638 = vmatprep.subr.bf16.mxu0 0
        %4639 = vmatpush1.bf16.msra.mxu0 %v4359
        %4640 = vmatprep.subr.bf16.mxu0 0
        %4641 = vmatpush1.bf16.msra.mxu0 0
        %4642 = vmatprep.subr.bf16.mxu0 0
        %4643 = vmatpush1.bf16.msra.mxu0 0
        %4644 = vmatprep.subr.bf16.mxu0 0
        %4645 = vmatpush1.bf16.msra.mxu0 0
        %4646 = vmatprep.subr.bf16.mxu0 0
        %4647 = vmatpush1.bf16.msra.mxu0 0
        %4648 = vmatprep.subr.bf16.mxu0 0
        %4649 = vmatpush1.bf16.msra.mxu0 0
        %4650 = vmatprep.subr.bf16.mxu0 0
        %4651 = vmatpush1.bf16.msra.mxu0 0
        %4652 = vmatprep.subr.bf16.mxu0 0
        %4653 = vmatpush1.bf16.msra.mxu0 0
        %4654 = vmatprep.subr.bf16.mxu0 0
        %4655 = vmatpush1.bf16.msra.mxu0 0
        %4656 = vmatprep.mubr.bf16.mxu0 0
        %4657 = vmatmul.mubr.bf16.gmra.mrb[0].mxu0 %v3846
        %v4658 = vpop.f32.mrb[0].mxu0
        %v4659 = vadd.f32 %v4611, %v4658
        %v4660 = vpop.f32.mrb[0].mxu0
        %v4661 = vpop.f32.mrb[0].mxu0
        %v4662 = vadd.f32 %v4614, %v4661
        %v4663 = vpop.f32.mrb[0].mxu0
        %4664 = vmatprep.mubr.bf16.mxu0 0
        %4665 = vmatmul.mubr.bf16.gmra.mrb[0].mxu0 %v3855
        %v4666 = vpop.f32.mrb[0].mxu0
        %v4667 = vadd.f32 %v4619, %v4666
        %v4668 = vpop.f32.mrb[0].mxu0
        %v4669 = vpop.f32.mrb[0].mxu0
        %v4670 = vpop.f32.mrb[0].mxu0
        %4671 = vdwg.mxu0
        %v4672 = vld [vmem:[%s10] sm:$0x1]
        %v4674 = vlaneseq
        %v4675 = vshrl.u32 %v4674, 7
        %v4676 = vsub.s32 0, %v4675
        %v4677 = vrot.slane %v4672, %v4676
        %v4679 = vmul.f32 %v4659, %v4677
        %v4680 = vmul.f32 %v4662, %v4677
        %v4681 = vmul.f32 %v4667, %v4677
        %v4682 = vld [vmem:[%s11] sm:$0x1]
        %v4684 = vlaneseq
        %v4685 = vshrl.u32 %v4684, 7
        %v4686 = vsub.s32 0, %v4685
        %v4687 = vrot.slane %v4682, %v4686
        %v4689 = vadd.f32 %v4679, %v4687
        %v4690 = vadd.f32 %v4680, %v4687
        %v4691 = vadd.f32 %v4681, %v4687
        %v4692 = vmax.f32 %v4689, 0.0
        %v4693 = vmax.f32 %v4690, 0.0
        %v4694 = vmax.f32 %v4691, 0.0
        %v4695 = vstv %s3763
        %v4696 = vadd.s32 %v698, %v4695
        %v4697 = vadd.s32 %v699, %v4695
        %v4698 = vadd.s32 %v700, %v4695
        %vm4699 = vcmp.ge.s32.totalorder %v4696, 0
        %vm4700 = vcmp.ge.s32.totalorder %v4697, 0
        %vm4701 = vcmp.ge.s32.totalorder %v4698, 0
        %vm4702 = vcmp.lt.s32.totalorder %v4696, 16
        %vm4703 = vcmp.lt.s32.totalorder %v4697, 16
        %vm4704 = vcmp.lt.s32.totalorder %v4698, 16
        %vm4705 = vmand %vm4699, %vm4702
        %vm4706 = vmand %vm4700, %vm4703
        %vm4707 = vmand %vm4701, %vm4704
        %v4708 = vsel %vm4705, 1, 0
        %v4709 = vsel %vm4706, 1, 0
        %v4710 = vsel %vm4707, 1, 0
        %vm4711 = vcmp.eq.s32.totalorder %v4708, 1
        %vm4712 = vcmp.eq.s32.totalorder %v4709, 1
        %vm4713 = vcmp.eq.s32.totalorder %v4710, 1
        %v4714 = vsel %vm4711, %v4692, 0.0
        %v4715 = vsel %vm4712, %v4693, 0.0
        %v4716 = vsel %vm4713, %v4694, 0.0
        %v4717 = vld [vmem:[%s12] sm:$0x1]
        %v4719 = vlaneseq
        %v4720 = vshrl.u32 %v4719, 7
        %v4721 = vsub.s32 0, %v4720
        %v4722 = vrot.slane %v4717, %v4721
        %v4724 = vmul.f32 %v4714, %v4722
        %v4725 = vmul.f32 %v4715, %v4722
        %v4726 = vmul.f32 %v4716, %v4722
        %4727 = vadd.xlane.f32.xlu0 %v4724
        %v4728 = vpop.xlane.xlu0 %4727
        %4729 = vadd.xlane.f32.xlu0 %v4725
        %v4730 = vpop.xlane.xlu0 %4729
        %4731 = vadd.xlane.f32.xlu0 %v4726
        %v4732 = vpop.xlane.xlu0 %4731
        %v4733 = vld [vmem:[#allocation2] sm:$0x1]
        %v4735 = vlaneseq
        %v4736 = vshrl.u32 %v4735, 7
        %v4737 = vsub.s32 0, %v4736
        %v4738 = vrot.slane %v4733, %v4737
        %v4740 = vadd.f32 %v4728, %v4738
        %v4741 = vadd.f32 %v4730, %v4738
        %v4742 = vadd.f32 %v4732, %v4738
        %v4743 = vxor.u32 %v4740, 2147483648
        %v4744 = vxor.u32 %v4741, 2147483648
        %v4745 = vxor.u32 %v4742, 2147483648
        %v4746 = vmul.f32 %v4743, 1.442695
        %v4747 = vpow.pop %v4746
        %v4748 = vmul.f32 %v4744, 1.442695
        %v4749 = vpow.pop %v4748
        %v4750 = vmul.f32 %v4745, 1.442695
        %v4751 = vpow.pop %v4750
        %v4752 = vadd.f32 %v4747, 1.0
        %v4753 = vadd.f32 %v4749, 1.0
        %v4754 = vadd.f32 %v4751, 1.0
        %v4755 = vrcp.pop %v4752
        %v4756 = vmul.f32 1.0, %v4755
        %v4757 = vrcp.pop %v4753
        %v4758 = vmul.f32 1.0, %v4757
        %v4759 = vrcp.pop %v4754
        %v4760 = vmul.f32 1.0, %v4759
        %vm4761 = vcmask 7172
        %4762 = vst.msk [vmem:[%s674 - $0x4] sm:$0xf0] %vm4761, %v4756
        %vm4763 = vcmask 7168
        %4764 = vst.msk [vmem:[%s674 + $0x4] sm:$0xff] %vm4763, %v4758
        %vm4765 = vcmask 3072
        %4766 = vst.msk [vmem:[%s674 + $0xc] sm:$0xf] %vm4765, %v4760
        %s4767 = smul.u32 2, %s34
        %p4768 = scmp.lt.s32.totalorder %s33, 1
        %s4769 = scalar_select %p4768, %s33, 1
        %p4770 = scmp.lt.s32.totalorder %s4767, 1
        %s4771 = scalar_select %p4770, %s4767, 1
        %s4772 = smul.addr %s4769, 2
        %s4773 = sadd.s32 %s4771, %s4772
        %s4774 = smul.addr %s4773, 8
        %s4775 = scalar_lea.vmem %s14, %s4774
        // Predicated region
        $region89: #{cnn_time_signature_forward.1} parent=75 // pred_check
          %p4776 = pneg %p388
        $region90: #{cnn_time_signature_forward.1} parent=75 // pred_check_branch
          %4778 = sbr.rel (%p4776) target = $region92
        $region91: #{cnn_time_signature_forward.1} parent=75 // pred_region
          %s4779 = smul.u32 2, %s34
        $region92: #{cnn_time_signature_forward.1} parent=75 // pred_fallthru
          _
      $region76: #{cnn_time_signature_forward.1} parent=5 // pred_fallthru
        _
      %p4780 = scmp.le.s32.totalorder 2, %s24
      // Predicated region
      $region93: #{cnn_time_signature_forward.1} parent=5 // pred_check
        %p4781 = pneg %p4780
      $region94: #{cnn_time_signature_forward.1} parent=5 // pred_check_branch
        %4783 = sbr.rel (%p4781) target = $region96
      $region95: #{cnn_time_signature_forward.1} parent=5 // pred_region
        %s4784 = ssub.s32 %s24, 2
        // Predicated region
        $region97: #{cnn_time_signature_forward.1} parent=95 // pred_check
          %p4785 = pneg %p394
        $region98: #{cnn_time_signature_forward.1} parent=95 // pred_check_branch
          %4787 = sbr.rel (%p4785) target = $region100
        $region99: #{cnn_time_signature_forward.1} parent=95 // pred_region
          %s4788 = smul.u32 2, %s36
          %p4789 = scmp.lt.s32.totalorder %s35, 1
          %s4790 = scalar_select %p4789, %s35, 1
          %p4791 = scmp.lt.s32.totalorder %s4788, 1
          %s4792 = scalar_select %p4791, %s4788, 1
          %s4793 = smul.addr %s4790, 2
          %s4794 = sadd.s32 %s4792, %s4793
          %s4795 = smul.addr %s4794, 8
          %s4796 = scalar_lea.vmem %s14, %s4795
        $region100: #{cnn_time_signature_forward.1} parent=95 // pred_fallthru
          _
      $region96: #{cnn_time_signature_forward.1} parent=5 // pred_fallthru
        _
    $region6: #{cnn_time_signature_forward.1} parent=1 // loop_footer
      %s28 = sadd.s32 1, %s24
    $region7: #{cnn_time_signature_forward.1} parent=1 // loop_footer_branch
      %23 = sbr.rel target = $region3
    $region8: #{cnn_time_signature_forward.1} parent=1 // loop_exit
      _
    %4797 = vsyncpa [#allocation4], 1
    %s4798 = scalar_lea.sflag [#allocation4], 1
    %4799 = vsyncpa %s4798, 1
    %4800 = vsyncpa [#allocation6], 1

</llo_original>
